<compile_context>
chip_gen: v6e
topology: v6e:2x2x1
jax: 0.10.0
libtpu: 0.0.40
codegen_flags: <defaults>
</compile_context>

<pallas_src>
import functools
import math

import jax
import jax.numpy as jnp
from jax import lax
from jax.experimental import pallas as pl
from jax.experimental.pallas import tpu as pltpu

# ----------------------------- configuration -------------------------------
BATCH = 2
STATE_DIM = 8
ACTION_DIM = 4
EMBED_DIM = 32
GOAL_SEQ_LEN = 0            # goal_conditioned = False -> goal branch disabled
OBS_SEQ_LEN = 4
ACTION_SEQ_LEN = 4
PRED_HIDDEN = 100           # Linear(E,100) -> GELU -> Linear(100,A)
PRED_HIDDEN_PAD = 128       # zero-padded to 128 lanes (numerically identical)

D_INNER = 2 * EMBED_DIM     # mamba expansion
D_STATE = 8
DT_RANK = 4

MAMBA_PARAM_ORDER = ("w_x", "b_x", "w_z", "b_z", "w_dt", "b_dt",
                     "w_bc_t", "neg_a2", "d_row", "w_out", "b_out")


# ------------------------- in-kernel math helpers ---------------------------
def _mxu(a, b):
    """Matmul with bf16 MXU inputs and f32 accumulation."""
    return jnp.dot(a.astype(jnp.bfloat16), b.astype(jnp.bfloat16),
                   preferred_element_type=jnp.float32)


def _softplus(x):
    # numerically stable softplus (no inf for large x)
    return jnp.where(x > 20.0, x, jnp.log(1.0 + jnp.exp(jnp.minimum(x, 20.0))))


def _sigmoid(x):
    # stable sigmoid via exp(-|x|); exact divide (no approx reciprocal).
    e = jnp.exp(-jnp.abs(x))
    r = 1.0 / (1.0 + e)
    return jnp.where(x >= 0.0, r, e * r)


def _silu(x):
    return x * _sigmoid(x)


def _mish(x):
    return x * jnp.tanh(_softplus(x))


def _erf(x):
    # Abramowitz & Stegun 7.1.26, max abs error 1.5e-7
    a1, a2, a3, a4, a5 = 0.254829592, -0.284496736, 1.421413741, -1.453152027, 1.061405429
    p = 0.3275911
    sgn = jnp.where(x >= 0.0, 1.0, -1.0)
    ax = jnp.abs(x)
    t = 1.0 / (1.0 + p * ax)
    poly = ((((a5 * t + a4) * t + a3) * t + a2) * t + a1) * t
    return sgn * (1.0 - poly * jnp.exp(-ax * ax))


def _gelu(x):
    return 0.5 * x * (1.0 + _erf(x * (1.0 / math.sqrt(2.0))))


# -------------------- mamba-style selective-SSM sub-block -------------------
def _mamba_mix(x, prefs, seq, batch, y_scr):
    """x: (batch*seq, E) rows ordered b*seq + t.  Returns per-batch (seq, E)."""
    (w_x_ref, b_x_ref, w_z_ref, b_z_ref, w_dt_ref, b_dt_ref,
     w_bc_t_ref, neg_a2_ref, d_row_ref, w_out_ref, b_out_ref) = prefs

    # in_proj split into two weights (no mid-vreg lane split of xz)
    xin = _silu(_mxu(x, w_x_ref[...]) + b_x_ref[...])            # (n, d_inner)
    z = _mxu(x, w_z_ref[...]) + b_z_ref[...]                     # (n, d_inner)

    # dt path: low-rank weights folded into one matmul at init
    dt = _softplus(_mxu(xin, w_dt_ref[...]) + b_dt_ref[...])     # (n, d_inner)

    # B/C feature-major via one fused transpose_rhs matmul: (2*d_state, n)
    bc_fm = lax.dot_general(
        w_bc_t_ref[...].astype(jnp.bfloat16), xin.astype(jnp.bfloat16),
        (((1,), (1,)), ((), ())), preferred_element_type=jnp.float32)
    b_fm = bc_fm[:D_STATE, :]                                    # (d_state, n)
    c_fm = bc_fm[D_STATE:, :]                                    # (d_state, n)

    # --- pack both batches side-by-side on lanes (minor-dim concats) -------
    dt_p = jnp.concatenate([dt[b * seq:(b + 1) * seq, :] for b in range(batch)], axis=1)
    xin_p = jnp.concatenate([xin[b * seq:(b + 1) * seq, :] for b in range(batch)], axis=1)
    u_p = dt_p * xin_p                                           # (seq, batch*d_inner)
    na2 = neg_a2_ref[...]                                        # (d_state, batch*d_inner)

    # --- hoist every h-independent term off the serial chain ---------------
    decays, ubs, cps = [], [], []
    for tt in range(seq):
        decays.append(jnp.exp(na2 * dt_p[tt:tt + 1, :]))         # (8, 128)
        ubs.append(jnp.concatenate(
            [u_p[tt:tt + 1, b * D_INNER:(b + 1) * D_INNER]
             * b_fm[:, b * seq + tt:b * seq + tt + 1]
             for b in range(batch)], axis=1))                    # (8, 128)
        cps.append(jnp.concatenate(
            [jnp.broadcast_to(c_fm[:, b * seq + tt:b * seq + tt + 1],
                              (D_STATE, D_INNER))
             for b in range(batch)], axis=1))                    # (8, 128)

    # --- serial recurrence: one full (8,128) vreg, 2 VPU ops per step -------
    h = jnp.zeros((D_STATE, batch * D_INNER), jnp.float32)
    for tt in range(seq):
        h = decays[tt] * h + ubs[tt]
        # readout is a leaf of the h-chain; one lane-dense (1,128) row store
        y_scr[tt:tt + 1, :] = jnp.sum(h * cps[tt], axis=0, keepdims=True)

    # --- per-batch epilogue: D skip, gate, out projection -------------------
    d_row = d_row_ref[...]
    w_out = w_out_ref[...]
    b_out = b_out_ref[...]
    outs = []
    for b in range(batch):
        y_b = y_scr[0:seq, b * D_INNER:(b + 1) * D_INNER]        # (seq, d_inner)
        y_b = (y_b + xin[b * seq:(b + 1) * seq, :] * d_row) \
            * _silu(z[b * seq:(b + 1) * seq, :])
        outs.append(_mxu(y_b, w_out) + b_out)                    # (seq, E)
    return outs


# ------------------------------ fused kernel --------------------------------
def _fused_kernel(*refs, batch, obs_len, act_seq_len):
    (sin_ref, st_ref, ac_ref, pos_ref,
     tw1_ref, tb1_ref, tw2_ref, tb2_ref,
     tokw_ref, tokb_ref, actw_ref, actb_ref) = refs[0:12]
    m1_refs = refs[12:23]
    m2_refs = refs[23:34]
    hw1_ref, hb1_ref, hw2_ref, hb2_ref = refs[34:38]
    o_ref = refs[38]
    x1_scr, x2_scr, y1_scr, y2_scr = refs[39:43]

    t_obs = obs_len
    ta = t_obs + act_seq_len - 1
    t1 = 2 * t_obs                       # 1 + 2*(t-1) + 1
    t2 = t1 + act_seq_len

    # ---- time-embedding MLP: Linear -> Mish -> Linear ----------------------
    h0 = _mxu(sin_ref[...], tw1_ref[...]) + tb1_ref[...]
    emb_t = _mxu(_mish(h0), tw2_ref[...]) + tb2_ref[...]          # (batch, E)

    # ---- token / action embeddings -----------------------------------------
    st_emb = _mxu(st_ref[...], tokw_ref[...]) + tokb_ref[...]     # (batch*t, E)
    ac_emb = _mxu(ac_ref[...], actw_ref[...]) + actb_ref[...]     # (batch*ta, E)

    pos_s = pos_ref[0:t_obs, :]          # goal_seq_len = 0 (not goal-conditioned)
    pos_a = pos_ref[0:ta, :]

    # ---- sequence assembly (static row stores into VMEM scratch) ----------
    for b in range(batch):
        st_b = st_emb[b * t_obs:(b + 1) * t_obs, :] + pos_s       # (t, E)
        ac_b = ac_emb[b * ta:(b + 1) * ta, :] + pos_a             # (ta, E)
        base = b * t1
        x1_scr[base:base + 1, :] = emb_t[b:b + 1, :]
        for i in range(t_obs - 1):       # interleave s_i, a_i (torch stack+permute)
            x1_scr[base + 1 + 2 * i:base + 2 + 2 * i, :] = st_b[i:i + 1, :]
            x1_scr[base + 2 + 2 * i:base + 3 + 2 * i, :] = ac_b[i:i + 1, :]
        x1_scr[base + t1 - 1:base + t1, :] = st_b[t_obs - 1:t_obs, :]   # current state
        # action-prediction tokens go straight into the decoder input
        x2_scr[b * t2 + t1:(b + 1) * t2, :] = ac_b[t_obs - 1:ta, :]

    # ---- mamba block --------------------------------------------------------
    outs1 = _mamba_mix(x1_scr[...], m1_refs, t1, batch, y1_scr)
    for b in range(batch):
        x2_scr[b * t2:b * t2 + t1, :] = outs1[b]

    # ---- decoder block ------------------------------------------------------
    outs2 = _mamba_mix(x2_scr[...], m2_refs, t2, batch, y2_scr)

    # ---- action head on the prediction rows only: Linear -> GELU -> Linear --
    hw1 = hw1_ref[...]
    hb1 = hb1_ref[...]
    hw2 = hw2_ref[...]
    hb2 = hb2_ref[...]
    for b in range(batch):
        pr = outs2[b][t1:t2, :]                                   # (asl, E)
        hid = _gelu(_mxu(pr, hw1) + hb1)                          # (asl, 128)
        o_ref[b * act_seq_len:(b + 1) * act_seq_len, :] = _mxu(hid, hw2) + hb2


# ----------------------------- parameter init --------------------------------
def _init_mamba_params(key, e):
    ks = jax.random.split(key, 7)
    nrm = lambda k, shp, s: jax.random.normal(k, shp, jnp.float32) * s
    w_xdt = nrm(ks[2], (D_INNER, DT_RANK), 0.1)
    w_dt_lr = nrm(ks[3], (DT_RANK, D_INNER), 0.1)
    w_b = nrm(ks[4], (D_INNER, D_STATE), 0.1)
    w_c = nrm(ks[5], (D_INNER, D_STATE), 0.1)
    a_log = jnp.log(jnp.tile(jnp.arange(1, D_STATE + 1, dtype=jnp.float32)[None, :],
                             (D_INNER, 1)))                       # (d_inner, d_state)
    neg_a_t = (-jnp.exp(a_log)).T                                 # (d_state, d_inner)
    return dict(
        # in_proj split into xin / z halves (no runtime lane split)
        w_x=nrm(ks[0], (e, D_INNER), 0.02).astype(jnp.bfloat16),
        b_x=jnp.zeros((1, D_INNER), jnp.float32),
        w_z=nrm(ks[1], (e, D_INNER), 0.02).astype(jnp.bfloat16),
        b_z=jnp.zeros((1, D_INNER), jnp.float32),
        # low-rank dt projection folded into one weight (f32 product, then bf16)
        w_dt=(w_xdt @ w_dt_lr).astype(jnp.bfloat16),
        b_dt=jnp.zeros((1, D_INNER), jnp.float32),
        # fused B/C projection, stored pre-transposed: (2*d_state, d_inner)
        w_bc_t=jnp.concatenate([w_b, w_c], axis=1).T.astype(jnp.bfloat16),
        # A = -exp(A_log), transposed and tiled for the batch-packed lane layout
        neg_a2=jnp.concatenate([neg_a_t] * BATCH, axis=1),        # (d_state, BATCH*d_inner)
        d_row=jnp.ones((1, D_INNER), jnp.float32),
        w_out=nrm(ks[6], (D_INNER, e), 0.02).astype(jnp.bfloat16),
        b_out=jnp.zeros((1, e), jnp.float32),
    )


def init_params(key):
    e = EMBED_DIM
    seq_size = GOAL_SEQ_LEN + OBS_SEQ_LEN - 1 + ACTION_SEQ_LEN
    ks = jax.random.split(key, 10)
    nrm = lambda k, shp: jax.random.normal(k, shp, jnp.float32) * 0.02   # _init_weights
    # action head Linear(E,100) -> GELU -> Linear(100,A); zero-pad hidden to 128
    # lanes (identical function: GELU(0)=0 and the padded rows of w2 are zero).
    w1 = nrm(ks[4], (e, PRED_HIDDEN))
    w2 = nrm(ks[5], (PRED_HIDDEN, ACTION_DIM))
    w1p = jnp.zeros((e, PRED_HIDDEN_PAD), jnp.float32).at[:, :PRED_HIDDEN].set(w1)
    w2p = jnp.zeros((PRED_HIDDEN_PAD, ACTION_DIM), jnp.float32).at[:PRED_HIDDEN, :].set(w2)
    return dict(
        tok_w=nrm(ks[0], (STATE_DIM, e)).astype(jnp.bfloat16),
        tok_b=jnp.zeros((1, e), jnp.float32),
        act_w=nrm(ks[1], (ACTION_DIM, e)).astype(jnp.bfloat16),
        act_b=jnp.zeros((1, e), jnp.float32),
        pos_emb=jnp.zeros((seq_size, e), jnp.float32),            # torch.zeros in __init__
        time_w1=nrm(ks[2], (e, 2 * e)).astype(jnp.bfloat16),
        time_b1=jnp.zeros((1, 2 * e), jnp.float32),
        time_w2=nrm(ks[3], (2 * e, e)).astype(jnp.bfloat16),
        time_b2=jnp.zeros((1, e), jnp.float32),
        head=dict(w1=w1p.astype(jnp.bfloat16),
                  b1=jnp.zeros((1, PRED_HIDDEN_PAD), jnp.float32),
                  w2=w2p.astype(jnp.bfloat16),
                  b2=jnp.zeros((1, ACTION_DIM), jnp.float32)),
        mamba=_init_mamba_params(ks[6], e),
        decoder=_init_mamba_params(ks[7], e),
    )


# ----------------------------- forward (glue) --------------------------------
def forward(params, actions, time, states):
    """Mirrors DiffusionTwoMamba.forward (eval mode: dropout = identity,
    goal_conditioned = False).  Exactly one pallas_call."""
    b, t, _ = states.shape
    ta = actions.shape[1]
    assert b == BATCH and t == OBS_SEQ_LEN and t > 1
    assert ta == t + ACTION_SEQ_LEN - 1
    e = EMBED_DIM
    half = e // 2

    # sinusoidal time features: tiny (b, e/2) trig kept outside the kernel
    # (only pre-kernel math; everything else is fused).
    freqs = jnp.exp(jnp.arange(half, dtype=jnp.float32)
                    * (-math.log(10000.0) / (half - 1)))
    ang = time.reshape(b, 1) * freqs[None, :]
    sin_emb = jnp.concatenate([jnp.sin(ang), jnp.cos(ang)], axis=-1)      # (b, e)

    t1 = 2 * t
    t2 = t1 + ACTION_SEQ_LEN
    args = [sin_emb,
            states.reshape(b * t, STATE_DIM),
            actions.reshape(b * ta, ACTION_DIM),
            params["pos_emb"],
            params["time_w1"], params["time_b1"], params["time_w2"], params["time_b2"],
            params["tok_w"], params["tok_b"], params["act_w"], params["act_b"]]
    args += [params["mamba"][k] for k in MAMBA_PARAM_ORDER]
    args += [params["decoder"][k] for k in MAMBA_PARAM_ORDER]
    args += [params["head"]["w1"], params["head"]["b1"],
             params["head"]["w2"], params["head"]["b2"]]

    out = pl.pallas_call(
        functools.partial(_fused_kernel, batch=b, obs_len=t,
                          act_seq_len=ACTION_SEQ_LEN),
        out_shape=jax.ShapeDtypeStruct((b * ACTION_SEQ_LEN, ACTION_DIM), jnp.float32),
        scratch_shapes=[pltpu.VMEM((b * t1, e), jnp.float32),        # mamba input
                        pltpu.VMEM((b * t2, e), jnp.float32),        # decoder input
                        pltpu.VMEM((t1, b * D_INNER), jnp.float32),  # mamba scan rows
                        pltpu.VMEM((t2, b * D_INNER), jnp.float32)], # decoder scan rows
    )(*args)
    return out.reshape(b, ACTION_SEQ_LEN, ACTION_DIM)


# ----------------------------------- main ------------------------------------
if __name__ == "__main__":
    key = jax.random.PRNGKey(0)
    kp, k1, k2, k3 = jax.random.split(key, 4)

    params = init_params(kp)
    states = jax.random.normal(k1, (BATCH, OBS_SEQ_LEN, STATE_DIM), jnp.float32)
    actions = jax.random.normal(
        k2, (BATCH, OBS_SEQ_LEN + ACTION_SEQ_LEN - 1, ACTION_DIM), jnp.float32)
    time_steps = jax.random.uniform(k3, (BATCH,), jnp.float32) * 100.0

    out = jax.jit(forward)(params, actions, time_steps, states)
    out = jax.block_until_ready(out)

    assert out.shape == (BATCH, ACTION_SEQ_LEN, ACTION_DIM), out.shape
    assert bool(jnp.all(jnp.isfinite(out)))
    print("KERNEL_OK")
</pallas_src>

<mosaic_0001>
module attributes {stable_mosaic.version = 11 : i64} {
  func.func @_fused_kernel(%arg0: memref<2x32xf32, #tpu.memory_space<vmem>>, %arg1: memref<8x8xf32, #tpu.memory_space<vmem>>, %arg2: memref<14x4xf32, #tpu.memory_space<vmem>>, %arg3: memref<7x32xf32, #tpu.memory_space<vmem>>, %arg4: memref<32x64xbf16, #tpu.memory_space<vmem>>, %arg5: memref<1x64xf32, #tpu.memory_space<vmem>>, %arg6: memref<64x32xbf16, #tpu.memory_space<vmem>>, %arg7: memref<1x32xf32, #tpu.memory_space<vmem>>, %arg8: memref<8x32xbf16, #tpu.memory_space<vmem>>, %arg9: memref<1x32xf32, #tpu.memory_space<vmem>>, %arg10: memref<4x32xbf16, #tpu.memory_space<vmem>>, %arg11: memref<1x32xf32, #tpu.memory_space<vmem>>, %arg12: memref<32x64xbf16, #tpu.memory_space<vmem>>, %arg13: memref<1x64xf32, #tpu.memory_space<vmem>>, %arg14: memref<32x64xbf16, #tpu.memory_space<vmem>>, %arg15: memref<1x64xf32, #tpu.memory_space<vmem>>, %arg16: memref<64x64xbf16, #tpu.memory_space<vmem>>, %arg17: memref<1x64xf32, #tpu.memory_space<vmem>>, %arg18: memref<16x64xbf16, #tpu.memory_space<vmem>>, %arg19: memref<8x128xf32, #tpu.memory_space<vmem>>, %arg20: memref<1x64xf32, #tpu.memory_space<vmem>>, %arg21: memref<64x32xbf16, #tpu.memory_space<vmem>>, %arg22: memref<1x32xf32, #tpu.memory_space<vmem>>, %arg23: memref<32x64xbf16, #tpu.memory_space<vmem>>, %arg24: memref<1x64xf32, #tpu.memory_space<vmem>>, %arg25: memref<32x64xbf16, #tpu.memory_space<vmem>>, %arg26: memref<1x64xf32, #tpu.memory_space<vmem>>, %arg27: memref<64x64xbf16, #tpu.memory_space<vmem>>, %arg28: memref<1x64xf32, #tpu.memory_space<vmem>>, %arg29: memref<16x64xbf16, #tpu.memory_space<vmem>>, %arg30: memref<8x128xf32, #tpu.memory_space<vmem>>, %arg31: memref<1x64xf32, #tpu.memory_space<vmem>>, %arg32: memref<64x32xbf16, #tpu.memory_space<vmem>>, %arg33: memref<1x32xf32, #tpu.memory_space<vmem>>, %arg34: memref<32x128xbf16, #tpu.memory_space<vmem>>, %arg35: memref<1x128xf32, #tpu.memory_space<vmem>>, %arg36: memref<128x4xbf16, #tpu.memory_space<vmem>>, %arg37: memref<1x4xf32, #tpu.memory_space<vmem>>, %arg38: memref<8x4xf32, #tpu.memory_space<vmem>>, %arg39: memref<16x32xf32, #tpu.memory_space<vmem>>, %arg40: memref<24x32xf32, #tpu.memory_space<vmem>>, %arg41: memref<8x128xf32, #tpu.memory_space<vmem>>, %arg42: memref<12x128xf32, #tpu.memory_space<vmem>>) attributes {dimension_semantics = [], scalar_prefetch = 0 : i64, scratch_operands = 4 : i64, tpu.core_type = #tpu.core_type<tc>} {
    %c0 = arith.constant 0 : index
    %c0_0 = arith.constant 0 : index
    %0 = vector.load %arg0[%c0, %c0_0] : memref<2x32xf32, #tpu.memory_space<vmem>>, vector<2x32xf32>
    %c0_1 = arith.constant 0 : index
    %c0_2 = arith.constant 0 : index
    %1 = vector.load %arg4[%c0_1, %c0_2] : memref<32x64xbf16, #tpu.memory_space<vmem>>, vector<32x64xbf16>
    %2 = arith.truncf %0 : vector<2x32xf32> to vector<2x32xbf16>
    %cst = arith.constant dense<0.000000e+00> : vector<2x64xf32>
    %3 = tpu.matmul %2, %1, %cst {dimension_numbers = #tpu.dot_dimension_numbers<[1], [0], [0], [1], [0, 0, 1, 1], [], []>} : vector<2x32xbf16>, vector<32x64xbf16>, vector<2x64xf32> -> vector<2x64xf32>
    %c0_3 = arith.constant 0 : index
    %c0_4 = arith.constant 0 : index
    %4 = vector.load %arg5[%c0_3, %c0_4] : memref<1x64xf32, #tpu.memory_space<vmem>>, vector<1x64xf32>
    %5 = vector.broadcast %4 : vector<1x64xf32> to vector<2x64xf32>
    %6 = arith.addf %3, %5 : vector<2x64xf32>
    %cst_5 = arith.constant 2.000000e+01 : f32
    %7 = vector.broadcast %cst_5 : f32 to vector<2x64xf32>
    %8 = arith.cmpf ogt, %6, %7 : vector<2x64xf32>
    %cst_6 = arith.constant 2.000000e+01 : f32
    %9 = vector.broadcast %cst_6 : f32 to vector<2x64xf32>
    %10 = arith.minimumf %6, %9 : vector<2x64xf32>
    %11 = math.exp %10 : vector<2x64xf32>
    %cst_7 = arith.constant 1.000000e+00 : f32
    %12 = vector.broadcast %cst_7 : f32 to vector<2x64xf32>
    %13 = arith.addf %12, %11 : vector<2x64xf32>
    %14 = math.log %13 : vector<2x64xf32>
    %15 = arith.select %8, %6, %14 : vector<2x64xi1>, vector<2x64xf32>
    %16 = math.tanh %15 : vector<2x64xf32>
    %17 = arith.mulf %6, %16 : vector<2x64xf32>
    %c0_8 = arith.constant 0 : index
    %c0_9 = arith.constant 0 : index
    %18 = vector.load %arg6[%c0_8, %c0_9] : memref<64x32xbf16, #tpu.memory_space<vmem>>, vector<64x32xbf16>
    %19 = arith.truncf %17 : vector<2x64xf32> to vector<2x64xbf16>
    %cst_10 = arith.constant dense<0.000000e+00> : vector<2x32xf32>
    %20 = tpu.matmul %19, %18, %cst_10 {dimension_numbers = #tpu.dot_dimension_numbers<[1], [0], [0], [1], [0, 0, 1, 1], [], []>} : vector<2x64xbf16>, vector<64x32xbf16>, vector<2x32xf32> -> vector<2x32xf32>
    %c0_11 = arith.constant 0 : index
    %c0_12 = arith.constant 0 : index
    %21 = vector.load %arg7[%c0_11, %c0_12] : memref<1x32xf32, #tpu.memory_space<vmem>>, vector<1x32xf32>
    %22 = vector.broadcast %21 : vector<1x32xf32> to vector<2x32xf32>
    %23 = arith.addf %20, %22 : vector<2x32xf32>
    %c0_13 = arith.constant 0 : index
    %c0_14 = arith.constant 0 : index
    %24 = vector.load %arg1[%c0_13, %c0_14] : memref<8x8xf32, #tpu.memory_space<vmem>>, vector<8x8xf32>
    %c0_15 = arith.constant 0 : index
    %c0_16 = arith.constant 0 : index
    %25 = vector.load %arg8[%c0_15, %c0_16] : memref<8x32xbf16, #tpu.memory_space<vmem>>, vector<8x32xbf16>
    %26 = arith.truncf %24 : vector<8x8xf32> to vector<8x8xbf16>
    %cst_17 = arith.constant dense<0.000000e+00> : vector<8x32xf32>
    %27 = tpu.matmul %26, %25, %cst_17 {dimension_numbers = #tpu.dot_dimension_numbers<[1], [0], [0], [1], [0, 0, 1, 1], [], []>} : vector<8x8xbf16>, vector<8x32xbf16>, vector<8x32xf32> -> vector<8x32xf32>
    %c0_18 = arith.constant 0 : index
    %c0_19 = arith.constant 0 : index
    %28 = vector.load %arg9[%c0_18, %c0_19] : memref<1x32xf32, #tpu.memory_space<vmem>>, vector<1x32xf32>
    %29 = vector.broadcast %28 : vector<1x32xf32> to vector<8x32xf32>
    %30 = arith.addf %27, %29 : vector<8x32xf32>
    %c0_20 = arith.constant 0 : index
    %c0_21 = arith.constant 0 : index
    %31 = vector.load %arg2[%c0_20, %c0_21] : memref<14x4xf32, #tpu.memory_space<vmem>>, vector<14x4xf32>
    %c0_22 = arith.constant 0 : index
    %c0_23 = arith.constant 0 : index
    %32 = vector.load %arg10[%c0_22, %c0_23] : memref<4x32xbf16, #tpu.memory_space<vmem>>, vector<4x32xbf16>
    %33 = arith.truncf %31 : vector<14x4xf32> to vector<14x4xbf16>
    %cst_24 = arith.constant dense<0.000000e+00> : vector<14x32xf32>
    %34 = tpu.matmul %33, %32, %cst_24 {dimension_numbers = #tpu.dot_dimension_numbers<[1], [0], [0], [1], [0, 0, 1, 1], [], []>} : vector<14x4xbf16>, vector<4x32xbf16>, vector<14x32xf32> -> vector<14x32xf32>
    %c0_25 = arith.constant 0 : index
    %c0_26 = arith.constant 0 : index
    %35 = vector.load %arg11[%c0_25, %c0_26] : memref<1x32xf32, #tpu.memory_space<vmem>>, vector<1x32xf32>
    %36 = vector.broadcast %35 : vector<1x32xf32> to vector<14x32xf32>
    %37 = arith.addf %34, %36 : vector<14x32xf32>
    %c0_27 = arith.constant 0 : index
    %c0_28 = arith.constant 0 : index
    %38 = vector.load %arg3[%c0_27, %c0_28] : memref<7x32xf32, #tpu.memory_space<vmem>>, vector<4x32xf32>
    %c0_29 = arith.constant 0 : index
    %c0_30 = arith.constant 0 : index
    %39 = vector.load %arg3[%c0_29, %c0_30] : memref<7x32xf32, #tpu.memory_space<vmem>>, vector<7x32xf32>
    %40 = vector.extract_strided_slice %30 {offsets = [0, 0], sizes = [4, 32], strides = [1, 1]} : vector<8x32xf32> to vector<4x32xf32>
    %41 = arith.addf %40, %38 : vector<4x32xf32>
    %42 = vector.extract_strided_slice %37 {offsets = [0, 0], sizes = [7, 32], strides = [1, 1]} : vector<14x32xf32> to vector<7x32xf32>
    %43 = arith.addf %42, %39 : vector<7x32xf32>
    %44 = vector.extract_strided_slice %23 {offsets = [0, 0], sizes = [1, 32], strides = [1, 1]} : vector<2x32xf32> to vector<1x32xf32>
    %c0_31 = arith.constant 0 : index
    %c0_32 = arith.constant 0 : index
    %45 = vector.load %arg39[%c0_31, %c0_32] : memref<16x32xf32, #tpu.memory_space<vmem>>, vector<1x32xf32>
    tpu.vector_store %arg39[%c0_31, %c0_32], %44 {strides = array<i32>} : memref<16x32xf32, #tpu.memory_space<vmem>>, vector<1x32xf32>,
    %46 = vector.extract_strided_slice %41 {offsets = [0, 0], sizes = [1, 32], strides = [1, 1]} : vector<4x32xf32> to vector<1x32xf32>
    %c1 = arith.constant 1 : index
    %c0_33 = arith.constant 0 : index
    %47 = vector.load %arg39[%c1, %c0_33] : memref<16x32xf32, #tpu.memory_space<vmem>>, vector<1x32xf32>
    tpu.vector_store %arg39[%c1, %c0_33], %46 {strides = array<i32>} : memref<16x32xf32, #tpu.memory_space<vmem>>, vector<1x32xf32>,
    %48 = vector.extract_strided_slice %43 {offsets = [0, 0], sizes = [1, 32], strides = [1, 1]} : vector<7x32xf32> to vector<1x32xf32>
    %c2 = arith.constant 2 : index
    %c0_34 = arith.constant 0 : index
    %49 = vector.load %arg39[%c2, %c0_34] : memref<16x32xf32, #tpu.memory_space<vmem>>, vector<1x32xf32>
    tpu.vector_store %arg39[%c2, %c0_34], %48 {strides = array<i32>} : memref<16x32xf32, #tpu.memory_space<vmem>>, vector<1x32xf32>,
    %50 = vector.extract_strided_slice %41 {offsets = [1, 0], sizes = [1, 32], strides = [1, 1]} : vector<4x32xf32> to vector<1x32xf32>
    %c3 = arith.constant 3 : index
    %c0_35 = arith.constant 0 : index
    %51 = vector.load %arg39[%c3, %c0_35] : memref<16x32xf32, #tpu.memory_space<vmem>>, vector<1x32xf32>
    tpu.vector_store %arg39[%c3, %c0_35], %50 {strides = array<i32>} : memref<16x32xf32, #tpu.memory_space<vmem>>, vector<1x32xf32>,
    %52 = vector.extract_strided_slice %43 {offsets = [1, 0], sizes = [1, 32], strides = [1, 1]} : vector<7x32xf32> to vector<1x32xf32>
    %c4 = arith.constant 4 : index
    %c0_36 = arith.constant 0 : index
    %53 = vector.load %arg39[%c4, %c0_36] : memref<16x32xf32, #tpu.memory_space<vmem>>, vector<1x32xf32>
    tpu.vector_store %arg39[%c4, %c0_36], %52 {strides = array<i32>} : memref<16x32xf32, #tpu.memory_space<vmem>>, vector<1x32xf32>,
    %54 = vector.extract_strided_slice %41 {offsets = [2, 0], sizes = [1, 32], strides = [1, 1]} : vector<4x32xf32> to vector<1x32xf32>
    %c5 = arith.constant 5 : index
    %c0_37 = arith.constant 0 : index
    %55 = vector.load %arg39[%c5, %c0_37] : memref<16x32xf32, #tpu.memory_space<vmem>>, vector<1x32xf32>
    tpu.vector_store %arg39[%c5, %c0_37], %54 {strides = array<i32>} : memref<16x32xf32, #tpu.memory_space<vmem>>, vector<1x32xf32>,
    %56 = vector.extract_strided_slice %43 {offsets = [2, 0], sizes = [1, 32], strides = [1, 1]} : vector<7x32xf32> to vector<1x32xf32>
    %c6 = arith.constant 6 : index
    %c0_38 = arith.constant 0 : index
    %57 = vector.load %arg39[%c6, %c0_38] : memref<16x32xf32, #tpu.memory_space<vmem>>, vector<1x32xf32>
    tpu.vector_store %arg39[%c6, %c0_38], %56 {strides = array<i32>} : memref<16x32xf32, #tpu.memory_space<vmem>>, vector<1x32xf32>,
    %58 = vector.extract_strided_slice %41 {offsets = [3, 0], sizes = [1, 32], strides = [1, 1]} : vector<4x32xf32> to vector<1x32xf32>
    %c7 = arith.constant 7 : index
    %c0_39 = arith.constant 0 : index
    %59 = vector.load %arg39[%c7, %c0_39] : memref<16x32xf32, #tpu.memory_space<vmem>>, vector<1x32xf32>
    tpu.vector_store %arg39[%c7, %c0_39], %58 {strides = array<i32>} : memref<16x32xf32, #tpu.memory_space<vmem>>, vector<1x32xf32>,
    %60 = vector.extract_strided_slice %43 {offsets = [3, 0], sizes = [4, 32], strides = [1, 1]} : vector<7x32xf32> to vector<4x32xf32>
    %c8 = arith.constant 8 : index
    %c0_40 = arith.constant 0 : index
    %61 = vector.load %arg40[%c8, %c0_40] : memref<24x32xf32, #tpu.memory_space<vmem>>, vector<4x32xf32>
    tpu.vector_store %arg40[%c8, %c0_40], %60 {strides = array<i32>} : memref<24x32xf32, #tpu.memory_space<vmem>>, vector<4x32xf32>,
    %62 = vector.extract_strided_slice %30 {offsets = [4, 0], sizes = [4, 32], strides = [1, 1]} : vector<8x32xf32> to vector<4x32xf32>
    %63 = arith.addf %62, %38 : vector<4x32xf32>
    %64 = vector.extract_strided_slice %37 {offsets = [7, 0], sizes = [7, 32], strides = [1, 1]} : vector<14x32xf32> to vector<7x32xf32>
    %65 = arith.addf %64, %39 : vector<7x32xf32>
    %66 = vector.extract_strided_slice %23 {offsets = [1, 0], sizes = [1, 32], strides = [1, 1]} : vector<2x32xf32> to vector<1x32xf32>
    %c8_41 = arith.constant 8 : index
    %c0_42 = arith.constant 0 : index
    %67 = vector.load %arg39[%c8_41, %c0_42] : memref<16x32xf32, #tpu.memory_space<vmem>>, vector<1x32xf32>
    tpu.vector_store %arg39[%c8_41, %c0_42], %66 {strides = array<i32>} : memref<16x32xf32, #tpu.memory_space<vmem>>, vector<1x32xf32>,
    %68 = vector.extract_strided_slice %63 {offsets = [0, 0], sizes = [1, 32], strides = [1, 1]} : vector<4x32xf32> to vector<1x32xf32>
    %c9 = arith.constant 9 : index
    %c0_43 = arith.constant 0 : index
    %69 = vector.load %arg39[%c9, %c0_43] : memref<16x32xf32, #tpu.memory_space<vmem>>, vector<1x32xf32>
    tpu.vector_store %arg39[%c9, %c0_43], %68 {strides = array<i32>} : memref<16x32xf32, #tpu.memory_space<vmem>>, vector<1x32xf32>,
    %70 = vector.extract_strided_slice %65 {offsets = [0, 0], sizes = [1, 32], strides = [1, 1]} : vector<7x32xf32> to vector<1x32xf32>
    %c10 = arith.constant 10 : index
    %c0_44 = arith.constant 0 : index
    %71 = vector.load %arg39[%c10, %c0_44] : memref<16x32xf32, #tpu.memory_space<vmem>>, vector<1x32xf32>
    tpu.vector_store %arg39[%c10, %c0_44], %70 {strides = array<i32>} : memref<16x32xf32, #tpu.memory_space<vmem>>, vector<1x32xf32>,
    %72 = vector.extract_strided_slice %63 {offsets = [1, 0], sizes = [1, 32], strides = [1, 1]} : vector<4x32xf32> to vector<1x32xf32>
    %c11 = arith.constant 11 : index
    %c0_45 = arith.constant 0 : index
    %73 = vector.load %arg39[%c11, %c0_45] : memref<16x32xf32, #tpu.memory_space<vmem>>, vector<1x32xf32>
    tpu.vector_store %arg39[%c11, %c0_45], %72 {strides = array<i32>} : memref<16x32xf32, #tpu.memory_space<vmem>>, vector<1x32xf32>,
    %74 = vector.extract_strided_slice %65 {offsets = [1, 0], sizes = [1, 32], strides = [1, 1]} : vector<7x32xf32> to vector<1x32xf32>
    %c12 = arith.constant 12 : index
    %c0_46 = arith.constant 0 : index
    %75 = vector.load %arg39[%c12, %c0_46] : memref<16x32xf32, #tpu.memory_space<vmem>>, vector<1x32xf32>
    tpu.vector_store %arg39[%c12, %c0_46], %74 {strides = array<i32>} : memref<16x32xf32, #tpu.memory_space<vmem>>, vector<1x32xf32>,
    %76 = vector.extract_strided_slice %63 {offsets = [2, 0], sizes = [1, 32], strides = [1, 1]} : vector<4x32xf32> to vector<1x32xf32>
    %c13 = arith.constant 13 : index
    %c0_47 = arith.constant 0 : index
    %77 = vector.load %arg39[%c13, %c0_47] : memref<16x32xf32, #tpu.memory_space<vmem>>, vector<1x32xf32>
    tpu.vector_store %arg39[%c13, %c0_47], %76 {strides = array<i32>} : memref<16x32xf32, #tpu.memory_space<vmem>>, vector<1x32xf32>,
    %78 = vector.extract_strided_slice %65 {offsets = [2, 0], sizes = [1, 32], strides = [1, 1]} : vector<7x32xf32> to vector<1x32xf32>
    %c14 = arith.constant 14 : index
    %c0_48 = arith.constant 0 : index
    %79 = vector.load %arg39[%c14, %c0_48] : memref<16x32xf32, #tpu.memory_space<vmem>>, vector<1x32xf32>
    tpu.vector_store %arg39[%c14, %c0_48], %78 {strides = array<i32>} : memref<16x32xf32, #tpu.memory_space<vmem>>, vector<1x32xf32>,
    %80 = vector.extract_strided_slice %63 {offsets = [3, 0], sizes = [1, 32], strides = [1, 1]} : vector<4x32xf32> to vector<1x32xf32>
    %c15 = arith.constant 15 : index
    %c0_49 = arith.constant 0 : index
    %81 = vector.load %arg39[%c15, %c0_49] : memref<16x32xf32, #tpu.memory_space<vmem>>, vector<1x32xf32>
    tpu.vector_store %arg39[%c15, %c0_49], %80 {strides = array<i32>} : memref<16x32xf32, #tpu.memory_space<vmem>>, vector<1x32xf32>,
    %82 = vector.extract_strided_slice %65 {offsets = [3, 0], sizes = [4, 32], strides = [1, 1]} : vector<7x32xf32> to vector<4x32xf32>
    %c20 = arith.constant 20 : index
    %c0_50 = arith.constant 0 : index
    %83 = vector.load %arg40[%c20, %c0_50] : memref<24x32xf32, #tpu.memory_space<vmem>>, vector<4x32xf32>
    tpu.vector_store %arg40[%c20, %c0_50], %82 {strides = array<i32>} : memref<24x32xf32, #tpu.memory_space<vmem>>, vector<4x32xf32>,
    %c0_51 = arith.constant 0 : index
    %c0_52 = arith.constant 0 : index
    %84 = vector.load %arg39[%c0_51, %c0_52] : memref<16x32xf32, #tpu.memory_space<vmem>>, vector<16x32xf32>
    %c0_53 = arith.constant 0 : index
    %c0_54 = arith.constant 0 : index
    %85 = vector.load %arg12[%c0_53, %c0_54] : memref<32x64xbf16, #tpu.memory_space<vmem>>, vector<32x64xbf16>
    %86 = arith.truncf %84 : vector<16x32xf32> to vector<16x32xbf16>
    %cst_55 = arith.constant dense<0.000000e+00> : vector<16x64xf32>
    %87 = tpu.matmul %86, %85, %cst_55 {dimension_numbers = #tpu.dot_dimension_numbers<[1], [0], [0], [1], [0, 0, 1, 1], [], []>} : vector<16x32xbf16>, vector<32x64xbf16>, vector<16x64xf32> -> vector<16x64xf32>
    %c0_56 = arith.constant 0 : index
    %c0_57 = arith.constant 0 : index
    %88 = vector.load %arg13[%c0_56, %c0_57] : memref<1x64xf32, #tpu.memory_space<vmem>>, vector<1x64xf32>
    %89 = vector.broadcast %88 : vector<1x64xf32> to vector<16x64xf32>
    %90 = arith.addf %87, %89 : vector<16x64xf32>
    %91 = math.absf %90 : vector<16x64xf32>
    %cst_58 = arith.constant 0.000000e+00 : f32
    %92 = vector.broadcast %cst_58 : f32 to vector<16x64xf32>
    %93 = arith.subf %92, %91 : vector<16x64xf32>
    %94 = math.exp %93 : vector<16x64xf32>
    %cst_59 = arith.constant 1.000000e+00 : f32
    %95 = vector.broadcast %cst_59 : f32 to vector<16x64xf32>
    %96 = arith.addf %95, %94 : vector<16x64xf32>
    %cst_60 = arith.constant 1.000000e+00 : f32
    %97 = vector.broadcast %cst_60 : f32 to vector<16x64xf32>
    %98 = arith.divf %97, %96 : vector<16x64xf32>
    %cst_61 = arith.constant 0.000000e+00 : f32
    %99 = vector.broadcast %cst_61 : f32 to vector<16x64xf32>
    %100 = arith.cmpf oge, %90, %99 : vector<16x64xf32>
    %101 = arith.mulf %94, %98 : vector<16x64xf32>
    %102 = arith.select %100, %98, %101 : vector<16x64xi1>, vector<16x64xf32>
    %103 = arith.mulf %90, %102 : vector<16x64xf32>
    %c0_62 = arith.constant 0 : index
    %c0_63 = arith.constant 0 : index
    %104 = vector.load %arg14[%c0_62, %c0_63] : memref<32x64xbf16, #tpu.memory_space<vmem>>, vector<32x64xbf16>
    %105 = arith.truncf %84 : vector<16x32xf32> to vector<16x32xbf16>
    %cst_64 = arith.constant dense<0.000000e+00> : vector<16x64xf32>
    %106 = tpu.matmul %105, %104, %cst_64 {dimension_numbers = #tpu.dot_dimension_numbers<[1], [0], [0], [1], [0, 0, 1, 1], [], []>} : vector<16x32xbf16>, vector<32x64xbf16>, vector<16x64xf32> -> vector<16x64xf32>
    %c0_65 = arith.constant 0 : index
    %c0_66 = arith.constant 0 : index
    %107 = vector.load %arg15[%c0_65, %c0_66] : memref<1x64xf32, #tpu.memory_space<vmem>>, vector<1x64xf32>
    %108 = vector.broadcast %107 : vector<1x64xf32> to vector<16x64xf32>
    %109 = arith.addf %106, %108 : vector<16x64xf32>
    %c0_67 = arith.constant 0 : index
    %c0_68 = arith.constant 0 : index
    %110 = vector.load %arg16[%c0_67, %c0_68] : memref<64x64xbf16, #tpu.memory_space<vmem>>, vector<64x64xbf16>
    %111 = arith.truncf %103 : vector<16x64xf32> to vector<16x64xbf16>
    %cst_69 = arith.constant dense<0.000000e+00> : vector<16x64xf32>
    %112 = tpu.matmul %111, %110, %cst_69 {dimension_numbers = #tpu.dot_dimension_numbers<[1], [0], [0], [1], [0, 0, 1, 1], [], []>} : vector<16x64xbf16>, vector<64x64xbf16>, vector<16x64xf32> -> vector<16x64xf32>
    %c0_70 = arith.constant 0 : index
    %c0_71 = arith.constant 0 : index
    %113 = vector.load %arg17[%c0_70, %c0_71] : memref<1x64xf32, #tpu.memory_space<vmem>>, vector<1x64xf32>
    %114 = vector.broadcast %113 : vector<1x64xf32> to vector<16x64xf32>
    %115 = arith.addf %112, %114 : vector<16x64xf32>
    %cst_72 = arith.constant 2.000000e+01 : f32
    %116 = vector.broadcast %cst_72 : f32 to vector<16x64xf32>
    %117 = arith.cmpf ogt, %115, %116 : vector<16x64xf32>
    %cst_73 = arith.constant 2.000000e+01 : f32
    %118 = vector.broadcast %cst_73 : f32 to vector<16x64xf32>
    %119 = arith.minimumf %115, %118 : vector<16x64xf32>
    %120 = math.exp %119 : vector<16x64xf32>
    %cst_74 = arith.constant 1.000000e+00 : f32
    %121 = vector.broadcast %cst_74 : f32 to vector<16x64xf32>
    %122 = arith.addf %121, %120 : vector<16x64xf32>
    %123 = math.log %122 : vector<16x64xf32>
    %124 = arith.select %117, %115, %123 : vector<16x64xi1>, vector<16x64xf32>
    %c0_75 = arith.constant 0 : index
    %c0_76 = arith.constant 0 : index
    %125 = vector.load %arg18[%c0_75, %c0_76] : memref<16x64xbf16, #tpu.memory_space<vmem>>, vector<16x64xbf16>
    %126 = arith.truncf %103 : vector<16x64xf32> to vector<16x64xbf16>
    %cst_77 = arith.constant dense<0.000000e+00> : vector<16x16xf32>
    %127 = tpu.matmul %125, %126, %cst_77 {dimension_numbers = #tpu.dot_dimension_numbers<[1], [1], [0], [0], [0, 0, 1, 0], [], []>} : vector<16x64xbf16>, vector<16x64xbf16>, vector<16x16xf32> -> vector<16x16xf32>
    %128 = vector.extract_strided_slice %127 {offsets = [0, 0], sizes = [8, 16], strides = [1, 1]} : vector<16x16xf32> to vector<8x16xf32>
    %129 = vector.extract_strided_slice %127 {offsets = [8, 0], sizes = [8, 16], strides = [1, 1]} : vector<16x16xf32> to vector<8x16xf32>
    %130 = vector.extract_strided_slice %124 {offsets = [0, 0], sizes = [8, 64], strides = [1, 1]} : vector<16x64xf32> to vector<8x64xf32>
    %131 = vector.extract_strided_slice %124 {offsets = [8, 0], sizes = [8, 64], strides = [1, 1]} : vector<16x64xf32> to vector<8x64xf32>
    %132 = tpu.concatenate %130, %131 in 1 : vector<8x64xf32>, vector<8x64xf32> -> vector<8x128xf32>
    %133 = vector.extract_strided_slice %103 {offsets = [0, 0], sizes = [8, 64], strides = [1, 1]} : vector<16x64xf32> to vector<8x64xf32>
    %134 = vector.extract_strided_slice %103 {offsets = [8, 0], sizes = [8, 64], strides = [1, 1]} : vector<16x64xf32> to vector<8x64xf32>
    %135 = tpu.concatenate %133, %134 in 1 : vector<8x64xf32>, vector<8x64xf32> -> vector<8x128xf32>
    %136 = arith.mulf %132, %135 : vector<8x128xf32>
    %c0_78 = arith.constant 0 : index
    %c0_79 = arith.constant 0 : index
    %137 = vector.load %arg19[%c0_78, %c0_79] : memref<8x128xf32, #tpu.memory_space<vmem>>, vector<8x128xf32>
    %138 = vector.extract_strided_slice %132 {offsets = [0, 0], sizes = [1, 128], strides = [1, 1]} : vector<8x128xf32> to vector<1x128xf32>
    %139 = vector.broadcast %138 : vector<1x128xf32> to vector<8x128xf32>
    %140 = arith.mulf %137, %139 : vector<8x128xf32>
    %141 = math.exp %140 : vector<8x128xf32>
    %142 = vector.extract_strided_slice %136 {offsets = [0, 0], sizes = [1, 64], strides = [1, 1]} : vector<8x128xf32> to vector<1x64xf32>
    %143 = vector.extract_strided_slice %128 {offsets = [0, 0], sizes = [8, 1], strides = [1, 1]} : vector<8x16xf32> to vector<8x1xf32>
    %144 = vector.broadcast %142 : vector<1x64xf32> to vector<8x64xf32>
    %145 = vector.broadcast %143 : vector<8x1xf32> to vector<8x64xf32>
    %146 = arith.mulf %144, %145 : vector<8x64xf32>
    %147 = vector.extract_strided_slice %136 {offsets = [0, 64], sizes = [1, 64], strides = [1, 1]} : vector<8x128xf32> to vector<1x64xf32>
    %148 = vector.extract_strided_slice %128 {offsets = [0, 8], sizes = [8, 1], strides = [1, 1]} : vector<8x16xf32> to vector<8x1xf32>
    %149 = vector.broadcast %147 : vector<1x64xf32> to vector<8x64xf32>
    %150 = vector.broadcast %148 : vector<8x1xf32> to vector<8x64xf32>
    %151 = arith.mulf %149, %150 : vector<8x64xf32>
    %152 = tpu.concatenate %146, %151 in 1 : vector<8x64xf32>, vector<8x64xf32> -> vector<8x128xf32>
    %153 = vector.extract_strided_slice %129 {offsets = [0, 0], sizes = [8, 1], strides = [1, 1]} : vector<8x16xf32> to vector<8x1xf32>
    %154 = vector.shape_cast %153 : vector<8x1xf32> to vector<8x1xf32>
    %155 = vector.broadcast %154 : vector<8x1xf32> to vector<8x64xf32>
    %156 = vector.extract_strided_slice %129 {offsets = [0, 8], sizes = [8, 1], strides = [1, 1]} : vector<8x16xf32> to vector<8x1xf32>
    %157 = vector.shape_cast %156 : vector<8x1xf32> to vector<8x1xf32>
    %158 = vector.broadcast %157 : vector<8x1xf32> to vector<8x64xf32>
    %159 = tpu.concatenate %155, %158 in 1 : vector<8x64xf32>, vector<8x64xf32> -> vector<8x128xf32>
    %160 = vector.extract_strided_slice %132 {offsets = [1, 0], sizes = [1, 128], strides = [1, 1]} : vector<8x128xf32> to vector<1x128xf32>
    %161 = vector.broadcast %160 : vector<1x128xf32> to vector<8x128xf32>
    %162 = arith.mulf %137, %161 : vector<8x128xf32>
    %163 = math.exp %162 : vector<8x128xf32>
    %164 = vector.extract_strided_slice %136 {offsets = [1, 0], sizes = [1, 64], strides = [1, 1]} : vector<8x128xf32> to vector<1x64xf32>
    %165 = vector.extract_strided_slice %128 {offsets = [0, 1], sizes = [8, 1], strides = [1, 1]} : vector<8x16xf32> to vector<8x1xf32>
    %166 = vector.broadcast %164 : vector<1x64xf32> to vector<8x64xf32>
    %167 = vector.broadcast %165 : vector<8x1xf32> to vector<8x64xf32>
    %168 = arith.mulf %166, %167 : vector<8x64xf32>
    %169 = vector.extract_strided_slice %136 {offsets = [1, 64], sizes = [1, 64], strides = [1, 1]} : vector<8x128xf32> to vector<1x64xf32>
    %170 = vector.extract_strided_slice %128 {offsets = [0, 9], sizes = [8, 1], strides = [1, 1]} : vector<8x16xf32> to vector<8x1xf32>
    %171 = vector.broadcast %169 : vector<1x64xf32> to vector<8x64xf32>
    %172 = vector.broadcast %170 : vector<8x1xf32> to vector<8x64xf32>
    %173 = arith.mulf %171, %172 : vector<8x64xf32>
    %174 = tpu.concatenate %168, %173 in 1 : vector<8x64xf32>, vector<8x64xf32> -> vector<8x128xf32>
    %175 = vector.extract_strided_slice %129 {offsets = [0, 1], sizes = [8, 1], strides = [1, 1]} : vector<8x16xf32> to vector<8x1xf32>
    %176 = vector.shape_cast %175 : vector<8x1xf32> to vector<8x1xf32>
    %177 = vector.broadcast %176 : vector<8x1xf32> to vector<8x64xf32>
    %178 = vector.extract_strided_slice %129 {offsets = [0, 9], sizes = [8, 1], strides = [1, 1]} : vector<8x16xf32> to vector<8x1xf32>
    %179 = vector.shape_cast %178 : vector<8x1xf32> to vector<8x1xf32>
    %180 = vector.broadcast %179 : vector<8x1xf32> to vector<8x64xf32>
    %181 = tpu.concatenate %177, %180 in 1 : vector<8x64xf32>, vector<8x64xf32> -> vector<8x128xf32>
    %182 = vector.extract_strided_slice %132 {offsets = [2, 0], sizes = [1, 128], strides = [1, 1]} : vector<8x128xf32> to vector<1x128xf32>
    %183 = vector.broadcast %182 : vector<1x128xf32> to vector<8x128xf32>
    %184 = arith.mulf %137, %183 : vector<8x128xf32>
    %185 = math.exp %184 : vector<8x128xf32>
    %186 = vector.extract_strided_slice %136 {offsets = [2, 0], sizes = [1, 64], strides = [1, 1]} : vector<8x128xf32> to vector<1x64xf32>
    %187 = vector.extract_strided_slice %128 {offsets = [0, 2], sizes = [8, 1], strides = [1, 1]} : vector<8x16xf32> to vector<8x1xf32>
    %188 = vector.broadcast %186 : vector<1x64xf32> to vector<8x64xf32>
    %189 = vector.broadcast %187 : vector<8x1xf32> to vector<8x64xf32>
    %190 = arith.mulf %188, %189 : vector<8x64xf32>
    %191 = vector.extract_strided_slice %136 {offsets = [2, 64], sizes = [1, 64], strides = [1, 1]} : vector<8x128xf32> to vector<1x64xf32>
    %192 = vector.extract_strided_slice %128 {offsets = [0, 10], sizes = [8, 1], strides = [1, 1]} : vector<8x16xf32> to vector<8x1xf32>
    %193 = vector.broadcast %191 : vector<1x64xf32> to vector<8x64xf32>
    %194 = vector.broadcast %192 : vector<8x1xf32> to vector<8x64xf32>
    %195 = arith.mulf %193, %194 : vector<8x64xf32>
    %196 = tpu.concatenate %190, %195 in 1 : vector<8x64xf32>, vector<8x64xf32> -> vector<8x128xf32>
    %197 = vector.extract_strided_slice %129 {offsets = [0, 2], sizes = [8, 1], strides = [1, 1]} : vector<8x16xf32> to vector<8x1xf32>
    %198 = vector.shape_cast %197 : vector<8x1xf32> to vector<8x1xf32>
    %199 = vector.broadcast %198 : vector<8x1xf32> to vector<8x64xf32>
    %200 = vector.extract_strided_slice %129 {offsets = [0, 10], sizes = [8, 1], strides = [1, 1]} : vector<8x16xf32> to vector<8x1xf32>
    %201 = vector.shape_cast %200 : vector<8x1xf32> to vector<8x1xf32>
    %202 = vector.broadcast %201 : vector<8x1xf32> to vector<8x64xf32>
    %203 = tpu.concatenate %199, %202 in 1 : vector<8x64xf32>, vector<8x64xf32> -> vector<8x128xf32>
    %204 = vector.extract_strided_slice %132 {offsets = [3, 0], sizes = [1, 128], strides = [1, 1]} : vector<8x128xf32> to vector<1x128xf32>
    %205 = vector.broadcast %204 : vector<1x128xf32> to vector<8x128xf32>
    %206 = arith.mulf %137, %205 : vector<8x128xf32>
    %207 = math.exp %206 : vector<8x128xf32>
    %208 = vector.extract_strided_slice %136 {offsets = [3, 0], sizes = [1, 64], strides = [1, 1]} : vector<8x128xf32> to vector<1x64xf32>
    %209 = vector.extract_strided_slice %128 {offsets = [0, 3], sizes = [8, 1], strides = [1, 1]} : vector<8x16xf32> to vector<8x1xf32>
    %210 = vector.broadcast %208 : vector<1x64xf32> to vector<8x64xf32>
    %211 = vector.broadcast %209 : vector<8x1xf32> to vector<8x64xf32>
    %212 = arith.mulf %210, %211 : vector<8x64xf32>
    %213 = vector.extract_strided_slice %136 {offsets = [3, 64], sizes = [1, 64], strides = [1, 1]} : vector<8x128xf32> to vector<1x64xf32>
    %214 = vector.extract_strided_slice %128 {offsets = [0, 11], sizes = [8, 1], strides = [1, 1]} : vector<8x16xf32> to vector<8x1xf32>
    %215 = vector.broadcast %213 : vector<1x64xf32> to vector<8x64xf32>
    %216 = vector.broadcast %214 : vector<8x1xf32> to vector<8x64xf32>
    %217 = arith.mulf %215, %216 : vector<8x64xf32>
    %218 = tpu.concatenate %212, %217 in 1 : vector<8x64xf32>, vector<8x64xf32> -> vector<8x128xf32>
    %219 = vector.extract_strided_slice %129 {offsets = [0, 3], sizes = [8, 1], strides = [1, 1]} : vector<8x16xf32> to vector<8x1xf32>
    %220 = vector.shape_cast %219 : vector<8x1xf32> to vector<8x1xf32>
    %221 = vector.broadcast %220 : vector<8x1xf32> to vector<8x64xf32>
    %222 = vector.extract_strided_slice %129 {offsets = [0, 11], sizes = [8, 1], strides = [1, 1]} : vector<8x16xf32> to vector<8x1xf32>
    %223 = vector.shape_cast %222 : vector<8x1xf32> to vector<8x1xf32>
    %224 = vector.broadcast %223 : vector<8x1xf32> to vector<8x64xf32>
    %225 = tpu.concatenate %221, %224 in 1 : vector<8x64xf32>, vector<8x64xf32> -> vector<8x128xf32>
    %226 = vector.extract_strided_slice %132 {offsets = [4, 0], sizes = [1, 128], strides = [1, 1]} : vector<8x128xf32> to vector<1x128xf32>
    %227 = vector.broadcast %226 : vector<1x128xf32> to vector<8x128xf32>
    %228 = arith.mulf %137, %227 : vector<8x128xf32>
    %229 = math.exp %228 : vector<8x128xf32>
    %230 = vector.extract_strided_slice %136 {offsets = [4, 0], sizes = [1, 64], strides = [1, 1]} : vector<8x128xf32> to vector<1x64xf32>
    %231 = vector.extract_strided_slice %128 {offsets = [0, 4], sizes = [8, 1], strides = [1, 1]} : vector<8x16xf32> to vector<8x1xf32>
    %232 = vector.broadcast %230 : vector<1x64xf32> to vector<8x64xf32>
    %233 = vector.broadcast %231 : vector<8x1xf32> to vector<8x64xf32>
    %234 = arith.mulf %232, %233 : vector<8x64xf32>
    %235 = vector.extract_strided_slice %136 {offsets = [4, 64], sizes = [1, 64], strides = [1, 1]} : vector<8x128xf32> to vector<1x64xf32>
    %236 = vector.extract_strided_slice %128 {offsets = [0, 12], sizes = [8, 1], strides = [1, 1]} : vector<8x16xf32> to vector<8x1xf32>
    %237 = vector.broadcast %235 : vector<1x64xf32> to vector<8x64xf32>
    %238 = vector.broadcast %236 : vector<8x1xf32> to vector<8x64xf32>
    %239 = arith.mulf %237, %238 : vector<8x64xf32>
    %240 = tpu.concatenate %234, %239 in 1 : vector<8x64xf32>, vector<8x64xf32> -> vector<8x128xf32>
    %241 = vector.extract_strided_slice %129 {offsets = [0, 4], sizes = [8, 1], strides = [1, 1]} : vector<8x16xf32> to vector<8x1xf32>
    %242 = vector.shape_cast %241 : vector<8x1xf32> to vector<8x1xf32>
    %243 = vector.broadcast %242 : vector<8x1xf32> to vector<8x64xf32>
    %244 = vector.extract_strided_slice %129 {offsets = [0, 12], sizes = [8, 1], strides = [1, 1]} : vector<8x16xf32> to vector<8x1xf32>
    %245 = vector.shape_cast %244 : vector<8x1xf32> to vector<8x1xf32>
    %246 = vector.broadcast %245 : vector<8x1xf32> to vector<8x64xf32>
    %247 = tpu.concatenate %243, %246 in 1 : vector<8x64xf32>, vector<8x64xf32> -> vector<8x128xf32>
    %248 = vector.extract_strided_slice %132 {offsets = [5, 0], sizes = [1, 128], strides = [1, 1]} : vector<8x128xf32> to vector<1x128xf32>
    %249 = vector.broadcast %248 : vector<1x128xf32> to vector<8x128xf32>
    %250 = arith.mulf %137, %249 : vector<8x128xf32>
    %251 = math.exp %250 : vector<8x128xf32>
    %252 = vector.extract_strided_slice %136 {offsets = [5, 0], sizes = [1, 64], strides = [1, 1]} : vector<8x128xf32> to vector<1x64xf32>
    %253 = vector.extract_strided_slice %128 {offsets = [0, 5], sizes = [8, 1], strides = [1, 1]} : vector<8x16xf32> to vector<8x1xf32>
    %254 = vector.broadcast %252 : vector<1x64xf32> to vector<8x64xf32>
    %255 = vector.broadcast %253 : vector<8x1xf32> to vector<8x64xf32>
    %256 = arith.mulf %254, %255 : vector<8x64xf32>
    %257 = vector.extract_strided_slice %136 {offsets = [5, 64], sizes = [1, 64], strides = [1, 1]} : vector<8x128xf32> to vector<1x64xf32>
    %258 = vector.extract_strided_slice %128 {offsets = [0, 13], sizes = [8, 1], strides = [1, 1]} : vector<8x16xf32> to vector<8x1xf32>
    %259 = vector.broadcast %257 : vector<1x64xf32> to vector<8x64xf32>
    %260 = vector.broadcast %258 : vector<8x1xf32> to vector<8x64xf32>
    %261 = arith.mulf %259, %260 : vector<8x64xf32>
    %262 = tpu.concatenate %256, %261 in 1 : vector<8x64xf32>, vector<8x64xf32> -> vector<8x128xf32>
    %263 = vector.extract_strided_slice %129 {offsets = [0, 5], sizes = [8, 1], strides = [1, 1]} : vector<8x16xf32> to vector<8x1xf32>
    %264 = vector.shape_cast %263 : vector<8x1xf32> to vector<8x1xf32>
    %265 = vector.broadcast %264 : vector<8x1xf32> to vector<8x64xf32>
    %266 = vector.extract_strided_slice %129 {offsets = [0, 13], sizes = [8, 1], strides = [1, 1]} : vector<8x16xf32> to vector<8x1xf32>
    %267 = vector.shape_cast %266 : vector<8x1xf32> to vector<8x1xf32>
    %268 = vector.broadcast %267 : vector<8x1xf32> to vector<8x64xf32>
    %269 = tpu.concatenate %265, %268 in 1 : vector<8x64xf32>, vector<8x64xf32> -> vector<8x128xf32>
    %270 = vector.extract_strided_slice %132 {offsets = [6, 0], sizes = [1, 128], strides = [1, 1]} : vector<8x128xf32> to vector<1x128xf32>
    %271 = vector.broadcast %270 : vector<1x128xf32> to vector<8x128xf32>
    %272 = arith.mulf %137, %271 : vector<8x128xf32>
    %273 = math.exp %272 : vector<8x128xf32>
    %274 = vector.extract_strided_slice %136 {offsets = [6, 0], sizes = [1, 64], strides = [1, 1]} : vector<8x128xf32> to vector<1x64xf32>
    %275 = vector.extract_strided_slice %128 {offsets = [0, 6], sizes = [8, 1], strides = [1, 1]} : vector<8x16xf32> to vector<8x1xf32>
    %276 = vector.broadcast %274 : vector<1x64xf32> to vector<8x64xf32>
    %277 = vector.broadcast %275 : vector<8x1xf32> to vector<8x64xf32>
    %278 = arith.mulf %276, %277 : vector<8x64xf32>
    %279 = vector.extract_strided_slice %136 {offsets = [6, 64], sizes = [1, 64], strides = [1, 1]} : vector<8x128xf32> to vector<1x64xf32>
    %280 = vector.extract_strided_slice %128 {offsets = [0, 14], sizes = [8, 1], strides = [1, 1]} : vector<8x16xf32> to vector<8x1xf32>
    %281 = vector.broadcast %279 : vector<1x64xf32> to vector<8x64xf32>
    %282 = vector.broadcast %280 : vector<8x1xf32> to vector<8x64xf32>
    %283 = arith.mulf %281, %282 : vector<8x64xf32>
    %284 = tpu.concatenate %278, %283 in 1 : vector<8x64xf32>, vector<8x64xf32> -> vector<8x128xf32>
    %285 = vector.extract_strided_slice %129 {offsets = [0, 6], sizes = [8, 1], strides = [1, 1]} : vector<8x16xf32> to vector<8x1xf32>
    %286 = vector.shape_cast %285 : vector<8x1xf32> to vector<8x1xf32>
    %287 = vector.broadcast %286 : vector<8x1xf32> to vector<8x64xf32>
    %288 = vector.extract_strided_slice %129 {offsets = [0, 14], sizes = [8, 1], strides = [1, 1]} : vector<8x16xf32> to vector<8x1xf32>
    %289 = vector.shape_cast %288 : vector<8x1xf32> to vector<8x1xf32>
    %290 = vector.broadcast %289 : vector<8x1xf32> to vector<8x64xf32>
    %291 = tpu.concatenate %287, %290 in 1 : vector<8x64xf32>, vector<8x64xf32> -> vector<8x128xf32>
    %292 = vector.extract_strided_slice %132 {offsets = [7, 0], sizes = [1, 128], strides = [1, 1]} : vector<8x128xf32> to vector<1x128xf32>
    %293 = vector.broadcast %292 : vector<1x128xf32> to vector<8x128xf32>
    %294 = arith.mulf %137, %293 : vector<8x128xf32>
    %295 = math.exp %294 : vector<8x128xf32>
    %296 = vector.extract_strided_slice %136 {offsets = [7, 0], sizes = [1, 64], strides = [1, 1]} : vector<8x128xf32> to vector<1x64xf32>
    %297 = vector.extract_strided_slice %128 {offsets = [0, 7], sizes = [8, 1], strides = [1, 1]} : vector<8x16xf32> to vector<8x1xf32>
    %298 = vector.broadcast %296 : vector<1x64xf32> to vector<8x64xf32>
    %299 = vector.broadcast %297 : vector<8x1xf32> to vector<8x64xf32>
    %300 = arith.mulf %298, %299 : vector<8x64xf32>
    %301 = vector.extract_strided_slice %136 {offsets = [7, 64], sizes = [1, 64], strides = [1, 1]} : vector<8x128xf32> to vector<1x64xf32>
    %302 = vector.extract_strided_slice %128 {offsets = [0, 15], sizes = [8, 1], strides = [1, 1]} : vector<8x16xf32> to vector<8x1xf32>
    %303 = vector.broadcast %301 : vector<1x64xf32> to vector<8x64xf32>
    %304 = vector.broadcast %302 : vector<8x1xf32> to vector<8x64xf32>
    %305 = arith.mulf %303, %304 : vector<8x64xf32>
    %306 = tpu.concatenate %300, %305 in 1 : vector<8x64xf32>, vector<8x64xf32> -> vector<8x128xf32>
    %307 = vector.extract_strided_slice %129 {offsets = [0, 7], sizes = [8, 1], strides = [1, 1]} : vector<8x16xf32> to vector<8x1xf32>
    %308 = vector.shape_cast %307 : vector<8x1xf32> to vector<8x1xf32>
    %309 = vector.broadcast %308 : vector<8x1xf32> to vector<8x64xf32>
    %310 = vector.extract_strided_slice %129 {offsets = [0, 15], sizes = [8, 1], strides = [1, 1]} : vector<8x16xf32> to vector<8x1xf32>
    %311 = vector.shape_cast %310 : vector<8x1xf32> to vector<8x1xf32>
    %312 = vector.broadcast %311 : vector<8x1xf32> to vector<8x64xf32>
    %313 = tpu.concatenate %309, %312 in 1 : vector<8x64xf32>, vector<8x64xf32> -> vector<8x128xf32>
    %cst_80 = arith.constant 0.000000e+00 : f32
    %314 = vector.broadcast %cst_80 : f32 to vector<8x128xf32>
    %315 = arith.mulf %141, %314 : vector<8x128xf32>
    %316 = arith.addf %315, %152 : vector<8x128xf32>
    %317 = arith.mulf %316, %159 : vector<8x128xf32>
    %cst_81 = arith.constant dense<0.000000e+00> : vector<128xf32>
    %318 = vector.multi_reduction <add>, %317, %cst_81 [0] : vector<8x128xf32> to vector<128xf32>
    %319 = vector.shape_cast %318 : vector<128xf32> to vector<1x128xf32>
    %c0_82 = arith.constant 0 : index
    %c0_83 = arith.constant 0 : index
    %320 = vector.load %arg41[%c0_82, %c0_83] : memref<8x128xf32, #tpu.memory_space<vmem>>, vector<1x128xf32>
    tpu.vector_store %arg41[%c0_82, %c0_83], %319 {strides = array<i32>} : memref<8x128xf32, #tpu.memory_space<vmem>>, vector<1x128xf32>,
    %321 = arith.mulf %163, %316 : vector<8x128xf32>
    %322 = arith.addf %321, %174 : vector<8x128xf32>
    %323 = arith.mulf %322, %181 : vector<8x128xf32>
    %cst_84 = arith.constant dense<0.000000e+00> : vector<128xf32>
    %324 = vector.multi_reduction <add>, %323, %cst_84 [0] : vector<8x128xf32> to vector<128xf32>
    %325 = vector.shape_cast %324 : vector<128xf32> to vector<1x128xf32>
    %c1_85 = arith.constant 1 : index
    %c0_86 = arith.constant 0 : index
    %326 = vector.load %arg41[%c1_85, %c0_86] : memref<8x128xf32, #tpu.memory_space<vmem>>, vector<1x128xf32>
    tpu.vector_store %arg41[%c1_85, %c0_86], %325 {strides = array<i32>} : memref<8x128xf32, #tpu.memory_space<vmem>>, vector<1x128xf32>,
    %327 = arith.mulf %185, %322 : vector<8x128xf32>
    %328 = arith.addf %327, %196 : vector<8x128xf32>
    %329 = arith.mulf %328, %203 : vector<8x128xf32>
    %cst_87 = arith.constant dense<0.000000e+00> : vector<128xf32>
    %330 = vector.multi_reduction <add>, %329, %cst_87 [0] : vector<8x128xf32> to vector<128xf32>
    %331 = vector.shape_cast %330 : vector<128xf32> to vector<1x128xf32>
    %c2_88 = arith.constant 2 : index
    %c0_89 = arith.constant 0 : index
    %332 = vector.load %arg41[%c2_88, %c0_89] : memref<8x128xf32, #tpu.memory_space<vmem>>, vector<1x128xf32>
    tpu.vector_store %arg41[%c2_88, %c0_89], %331 {strides = array<i32>} : memref<8x128xf32, #tpu.memory_space<vmem>>, vector<1x128xf32>,
    %333 = arith.mulf %207, %328 : vector<8x128xf32>
    %334 = arith.addf %333, %218 : vector<8x128xf32>
    %335 = arith.mulf %334, %225 : vector<8x128xf32>
    %cst_90 = arith.constant dense<0.000000e+00> : vector<128xf32>
    %336 = vector.multi_reduction <add>, %335, %cst_90 [0] : vector<8x128xf32> to vector<128xf32>
    %337 = vector.shape_cast %336 : vector<128xf32> to vector<1x128xf32>
    %c3_91 = arith.constant 3 : index
    %c0_92 = arith.constant 0 : index
    %338 = vector.load %arg41[%c3_91, %c0_92] : memref<8x128xf32, #tpu.memory_space<vmem>>, vector<1x128xf32>
    tpu.vector_store %arg41[%c3_91, %c0_92], %337 {strides = array<i32>} : memref<8x128xf32, #tpu.memory_space<vmem>>, vector<1x128xf32>,
    %339 = arith.mulf %229, %334 : vector<8x128xf32>
    %340 = arith.addf %339, %240 : vector<8x128xf32>
    %341 = arith.mulf %340, %247 : vector<8x128xf32>
    %cst_93 = arith.constant dense<0.000000e+00> : vector<128xf32>
    %342 = vector.multi_reduction <add>, %341, %cst_93 [0] : vector<8x128xf32> to vector<128xf32>
    %343 = vector.shape_cast %342 : vector<128xf32> to vector<1x128xf32>
    %c4_94 = arith.constant 4 : index
    %c0_95 = arith.constant 0 : index
    %344 = vector.load %arg41[%c4_94, %c0_95] : memref<8x128xf32, #tpu.memory_space<vmem>>, vector<1x128xf32>
    tpu.vector_store %arg41[%c4_94, %c0_95], %343 {strides = array<i32>} : memref<8x128xf32, #tpu.memory_space<vmem>>, vector<1x128xf32>,
    %345 = arith.mulf %251, %340 : vector<8x128xf32>
    %346 = arith.addf %345, %262 : vector<8x128xf32>
    %347 = arith.mulf %346, %269 : vector<8x128xf32>
    %cst_96 = arith.constant dense<0.000000e+00> : vector<128xf32>
    %348 = vector.multi_reduction <add>, %347, %cst_96 [0] : vector<8x128xf32> to vector<128xf32>
    %349 = vector.shape_cast %348 : vector<128xf32> to vector<1x128xf32>
    %c5_97 = arith.constant 5 : index
    %c0_98 = arith.constant 0 : index
    %350 = vector.load %arg41[%c5_97, %c0_98] : memref<8x128xf32, #tpu.memory_space<vmem>>, vector<1x128xf32>
    tpu.vector_store %arg41[%c5_97, %c0_98], %349 {strides = array<i32>} : memref<8x128xf32, #tpu.memory_space<vmem>>, vector<1x128xf32>,
    %351 = arith.mulf %273, %346 : vector<8x128xf32>
    %352 = arith.addf %351, %284 : vector<8x128xf32>
    %353 = arith.mulf %352, %291 : vector<8x128xf32>
    %cst_99 = arith.constant dense<0.000000e+00> : vector<128xf32>
    %354 = vector.multi_reduction <add>, %353, %cst_99 [0] : vector<8x128xf32> to vector<128xf32>
    %355 = vector.shape_cast %354 : vector<128xf32> to vector<1x128xf32>
    %c6_100 = arith.constant 6 : index
    %c0_101 = arith.constant 0 : index
    %356 = vector.load %arg41[%c6_100, %c0_101] : memref<8x128xf32, #tpu.memory_space<vmem>>, vector<1x128xf32>
    tpu.vector_store %arg41[%c6_100, %c0_101], %355 {strides = array<i32>} : memref<8x128xf32, #tpu.memory_space<vmem>>, vector<1x128xf32>,
    %357 = arith.mulf %295, %352 : vector<8x128xf32>
    %358 = arith.addf %357, %306 : vector<8x128xf32>
    %359 = arith.mulf %358, %313 : vector<8x128xf32>
    %cst_102 = arith.constant dense<0.000000e+00> : vector<128xf32>
    %360 = vector.multi_reduction <add>, %359, %cst_102 [0] : vector<8x128xf32> to vector<128xf32>
    %361 = vector.shape_cast %360 : vector<128xf32> to vector<1x128xf32>
    %c7_103 = arith.constant 7 : index
    %c0_104 = arith.constant 0 : index
    %362 = vector.load %arg41[%c7_103, %c0_104] : memref<8x128xf32, #tpu.memory_space<vmem>>, vector<1x128xf32>
    tpu.vector_store %arg41[%c7_103, %c0_104], %361 {strides = array<i32>} : memref<8x128xf32, #tpu.memory_space<vmem>>, vector<1x128xf32>,
    %c0_105 = arith.constant 0 : index
    %c0_106 = arith.constant 0 : index
    %363 = vector.load %arg20[%c0_105, %c0_106] : memref<1x64xf32, #tpu.memory_space<vmem>>, vector<1x64xf32>
    %c0_107 = arith.constant 0 : index
    %c0_108 = arith.constant 0 : index
    %364 = vector.load %arg21[%c0_107, %c0_108] : memref<64x32xbf16, #tpu.memory_space<vmem>>, vector<64x32xbf16>
    %c0_109 = arith.constant 0 : index
    %c0_110 = arith.constant 0 : index
    %365 = vector.load %arg22[%c0_109, %c0_110] : memref<1x32xf32, #tpu.memory_space<vmem>>, vector<1x32xf32>
    %c0_111 = arith.constant 0 : index
    %c0_112 = arith.constant 0 : index
    %366 = vector.load %arg41[%c0_111, %c0_112] : memref<8x128xf32, #tpu.memory_space<vmem>>, vector<8x64xf32>
    %367 = vector.extract_strided_slice %103 {offsets = [0, 0], sizes = [8, 64], strides = [1, 1]} : vector<16x64xf32> to vector<8x64xf32>
    %368 = vector.broadcast %363 : vector<1x64xf32> to vector<8x64xf32>
    %369 = arith.mulf %367, %368 : vector<8x64xf32>
    %370 = arith.addf %366, %369 : vector<8x64xf32>
    %371 = vector.extract_strided_slice %109 {offsets = [0, 0], sizes = [8, 64], strides = [1, 1]} : vector<16x64xf32> to vector<8x64xf32>
    %372 = math.absf %371 : vector<8x64xf32>
    %cst_113 = arith.constant 0.000000e+00 : f32
    %373 = vector.broadcast %cst_113 : f32 to vector<8x64xf32>
    %374 = arith.subf %373, %372 : vector<8x64xf32>
    %375 = math.exp %374 : vector<8x64xf32>
    %cst_114 = arith.constant 1.000000e+00 : f32
    %376 = vector.broadcast %cst_114 : f32 to vector<8x64xf32>
    %377 = arith.addf %376, %375 : vector<8x64xf32>
    %cst_115 = arith.constant 1.000000e+00 : f32
    %378 = vector.broadcast %cst_115 : f32 to vector<8x64xf32>
    %379 = arith.divf %378, %377 : vector<8x64xf32>
    %cst_116 = arith.constant 0.000000e+00 : f32
    %380 = vector.broadcast %cst_116 : f32 to vector<8x64xf32>
    %381 = arith.cmpf oge, %371, %380 : vector<8x64xf32>
    %382 = arith.mulf %375, %379 : vector<8x64xf32>
    %383 = arith.select %381, %379, %382 : vector<8x64xi1>, vector<8x64xf32>
    %384 = arith.mulf %371, %383 : vector<8x64xf32>
    %385 = arith.mulf %370, %384 : vector<8x64xf32>
    %386 = arith.truncf %385 : vector<8x64xf32> to vector<8x64xbf16>
    %cst_117 = arith.constant dense<0.000000e+00> : vector<8x32xf32>
    %387 = tpu.matmul %386, %364, %cst_117 {dimension_numbers = #tpu.dot_dimension_numbers<[1], [0], [0], [1], [0, 0, 1, 1], [], []>} : vector<8x64xbf16>, vector<64x32xbf16>, vector<8x32xf32> -> vector<8x32xf32>
    %388 = vector.broadcast %365 : vector<1x32xf32> to vector<8x32xf32>
    %389 = arith.addf %387, %388 : vector<8x32xf32>
    %c0_118 = arith.constant 0 : index
    %c64 = arith.constant 64 : index
    %390 = vector.load %arg41[%c0_118, %c64] : memref<8x128xf32, #tpu.memory_space<vmem>>, vector<8x64xf32>
    %391 = vector.extract_strided_slice %103 {offsets = [8, 0], sizes = [8, 64], strides = [1, 1]} : vector<16x64xf32> to vector<8x64xf32>
    %392 = vector.broadcast %363 : vector<1x64xf32> to vector<8x64xf32>
    %393 = arith.mulf %391, %392 : vector<8x64xf32>
    %394 = arith.addf %390, %393 : vector<8x64xf32>
    %395 = vector.extract_strided_slice %109 {offsets = [8, 0], sizes = [8, 64], strides = [1, 1]} : vector<16x64xf32> to vector<8x64xf32>
    %396 = math.absf %395 : vector<8x64xf32>
    %cst_119 = arith.constant 0.000000e+00 : f32
    %397 = vector.broadcast %cst_119 : f32 to vector<8x64xf32>
    %398 = arith.subf %397, %396 : vector<8x64xf32>
    %399 = math.exp %398 : vector<8x64xf32>
    %cst_120 = arith.constant 1.000000e+00 : f32
    %400 = vector.broadcast %cst_120 : f32 to vector<8x64xf32>
    %401 = arith.addf %400, %399 : vector<8x64xf32>
    %cst_121 = arith.constant 1.000000e+00 : f32
    %402 = vector.broadcast %cst_121 : f32 to vector<8x64xf32>
    %403 = arith.divf %402, %401 : vector<8x64xf32>
    %cst_122 = arith.constant 0.000000e+00 : f32
    %404 = vector.broadcast %cst_122 : f32 to vector<8x64xf32>
    %405 = arith.cmpf oge, %395, %404 : vector<8x64xf32>
    %406 = arith.mulf %399, %403 : vector<8x64xf32>
    %407 = arith.select %405, %403, %406 : vector<8x64xi1>, vector<8x64xf32>
    %408 = arith.mulf %395, %407 : vector<8x64xf32>
    %409 = arith.mulf %394, %408 : vector<8x64xf32>
    %410 = arith.truncf %409 : vector<8x64xf32> to vector<8x64xbf16>
    %cst_123 = arith.constant dense<0.000000e+00> : vector<8x32xf32>
    %411 = tpu.matmul %410, %364, %cst_123 {dimension_numbers = #tpu.dot_dimension_numbers<[1], [0], [0], [1], [0, 0, 1, 1], [], []>} : vector<8x64xbf16>, vector<64x32xbf16>, vector<8x32xf32> -> vector<8x32xf32>
    %412 = vector.broadcast %365 : vector<1x32xf32> to vector<8x32xf32>
    %413 = arith.addf %411, %412 : vector<8x32xf32>
    %c0_124 = arith.constant 0 : index
    %c0_125 = arith.constant 0 : index
    %414 = vector.load %arg40[%c0_124, %c0_125] : memref<24x32xf32, #tpu.memory_space<vmem>>, vector<8x32xf32>
    tpu.vector_store %arg40[%c0_124, %c0_125], %389 {strides = array<i32>} : memref<24x32xf32, #tpu.memory_space<vmem>>, vector<8x32xf32>,
    %c12_126 = arith.constant 12 : index
    %c0_127 = arith.constant 0 : index
    %415 = vector.load %arg40[%c12_126, %c0_127] : memref<24x32xf32, #tpu.memory_space<vmem>>, vector<8x32xf32>
    tpu.vector_store %arg40[%c12_126, %c0_127], %413 {strides = array<i32>} : memref<24x32xf32, #tpu.memory_space<vmem>>, vector<8x32xf32>,
    %c0_128 = arith.constant 0 : index
    %c0_129 = arith.constant 0 : index
    %416 = vector.load %arg40[%c0_128, %c0_129] : memref<24x32xf32, #tpu.memory_space<vmem>>, vector<24x32xf32>
    %c0_130 = arith.constant 0 : index
    %c0_131 = arith.constant 0 : index
    %417 = vector.load %arg23[%c0_130, %c0_131] : memref<32x64xbf16, #tpu.memory_space<vmem>>, vector<32x64xbf16>
    %418 = arith.truncf %416 : vector<24x32xf32> to vector<24x32xbf16>
    %cst_132 = arith.constant dense<0.000000e+00> : vector<24x64xf32>
    %419 = tpu.matmul %418, %417, %cst_132 {dimension_numbers = #tpu.dot_dimension_numbers<[1], [0], [0], [1], [0, 0, 1, 1], [], []>} : vector<24x32xbf16>, vector<32x64xbf16>, vector<24x64xf32> -> vector<24x64xf32>
    %c0_133 = arith.constant 0 : index
    %c0_134 = arith.constant 0 : index
    %420 = vector.load %arg24[%c0_133, %c0_134] : memref<1x64xf32, #tpu.memory_space<vmem>>, vector<1x64xf32>
    %421 = vector.broadcast %420 : vector<1x64xf32> to vector<24x64xf32>
    %422 = arith.addf %419, %421 : vector<24x64xf32>
    %423 = math.absf %422 : vector<24x64xf32>
    %cst_135 = arith.constant 0.000000e+00 : f32
    %424 = vector.broadcast %cst_135 : f32 to vector<24x64xf32>
    %425 = arith.subf %424, %423 : vector<24x64xf32>
    %426 = math.exp %425 : vector<24x64xf32>
    %cst_136 = arith.constant 1.000000e+00 : f32
    %427 = vector.broadcast %cst_136 : f32 to vector<24x64xf32>
    %428 = arith.addf %427, %426 : vector<24x64xf32>
    %cst_137 = arith.constant 1.000000e+00 : f32
    %429 = vector.broadcast %cst_137 : f32 to vector<24x64xf32>
    %430 = arith.divf %429, %428 : vector<24x64xf32>
    %cst_138 = arith.constant 0.000000e+00 : f32
    %431 = vector.broadcast %cst_138 : f32 to vector<24x64xf32>
    %432 = arith.cmpf oge, %422, %431 : vector<24x64xf32>
    %433 = arith.mulf %426, %430 : vector<24x64xf32>
    %434 = arith.select %432, %430, %433 : vector<24x64xi1>, vector<24x64xf32>
    %435 = arith.mulf %422, %434 : vector<24x64xf32>
    %c0_139 = arith.constant 0 : index
    %c0_140 = arith.constant 0 : index
    %436 = vector.load %arg25[%c0_139, %c0_140] : memref<32x64xbf16, #tpu.memory_space<vmem>>, vector<32x64xbf16>
    %437 = arith.truncf %416 : vector<24x32xf32> to vector<24x32xbf16>
    %cst_141 = arith.constant dense<0.000000e+00> : vector<24x64xf32>
    %438 = tpu.matmul %437, %436, %cst_141 {dimension_numbers = #tpu.dot_dimension_numbers<[1], [0], [0], [1], [0, 0, 1, 1], [], []>} : vector<24x32xbf16>, vector<32x64xbf16>, vector<24x64xf32> -> vector<24x64xf32>
    %c0_142 = arith.constant 0 : index
    %c0_143 = arith.constant 0 : index
    %439 = vector.load %arg26[%c0_142, %c0_143] : memref<1x64xf32, #tpu.memory_space<vmem>>, vector<1x64xf32>
    %440 = vector.broadcast %439 : vector<1x64xf32> to vector<24x64xf32>
    %441 = arith.addf %438, %440 : vector<24x64xf32>
    %c0_144 = arith.constant 0 : index
    %c0_145 = arith.constant 0 : index
    %442 = vector.load %arg27[%c0_144, %c0_145] : memref<64x64xbf16, #tpu.memory_space<vmem>>, vector<64x64xbf16>
    %443 = arith.truncf %435 : vector<24x64xf32> to vector<24x64xbf16>
    %cst_146 = arith.constant dense<0.000000e+00> : vector<24x64xf32>
    %444 = tpu.matmul %443, %442, %cst_146 {dimension_numbers = #tpu.dot_dimension_numbers<[1], [0], [0], [1], [0, 0, 1, 1], [], []>} : vector<24x64xbf16>, vector<64x64xbf16>, vector<24x64xf32> -> vector<24x64xf32>
    %c0_147 = arith.constant 0 : index
    %c0_148 = arith.constant 0 : index
    %445 = vector.load %arg28[%c0_147, %c0_148] : memref<1x64xf32, #tpu.memory_space<vmem>>, vector<1x64xf32>
    %446 = vector.broadcast %445 : vector<1x64xf32> to vector<24x64xf32>
    %447 = arith.addf %444, %446 : vector<24x64xf32>
    %cst_149 = arith.constant 2.000000e+01 : f32
    %448 = vector.broadcast %cst_149 : f32 to vector<24x64xf32>
    %449 = arith.cmpf ogt, %447, %448 : vector<24x64xf32>
    %cst_150 = arith.constant 2.000000e+01 : f32
    %450 = vector.broadcast %cst_150 : f32 to vector<24x64xf32>
    %451 = arith.minimumf %447, %450 : vector<24x64xf32>
    %452 = math.exp %451 : vector<24x64xf32>
    %cst_151 = arith.constant 1.000000e+00 : f32
    %453 = vector.broadcast %cst_151 : f32 to vector<24x64xf32>
    %454 = arith.addf %453, %452 : vector<24x64xf32>
    %455 = math.log %454 : vector<24x64xf32>
    %456 = arith.select %449, %447, %455 : vector<24x64xi1>, vector<24x64xf32>
    %c0_152 = arith.constant 0 : index
    %c0_153 = arith.constant 0 : index
    %457 = vector.load %arg29[%c0_152, %c0_153] : memref<16x64xbf16, #tpu.memory_space<vmem>>, vector<16x64xbf16>
    %458 = arith.truncf %435 : vector<24x64xf32> to vector<24x64xbf16>
    %cst_154 = arith.constant dense<0.000000e+00> : vector<16x24xf32>
    %459 = tpu.matmul %457, %458, %cst_154 {dimension_numbers = #tpu.dot_dimension_numbers<[1], [1], [0], [0], [0, 0, 1, 0], [], []>} : vector<16x64xbf16>, vector<24x64xbf16>, vector<16x24xf32> -> vector<16x24xf32>
    %460 = vector.extract_strided_slice %459 {offsets = [0, 0], sizes = [8, 24], strides = [1, 1]} : vector<16x24xf32> to vector<8x24xf32>
    %461 = vector.extract_strided_slice %459 {offsets = [8, 0], sizes = [8, 24], strides = [1, 1]} : vector<16x24xf32> to vector<8x24xf32>
    %462 = vector.extract_strided_slice %456 {offsets = [0, 0], sizes = [12, 64], strides = [1, 1]} : vector<24x64xf32> to vector<12x64xf32>
    %463 = vector.extract_strided_slice %456 {offsets = [12, 0], sizes = [12, 64], strides = [1, 1]} : vector<24x64xf32> to vector<12x64xf32>
    %464 = tpu.concatenate %462, %463 in 1 : vector<12x64xf32>, vector<12x64xf32> -> vector<12x128xf32>
    %465 = vector.extract_strided_slice %435 {offsets = [0, 0], sizes = [12, 64], strides = [1, 1]} : vector<24x64xf32> to vector<12x64xf32>
    %466 = vector.extract_strided_slice %435 {offsets = [12, 0], sizes = [12, 64], strides = [1, 1]} : vector<24x64xf32> to vector<12x64xf32>
    %467 = tpu.concatenate %465, %466 in 1 : vector<12x64xf32>, vector<12x64xf32> -> vector<12x128xf32>
    %468 = arith.mulf %464, %467 : vector<12x128xf32>
    %c0_155 = arith.constant 0 : index
    %c0_156 = arith.constant 0 : index
    %469 = vector.load %arg30[%c0_155, %c0_156] : memref<8x128xf32, #tpu.memory_space<vmem>>, vector<8x128xf32>
    %470 = vector.extract_strided_slice %464 {offsets = [0, 0], sizes = [1, 128], strides = [1, 1]} : vector<12x128xf32> to vector<1x128xf32>
    %471 = vector.broadcast %470 : vector<1x128xf32> to vector<8x128xf32>
    %472 = arith.mulf %469, %471 : vector<8x128xf32>
    %473 = math.exp %472 : vector<8x128xf32>
    %474 = vector.extract_strided_slice %468 {offsets = [0, 0], sizes = [1, 64], strides = [1, 1]} : vector<12x128xf32> to vector<1x64xf32>
    %475 = vector.extract_strided_slice %460 {offsets = [0, 0], sizes = [8, 1], strides = [1, 1]} : vector<8x24xf32> to vector<8x1xf32>
    %476 = vector.broadcast %474 : vector<1x64xf32> to vector<8x64xf32>
    %477 = vector.broadcast %475 : vector<8x1xf32> to vector<8x64xf32>
    %478 = arith.mulf %476, %477 : vector<8x64xf32>
    %479 = vector.extract_strided_slice %468 {offsets = [0, 64], sizes = [1, 64], strides = [1, 1]} : vector<12x128xf32> to vector<1x64xf32>
    %480 = vector.extract_strided_slice %460 {offsets = [0, 12], sizes = [8, 1], strides = [1, 1]} : vector<8x24xf32> to vector<8x1xf32>
    %481 = vector.broadcast %479 : vector<1x64xf32> to vector<8x64xf32>
    %482 = vector.broadcast %480 : vector<8x1xf32> to vector<8x64xf32>
    %483 = arith.mulf %481, %482 : vector<8x64xf32>
    %484 = tpu.concatenate %478, %483 in 1 : vector<8x64xf32>, vector<8x64xf32> -> vector<8x128xf32>
    %485 = vector.extract_strided_slice %461 {offsets = [0, 0], sizes = [8, 1], strides = [1, 1]} : vector<8x24xf32> to vector<8x1xf32>
    %486 = vector.shape_cast %485 : vector<8x1xf32> to vector<8x1xf32>
    %487 = vector.broadcast %486 : vector<8x1xf32> to vector<8x64xf32>
    %488 = vector.extract_strided_slice %461 {offsets = [0, 12], sizes = [8, 1], strides = [1, 1]} : vector<8x24xf32> to vector<8x1xf32>
    %489 = vector.shape_cast %488 : vector<8x1xf32> to vector<8x1xf32>
    %490 = vector.broadcast %489 : vector<8x1xf32> to vector<8x64xf32>
    %491 = tpu.concatenate %487, %490 in 1 : vector<8x64xf32>, vector<8x64xf32> -> vector<8x128xf32>
    %492 = vector.extract_strided_slice %464 {offsets = [1, 0], sizes = [1, 128], strides = [1, 1]} : vector<12x128xf32> to vector<1x128xf32>
    %493 = vector.broadcast %492 : vector<1x128xf32> to vector<8x128xf32>
    %494 = arith.mulf %469, %493 : vector<8x128xf32>
    %495 = math.exp %494 : vector<8x128xf32>
    %496 = vector.extract_strided_slice %468 {offsets = [1, 0], sizes = [1, 64], strides = [1, 1]} : vector<12x128xf32> to vector<1x64xf32>
    %497 = vector.extract_strided_slice %460 {offsets = [0, 1], sizes = [8, 1], strides = [1, 1]} : vector<8x24xf32> to vector<8x1xf32>
    %498 = vector.broadcast %496 : vector<1x64xf32> to vector<8x64xf32>
    %499 = vector.broadcast %497 : vector<8x1xf32> to vector<8x64xf32>
    %500 = arith.mulf %498, %499 : vector<8x64xf32>
    %501 = vector.extract_strided_slice %468 {offsets = [1, 64], sizes = [1, 64], strides = [1, 1]} : vector<12x128xf32> to vector<1x64xf32>
    %502 = vector.extract_strided_slice %460 {offsets = [0, 13], sizes = [8, 1], strides = [1, 1]} : vector<8x24xf32> to vector<8x1xf32>
    %503 = vector.broadcast %501 : vector<1x64xf32> to vector<8x64xf32>
    %504 = vector.broadcast %502 : vector<8x1xf32> to vector<8x64xf32>
    %505 = arith.mulf %503, %504 : vector<8x64xf32>
    %506 = tpu.concatenate %500, %505 in 1 : vector<8x64xf32>, vector<8x64xf32> -> vector<8x128xf32>
    %507 = vector.extract_strided_slice %461 {offsets = [0, 1], sizes = [8, 1], strides = [1, 1]} : vector<8x24xf32> to vector<8x1xf32>
    %508 = vector.shape_cast %507 : vector<8x1xf32> to vector<8x1xf32>
    %509 = vector.broadcast %508 : vector<8x1xf32> to vector<8x64xf32>
    %510 = vector.extract_strided_slice %461 {offsets = [0, 13], sizes = [8, 1], strides = [1, 1]} : vector<8x24xf32> to vector<8x1xf32>
    %511 = vector.shape_cast %510 : vector<8x1xf32> to vector<8x1xf32>
    %512 = vector.broadcast %511 : vector<8x1xf32> to vector<8x64xf32>
    %513 = tpu.concatenate %509, %512 in 1 : vector<8x64xf32>, vector<8x64xf32> -> vector<8x128xf32>
    %514 = vector.extract_strided_slice %464 {offsets = [2, 0], sizes = [1, 128], strides = [1, 1]} : vector<12x128xf32> to vector<1x128xf32>
    %515 = vector.broadcast %514 : vector<1x128xf32> to vector<8x128xf32>
    %516 = arith.mulf %469, %515 : vector<8x128xf32>
    %517 = math.exp %516 : vector<8x128xf32>
    %518 = vector.extract_strided_slice %468 {offsets = [2, 0], sizes = [1, 64], strides = [1, 1]} : vector<12x128xf32> to vector<1x64xf32>
    %519 = vector.extract_strided_slice %460 {offsets = [0, 2], sizes = [8, 1], strides = [1, 1]} : vector<8x24xf32> to vector<8x1xf32>
    %520 = vector.broadcast %518 : vector<1x64xf32> to vector<8x64xf32>
    %521 = vector.broadcast %519 : vector<8x1xf32> to vector<8x64xf32>
    %522 = arith.mulf %520, %521 : vector<8x64xf32>
    %523 = vector.extract_strided_slice %468 {offsets = [2, 64], sizes = [1, 64], strides = [1, 1]} : vector<12x128xf32> to vector<1x64xf32>
    %524 = vector.extract_strided_slice %460 {offsets = [0, 14], sizes = [8, 1], strides = [1, 1]} : vector<8x24xf32> to vector<8x1xf32>
    %525 = vector.broadcast %523 : vector<1x64xf32> to vector<8x64xf32>
    %526 = vector.broadcast %524 : vector<8x1xf32> to vector<8x64xf32>
    %527 = arith.mulf %525, %526 : vector<8x64xf32>
    %528 = tpu.concatenate %522, %527 in 1 : vector<8x64xf32>, vector<8x64xf32> -> vector<8x128xf32>
    %529 = vector.extract_strided_slice %461 {offsets = [0, 2], sizes = [8, 1], strides = [1, 1]} : vector<8x24xf32> to vector<8x1xf32>
    %530 = vector.shape_cast %529 : vector<8x1xf32> to vector<8x1xf32>
    %531 = vector.broadcast %530 : vector<8x1xf32> to vector<8x64xf32>
    %532 = vector.extract_strided_slice %461 {offsets = [0, 14], sizes = [8, 1], strides = [1, 1]} : vector<8x24xf32> to vector<8x1xf32>
    %533 = vector.shape_cast %532 : vector<8x1xf32> to vector<8x1xf32>
    %534 = vector.broadcast %533 : vector<8x1xf32> to vector<8x64xf32>
    %535 = tpu.concatenate %531, %534 in 1 : vector<8x64xf32>, vector<8x64xf32> -> vector<8x128xf32>
    %536 = vector.extract_strided_slice %464 {offsets = [3, 0], sizes = [1, 128], strides = [1, 1]} : vector<12x128xf32> to vector<1x128xf32>
    %537 = vector.broadcast %536 : vector<1x128xf32> to vector<8x128xf32>
    %538 = arith.mulf %469, %537 : vector<8x128xf32>
    %539 = math.exp %538 : vector<8x128xf32>
    %540 = vector.extract_strided_slice %468 {offsets = [3, 0], sizes = [1, 64], strides = [1, 1]} : vector<12x128xf32> to vector<1x64xf32>
    %541 = vector.extract_strided_slice %460 {offsets = [0, 3], sizes = [8, 1], strides = [1, 1]} : vector<8x24xf32> to vector<8x1xf32>
    %542 = vector.broadcast %540 : vector<1x64xf32> to vector<8x64xf32>
    %543 = vector.broadcast %541 : vector<8x1xf32> to vector<8x64xf32>
    %544 = arith.mulf %542, %543 : vector<8x64xf32>
    %545 = vector.extract_strided_slice %468 {offsets = [3, 64], sizes = [1, 64], strides = [1, 1]} : vector<12x128xf32> to vector<1x64xf32>
    %546 = vector.extract_strided_slice %460 {offsets = [0, 15], sizes = [8, 1], strides = [1, 1]} : vector<8x24xf32> to vector<8x1xf32>
    %547 = vector.broadcast %545 : vector<1x64xf32> to vector<8x64xf32>
    %548 = vector.broadcast %546 : vector<8x1xf32> to vector<8x64xf32>
    %549 = arith.mulf %547, %548 : vector<8x64xf32>
    %550 = tpu.concatenate %544, %549 in 1 : vector<8x64xf32>, vector<8x64xf32> -> vector<8x128xf32>
    %551 = vector.extract_strided_slice %461 {offsets = [0, 3], sizes = [8, 1], strides = [1, 1]} : vector<8x24xf32> to vector<8x1xf32>
    %552 = vector.shape_cast %551 : vector<8x1xf32> to vector<8x1xf32>
    %553 = vector.broadcast %552 : vector<8x1xf32> to vector<8x64xf32>
    %554 = vector.extract_strided_slice %461 {offsets = [0, 15], sizes = [8, 1], strides = [1, 1]} : vector<8x24xf32> to vector<8x1xf32>
    %555 = vector.shape_cast %554 : vector<8x1xf32> to vector<8x1xf32>
    %556 = vector.broadcast %555 : vector<8x1xf32> to vector<8x64xf32>
    %557 = tpu.concatenate %553, %556 in 1 : vector<8x64xf32>, vector<8x64xf32> -> vector<8x128xf32>
    %558 = vector.extract_strided_slice %464 {offsets = [4, 0], sizes = [1, 128], strides = [1, 1]} : vector<12x128xf32> to vector<1x128xf32>
    %559 = vector.broadcast %558 : vector<1x128xf32> to vector<8x128xf32>
    %560 = arith.mulf %469, %559 : vector<8x128xf32>
    %561 = math.exp %560 : vector<8x128xf32>
    %562 = vector.extract_strided_slice %468 {offsets = [4, 0], sizes = [1, 64], strides = [1, 1]} : vector<12x128xf32> to vector<1x64xf32>
    %563 = vector.extract_strided_slice %460 {offsets = [0, 4], sizes = [8, 1], strides = [1, 1]} : vector<8x24xf32> to vector<8x1xf32>
    %564 = vector.broadcast %562 : vector<1x64xf32> to vector<8x64xf32>
    %565 = vector.broadcast %563 : vector<8x1xf32> to vector<8x64xf32>
    %566 = arith.mulf %564, %565 : vector<8x64xf32>
    %567 = vector.extract_strided_slice %468 {offsets = [4, 64], sizes = [1, 64], strides = [1, 1]} : vector<12x128xf32> to vector<1x64xf32>
    %568 = vector.extract_strided_slice %460 {offsets = [0, 16], sizes = [8, 1], strides = [1, 1]} : vector<8x24xf32> to vector<8x1xf32>
    %569 = vector.broadcast %567 : vector<1x64xf32> to vector<8x64xf32>
    %570 = vector.broadcast %568 : vector<8x1xf32> to vector<8x64xf32>
    %571 = arith.mulf %569, %570 : vector<8x64xf32>
    %572 = tpu.concatenate %566, %571 in 1 : vector<8x64xf32>, vector<8x64xf32> -> vector<8x128xf32>
    %573 = vector.extract_strided_slice %461 {offsets = [0, 4], sizes = [8, 1], strides = [1, 1]} : vector<8x24xf32> to vector<8x1xf32>
    %574 = vector.shape_cast %573 : vector<8x1xf32> to vector<8x1xf32>
    %575 = vector.broadcast %574 : vector<8x1xf32> to vector<8x64xf32>
    %576 = vector.extract_strided_slice %461 {offsets = [0, 16], sizes = [8, 1], strides = [1, 1]} : vector<8x24xf32> to vector<8x1xf32>
    %577 = vector.shape_cast %576 : vector<8x1xf32> to vector<8x1xf32>
    %578 = vector.broadcast %577 : vector<8x1xf32> to vector<8x64xf32>
    %579 = tpu.concatenate %575, %578 in 1 : vector<8x64xf32>, vector<8x64xf32> -> vector<8x128xf32>
    %580 = vector.extract_strided_slice %464 {offsets = [5, 0], sizes = [1, 128], strides = [1, 1]} : vector<12x128xf32> to vector<1x128xf32>
    %581 = vector.broadcast %580 : vector<1x128xf32> to vector<8x128xf32>
    %582 = arith.mulf %469, %581 : vector<8x128xf32>
    %583 = math.exp %582 : vector<8x128xf32>
    %584 = vector.extract_strided_slice %468 {offsets = [5, 0], sizes = [1, 64], strides = [1, 1]} : vector<12x128xf32> to vector<1x64xf32>
    %585 = vector.extract_strided_slice %460 {offsets = [0, 5], sizes = [8, 1], strides = [1, 1]} : vector<8x24xf32> to vector<8x1xf32>
    %586 = vector.broadcast %584 : vector<1x64xf32> to vector<8x64xf32>
    %587 = vector.broadcast %585 : vector<8x1xf32> to vector<8x64xf32>
    %588 = arith.mulf %586, %587 : vector<8x64xf32>
    %589 = vector.extract_strided_slice %468 {offsets = [5, 64], sizes = [1, 64], strides = [1, 1]} : vector<12x128xf32> to vector<1x64xf32>
    %590 = vector.extract_strided_slice %460 {offsets = [0, 17], sizes = [8, 1], strides = [1, 1]} : vector<8x24xf32> to vector<8x1xf32>
    %591 = vector.broadcast %589 : vector<1x64xf32> to vector<8x64xf32>
    %592 = vector.broadcast %590 : vector<8x1xf32> to vector<8x64xf32>
    %593 = arith.mulf %591, %592 : vector<8x64xf32>
    %594 = tpu.concatenate %588, %593 in 1 : vector<8x64xf32>, vector<8x64xf32> -> vector<8x128xf32>
    %595 = vector.extract_strided_slice %461 {offsets = [0, 5], sizes = [8, 1], strides = [1, 1]} : vector<8x24xf32> to vector<8x1xf32>
    %596 = vector.shape_cast %595 : vector<8x1xf32> to vector<8x1xf32>
    %597 = vector.broadcast %596 : vector<8x1xf32> to vector<8x64xf32>
    %598 = vector.extract_strided_slice %461 {offsets = [0, 17], sizes = [8, 1], strides = [1, 1]} : vector<8x24xf32> to vector<8x1xf32>
    %599 = vector.shape_cast %598 : vector<8x1xf32> to vector<8x1xf32>
    %600 = vector.broadcast %599 : vector<8x1xf32> to vector<8x64xf32>
    %601 = tpu.concatenate %597, %600 in 1 : vector<8x64xf32>, vector<8x64xf32> -> vector<8x128xf32>
    %602 = vector.extract_strided_slice %464 {offsets = [6, 0], sizes = [1, 128], strides = [1, 1]} : vector<12x128xf32> to vector<1x128xf32>
    %603 = vector.broadcast %602 : vector<1x128xf32> to vector<8x128xf32>
    %604 = arith.mulf %469, %603 : vector<8x128xf32>
    %605 = math.exp %604 : vector<8x128xf32>
    %606 = vector.extract_strided_slice %468 {offsets = [6, 0], sizes = [1, 64], strides = [1, 1]} : vector<12x128xf32> to vector<1x64xf32>
    %607 = vector.extract_strided_slice %460 {offsets = [0, 6], sizes = [8, 1], strides = [1, 1]} : vector<8x24xf32> to vector<8x1xf32>
    %608 = vector.broadcast %606 : vector<1x64xf32> to vector<8x64xf32>
    %609 = vector.broadcast %607 : vector<8x1xf32> to vector<8x64xf32>
    %610 = arith.mulf %608, %609 : vector<8x64xf32>
    %611 = vector.extract_strided_slice %468 {offsets = [6, 64], sizes = [1, 64], strides = [1, 1]} : vector<12x128xf32> to vector<1x64xf32>
    %612 = vector.extract_strided_slice %460 {offsets = [0, 18], sizes = [8, 1], strides = [1, 1]} : vector<8x24xf32> to vector<8x1xf32>
    %613 = vector.broadcast %611 : vector<1x64xf32> to vector<8x64xf32>
    %614 = vector.broadcast %612 : vector<8x1xf32> to vector<8x64xf32>
    %615 = arith.mulf %613, %614 : vector<8x64xf32>
    %616 = tpu.concatenate %610, %615 in 1 : vector<8x64xf32>, vector<8x64xf32> -> vector<8x128xf32>
    %617 = vector.extract_strided_slice %461 {offsets = [0, 6], sizes = [8, 1], strides = [1, 1]} : vector<8x24xf32> to vector<8x1xf32>
    %618 = vector.shape_cast %617 : vector<8x1xf32> to vector<8x1xf32>
    %619 = vector.broadcast %618 : vector<8x1xf32> to vector<8x64xf32>
    %620 = vector.extract_strided_slice %461 {offsets = [0, 18], sizes = [8, 1], strides = [1, 1]} : vector<8x24xf32> to vector<8x1xf32>
    %621 = vector.shape_cast %620 : vector<8x1xf32> to vector<8x1xf32>
    %622 = vector.broadcast %621 : vector<8x1xf32> to vector<8x64xf32>
    %623 = tpu.concatenate %619, %622 in 1 : vector<8x64xf32>, vector<8x64xf32> -> vector<8x128xf32>
    %624 = vector.extract_strided_slice %464 {offsets = [7, 0], sizes = [1, 128], strides = [1, 1]} : vector<12x128xf32> to vector<1x128xf32>
    %625 = vector.broadcast %624 : vector<1x128xf32> to vector<8x128xf32>
    %626 = arith.mulf %469, %625 : vector<8x128xf32>
    %627 = math.exp %626 : vector<8x128xf32>
    %628 = vector.extract_strided_slice %468 {offsets = [7, 0], sizes = [1, 64], strides = [1, 1]} : vector<12x128xf32> to vector<1x64xf32>
    %629 = vector.extract_strided_slice %460 {offsets = [0, 7], sizes = [8, 1], strides = [1, 1]} : vector<8x24xf32> to vector<8x1xf32>
    %630 = vector.broadcast %628 : vector<1x64xf32> to vector<8x64xf32>
    %631 = vector.broadcast %629 : vector<8x1xf32> to vector<8x64xf32>
    %632 = arith.mulf %630, %631 : vector<8x64xf32>
    %633 = vector.extract_strided_slice %468 {offsets = [7, 64], sizes = [1, 64], strides = [1, 1]} : vector<12x128xf32> to vector<1x64xf32>
    %634 = vector.extract_strided_slice %460 {offsets = [0, 19], sizes = [8, 1], strides = [1, 1]} : vector<8x24xf32> to vector<8x1xf32>
    %635 = vector.broadcast %633 : vector<1x64xf32> to vector<8x64xf32>
    %636 = vector.broadcast %634 : vector<8x1xf32> to vector<8x64xf32>
    %637 = arith.mulf %635, %636 : vector<8x64xf32>
    %638 = tpu.concatenate %632, %637 in 1 : vector<8x64xf32>, vector<8x64xf32> -> vector<8x128xf32>
    %639 = vector.extract_strided_slice %461 {offsets = [0, 7], sizes = [8, 1], strides = [1, 1]} : vector<8x24xf32> to vector<8x1xf32>
    %640 = vector.shape_cast %639 : vector<8x1xf32> to vector<8x1xf32>
    %641 = vector.broadcast %640 : vector<8x1xf32> to vector<8x64xf32>
    %642 = vector.extract_strided_slice %461 {offsets = [0, 19], sizes = [8, 1], strides = [1, 1]} : vector<8x24xf32> to vector<8x1xf32>
    %643 = vector.shape_cast %642 : vector<8x1xf32> to vector<8x1xf32>
    %644 = vector.broadcast %643 : vector<8x1xf32> to vector<8x64xf32>
    %645 = tpu.concatenate %641, %644 in 1 : vector<8x64xf32>, vector<8x64xf32> -> vector<8x128xf32>
    %646 = vector.extract_strided_slice %464 {offsets = [8, 0], sizes = [1, 128], strides = [1, 1]} : vector<12x128xf32> to vector<1x128xf32>
    %647 = vector.broadcast %646 : vector<1x128xf32> to vector<8x128xf32>
    %648 = arith.mulf %469, %647 : vector<8x128xf32>
    %649 = math.exp %648 : vector<8x128xf32>
    %650 = vector.extract_strided_slice %468 {offsets = [8, 0], sizes = [1, 64], strides = [1, 1]} : vector<12x128xf32> to vector<1x64xf32>
    %651 = vector.extract_strided_slice %460 {offsets = [0, 8], sizes = [8, 1], strides = [1, 1]} : vector<8x24xf32> to vector<8x1xf32>
    %652 = vector.broadcast %650 : vector<1x64xf32> to vector<8x64xf32>
    %653 = vector.broadcast %651 : vector<8x1xf32> to vector<8x64xf32>
    %654 = arith.mulf %652, %653 : vector<8x64xf32>
    %655 = vector.extract_strided_slice %468 {offsets = [8, 64], sizes = [1, 64], strides = [1, 1]} : vector<12x128xf32> to vector<1x64xf32>
    %656 = vector.extract_strided_slice %460 {offsets = [0, 20], sizes = [8, 1], strides = [1, 1]} : vector<8x24xf32> to vector<8x1xf32>
    %657 = vector.broadcast %655 : vector<1x64xf32> to vector<8x64xf32>
    %658 = vector.broadcast %656 : vector<8x1xf32> to vector<8x64xf32>
    %659 = arith.mulf %657, %658 : vector<8x64xf32>
    %660 = tpu.concatenate %654, %659 in 1 : vector<8x64xf32>, vector<8x64xf32> -> vector<8x128xf32>
    %661 = vector.extract_strided_slice %461 {offsets = [0, 8], sizes = [8, 1], strides = [1, 1]} : vector<8x24xf32> to vector<8x1xf32>
    %662 = vector.shape_cast %661 : vector<8x1xf32> to vector<8x1xf32>
    %663 = vector.broadcast %662 : vector<8x1xf32> to vector<8x64xf32>
    %664 = vector.extract_strided_slice %461 {offsets = [0, 20], sizes = [8, 1], strides = [1, 1]} : vector<8x24xf32> to vector<8x1xf32>
    %665 = vector.shape_cast %664 : vector<8x1xf32> to vector<8x1xf32>
    %666 = vector.broadcast %665 : vector<8x1xf32> to vector<8x64xf32>
    %667 = tpu.concatenate %663, %666 in 1 : vector<8x64xf32>, vector<8x64xf32> -> vector<8x128xf32>
    %668 = vector.extract_strided_slice %464 {offsets = [9, 0], sizes = [1, 128], strides = [1, 1]} : vector<12x128xf32> to vector<1x128xf32>
    %669 = vector.broadcast %668 : vector<1x128xf32> to vector<8x128xf32>
    %670 = arith.mulf %469, %669 : vector<8x128xf32>
    %671 = math.exp %670 : vector<8x128xf32>
    %672 = vector.extract_strided_slice %468 {offsets = [9, 0], sizes = [1, 64], strides = [1, 1]} : vector<12x128xf32> to vector<1x64xf32>
    %673 = vector.extract_strided_slice %460 {offsets = [0, 9], sizes = [8, 1], strides = [1, 1]} : vector<8x24xf32> to vector<8x1xf32>
    %674 = vector.broadcast %672 : vector<1x64xf32> to vector<8x64xf32>
    %675 = vector.broadcast %673 : vector<8x1xf32> to vector<8x64xf32>
    %676 = arith.mulf %674, %675 : vector<8x64xf32>
    %677 = vector.extract_strided_slice %468 {offsets = [9, 64], sizes = [1, 64], strides = [1, 1]} : vector<12x128xf32> to vector<1x64xf32>
    %678 = vector.extract_strided_slice %460 {offsets = [0, 21], sizes = [8, 1], strides = [1, 1]} : vector<8x24xf32> to vector<8x1xf32>
    %679 = vector.broadcast %677 : vector<1x64xf32> to vector<8x64xf32>
    %680 = vector.broadcast %678 : vector<8x1xf32> to vector<8x64xf32>
    %681 = arith.mulf %679, %680 : vector<8x64xf32>
    %682 = tpu.concatenate %676, %681 in 1 : vector<8x64xf32>, vector<8x64xf32> -> vector<8x128xf32>
    %683 = vector.extract_strided_slice %461 {offsets = [0, 9], sizes = [8, 1], strides = [1, 1]} : vector<8x24xf32> to vector<8x1xf32>
    %684 = vector.shape_cast %683 : vector<8x1xf32> to vector<8x1xf32>
    %685 = vector.broadcast %684 : vector<8x1xf32> to vector<8x64xf32>
    %686 = vector.extract_strided_slice %461 {offsets = [0, 21], sizes = [8, 1], strides = [1, 1]} : vector<8x24xf32> to vector<8x1xf32>
    %687 = vector.shape_cast %686 : vector<8x1xf32> to vector<8x1xf32>
    %688 = vector.broadcast %687 : vector<8x1xf32> to vector<8x64xf32>
    %689 = tpu.concatenate %685, %688 in 1 : vector<8x64xf32>, vector<8x64xf32> -> vector<8x128xf32>
    %690 = vector.extract_strided_slice %464 {offsets = [10, 0], sizes = [1, 128], strides = [1, 1]} : vector<12x128xf32> to vector<1x128xf32>
    %691 = vector.broadcast %690 : vector<1x128xf32> to vector<8x128xf32>
    %692 = arith.mulf %469, %691 : vector<8x128xf32>
    %693 = math.exp %692 : vector<8x128xf32>
    %694 = vector.extract_strided_slice %468 {offsets = [10, 0], sizes = [1, 64], strides = [1, 1]} : vector<12x128xf32> to vector<1x64xf32>
    %695 = vector.extract_strided_slice %460 {offsets = [0, 10], sizes = [8, 1], strides = [1, 1]} : vector<8x24xf32> to vector<8x1xf32>
    %696 = vector.broadcast %694 : vector<1x64xf32> to vector<8x64xf32>
    %697 = vector.broadcast %695 : vector<8x1xf32> to vector<8x64xf32>
    %698 = arith.mulf %696, %697 : vector<8x64xf32>
    %699 = vector.extract_strided_slice %468 {offsets = [10, 64], sizes = [1, 64], strides = [1, 1]} : vector<12x128xf32> to vector<1x64xf32>
    %700 = vector.extract_strided_slice %460 {offsets = [0, 22], sizes = [8, 1], strides = [1, 1]} : vector<8x24xf32> to vector<8x1xf32>
    %701 = vector.broadcast %699 : vector<1x64xf32> to vector<8x64xf32>
    %702 = vector.broadcast %700 : vector<8x1xf32> to vector<8x64xf32>
    %703 = arith.mulf %701, %702 : vector<8x64xf32>
    %704 = tpu.concatenate %698, %703 in 1 : vector<8x64xf32>, vector<8x64xf32> -> vector<8x128xf32>
    %705 = vector.extract_strided_slice %461 {offsets = [0, 10], sizes = [8, 1], strides = [1, 1]} : vector<8x24xf32> to vector<8x1xf32>
    %706 = vector.shape_cast %705 : vector<8x1xf32> to vector<8x1xf32>
    %707 = vector.broadcast %706 : vector<8x1xf32> to vector<8x64xf32>
    %708 = vector.extract_strided_slice %461 {offsets = [0, 22], sizes = [8, 1], strides = [1, 1]} : vector<8x24xf32> to vector<8x1xf32>
    %709 = vector.shape_cast %708 : vector<8x1xf32> to vector<8x1xf32>
    %710 = vector.broadcast %709 : vector<8x1xf32> to vector<8x64xf32>
    %711 = tpu.concatenate %707, %710 in 1 : vector<8x64xf32>, vector<8x64xf32> -> vector<8x128xf32>
    %712 = vector.extract_strided_slice %464 {offsets = [11, 0], sizes = [1, 128], strides = [1, 1]} : vector<12x128xf32> to vector<1x128xf32>
    %713 = vector.broadcast %712 : vector<1x128xf32> to vector<8x128xf32>
    %714 = arith.mulf %469, %713 : vector<8x128xf32>
    %715 = math.exp %714 : vector<8x128xf32>
    %716 = vector.extract_strided_slice %468 {offsets = [11, 0], sizes = [1, 64], strides = [1, 1]} : vector<12x128xf32> to vector<1x64xf32>
    %717 = vector.extract_strided_slice %460 {offsets = [0, 11], sizes = [8, 1], strides = [1, 1]} : vector<8x24xf32> to vector<8x1xf32>
    %718 = vector.broadcast %716 : vector<1x64xf32> to vector<8x64xf32>
    %719 = vector.broadcast %717 : vector<8x1xf32> to vector<8x64xf32>
    %720 = arith.mulf %718, %719 : vector<8x64xf32>
    %721 = vector.extract_strided_slice %468 {offsets = [11, 64], sizes = [1, 64], strides = [1, 1]} : vector<12x128xf32> to vector<1x64xf32>
    %722 = vector.extract_strided_slice %460 {offsets = [0, 23], sizes = [8, 1], strides = [1, 1]} : vector<8x24xf32> to vector<8x1xf32>
    %723 = vector.broadcast %721 : vector<1x64xf32> to vector<8x64xf32>
    %724 = vector.broadcast %722 : vector<8x1xf32> to vector<8x64xf32>
    %725 = arith.mulf %723, %724 : vector<8x64xf32>
    %726 = tpu.concatenate %720, %725 in 1 : vector<8x64xf32>, vector<8x64xf32> -> vector<8x128xf32>
    %727 = vector.extract_strided_slice %461 {offsets = [0, 11], sizes = [8, 1], strides = [1, 1]} : vector<8x24xf32> to vector<8x1xf32>
    %728 = vector.shape_cast %727 : vector<8x1xf32> to vector<8x1xf32>
    %729 = vector.broadcast %728 : vector<8x1xf32> to vector<8x64xf32>
    %730 = vector.extract_strided_slice %461 {offsets = [0, 23], sizes = [8, 1], strides = [1, 1]} : vector<8x24xf32> to vector<8x1xf32>
    %731 = vector.shape_cast %730 : vector<8x1xf32> to vector<8x1xf32>
    %732 = vector.broadcast %731 : vector<8x1xf32> to vector<8x64xf32>
    %733 = tpu.concatenate %729, %732 in 1 : vector<8x64xf32>, vector<8x64xf32> -> vector<8x128xf32>
    %cst_157 = arith.constant 0.000000e+00 : f32
    %734 = vector.broadcast %cst_157 : f32 to vector<8x128xf32>
    %735 = arith.mulf %473, %734 : vector<8x128xf32>
    %736 = arith.addf %735, %484 : vector<8x128xf32>
    %737 = arith.mulf %736, %491 : vector<8x128xf32>
    %cst_158 = arith.constant dense<0.000000e+00> : vector<128xf32>
    %738 = vector.multi_reduction <add>, %737, %cst_158 [0] : vector<8x128xf32> to vector<128xf32>
    %739 = vector.shape_cast %738 : vector<128xf32> to vector<1x128xf32>
    %c0_159 = arith.constant 0 : index
    %c0_160 = arith.constant 0 : index
    %740 = vector.load %arg42[%c0_159, %c0_160] : memref<12x128xf32, #tpu.memory_space<vmem>>, vector<1x128xf32>
    tpu.vector_store %arg42[%c0_159, %c0_160], %739 {strides = array<i32>} : memref<12x128xf32, #tpu.memory_space<vmem>>, vector<1x128xf32>,
    %741 = arith.mulf %495, %736 : vector<8x128xf32>
    %742 = arith.addf %741, %506 : vector<8x128xf32>
    %743 = arith.mulf %742, %513 : vector<8x128xf32>
    %cst_161 = arith.constant dense<0.000000e+00> : vector<128xf32>
    %744 = vector.multi_reduction <add>, %743, %cst_161 [0] : vector<8x128xf32> to vector<128xf32>
    %745 = vector.shape_cast %744 : vector<128xf32> to vector<1x128xf32>
    %c1_162 = arith.constant 1 : index
    %c0_163 = arith.constant 0 : index
    %746 = vector.load %arg42[%c1_162, %c0_163] : memref<12x128xf32, #tpu.memory_space<vmem>>, vector<1x128xf32>
    tpu.vector_store %arg42[%c1_162, %c0_163], %745 {strides = array<i32>} : memref<12x128xf32, #tpu.memory_space<vmem>>, vector<1x128xf32>,
    %747 = arith.mulf %517, %742 : vector<8x128xf32>
    %748 = arith.addf %747, %528 : vector<8x128xf32>
    %749 = arith.mulf %748, %535 : vector<8x128xf32>
    %cst_164 = arith.constant dense<0.000000e+00> : vector<128xf32>
    %750 = vector.multi_reduction <add>, %749, %cst_164 [0] : vector<8x128xf32> to vector<128xf32>
    %751 = vector.shape_cast %750 : vector<128xf32> to vector<1x128xf32>
    %c2_165 = arith.constant 2 : index
    %c0_166 = arith.constant 0 : index
    %752 = vector.load %arg42[%c2_165, %c0_166] : memref<12x128xf32, #tpu.memory_space<vmem>>, vector<1x128xf32>
    tpu.vector_store %arg42[%c2_165, %c0_166], %751 {strides = array<i32>} : memref<12x128xf32, #tpu.memory_space<vmem>>, vector<1x128xf32>,
    %753 = arith.mulf %539, %748 : vector<8x128xf32>
    %754 = arith.addf %753, %550 : vector<8x128xf32>
    %755 = arith.mulf %754, %557 : vector<8x128xf32>
    %cst_167 = arith.constant dense<0.000000e+00> : vector<128xf32>
    %756 = vector.multi_reduction <add>, %755, %cst_167 [0] : vector<8x128xf32> to vector<128xf32>
    %757 = vector.shape_cast %756 : vector<128xf32> to vector<1x128xf32>
    %c3_168 = arith.constant 3 : index
    %c0_169 = arith.constant 0 : index
    %758 = vector.load %arg42[%c3_168, %c0_169] : memref<12x128xf32, #tpu.memory_space<vmem>>, vector<1x128xf32>
    tpu.vector_store %arg42[%c3_168, %c0_169], %757 {strides = array<i32>} : memref<12x128xf32, #tpu.memory_space<vmem>>, vector<1x128xf32>,
    %759 = arith.mulf %561, %754 : vector<8x128xf32>
    %760 = arith.addf %759, %572 : vector<8x128xf32>
    %761 = arith.mulf %760, %579 : vector<8x128xf32>
    %cst_170 = arith.constant dense<0.000000e+00> : vector<128xf32>
    %762 = vector.multi_reduction <add>, %761, %cst_170 [0] : vector<8x128xf32> to vector<128xf32>
    %763 = vector.shape_cast %762 : vector<128xf32> to vector<1x128xf32>
    %c4_171 = arith.constant 4 : index
    %c0_172 = arith.constant 0 : index
    %764 = vector.load %arg42[%c4_171, %c0_172] : memref<12x128xf32, #tpu.memory_space<vmem>>, vector<1x128xf32>
    tpu.vector_store %arg42[%c4_171, %c0_172], %763 {strides = array<i32>} : memref<12x128xf32, #tpu.memory_space<vmem>>, vector<1x128xf32>,
    %765 = arith.mulf %583, %760 : vector<8x128xf32>
    %766 = arith.addf %765, %594 : vector<8x128xf32>
    %767 = arith.mulf %766, %601 : vector<8x128xf32>
    %cst_173 = arith.constant dense<0.000000e+00> : vector<128xf32>
    %768 = vector.multi_reduction <add>, %767, %cst_173 [0] : vector<8x128xf32> to vector<128xf32>
    %769 = vector.shape_cast %768 : vector<128xf32> to vector<1x128xf32>
    %c5_174 = arith.constant 5 : index
    %c0_175 = arith.constant 0 : index
    %770 = vector.load %arg42[%c5_174, %c0_175] : memref<12x128xf32, #tpu.memory_space<vmem>>, vector<1x128xf32>
    tpu.vector_store %arg42[%c5_174, %c0_175], %769 {strides = array<i32>} : memref<12x128xf32, #tpu.memory_space<vmem>>, vector<1x128xf32>,
    %771 = arith.mulf %605, %766 : vector<8x128xf32>
    %772 = arith.addf %771, %616 : vector<8x128xf32>
    %773 = arith.mulf %772, %623 : vector<8x128xf32>
    %cst_176 = arith.constant dense<0.000000e+00> : vector<128xf32>
    %774 = vector.multi_reduction <add>, %773, %cst_176 [0] : vector<8x128xf32> to vector<128xf32>
    %775 = vector.shape_cast %774 : vector<128xf32> to vector<1x128xf32>
    %c6_177 = arith.constant 6 : index
    %c0_178 = arith.constant 0 : index
    %776 = vector.load %arg42[%c6_177, %c0_178] : memref<12x128xf32, #tpu.memory_space<vmem>>, vector<1x128xf32>
    tpu.vector_store %arg42[%c6_177, %c0_178], %775 {strides = array<i32>} : memref<12x128xf32, #tpu.memory_space<vmem>>, vector<1x128xf32>,
    %777 = arith.mulf %627, %772 : vector<8x128xf32>
    %778 = arith.addf %777, %638 : vector<8x128xf32>
    %779 = arith.mulf %778, %645 : vector<8x128xf32>
    %cst_179 = arith.constant dense<0.000000e+00> : vector<128xf32>
    %780 = vector.multi_reduction <add>, %779, %cst_179 [0] : vector<8x128xf32> to vector<128xf32>
    %781 = vector.shape_cast %780 : vector<128xf32> to vector<1x128xf32>
    %c7_180 = arith.constant 7 : index
    %c0_181 = arith.constant 0 : index
    %782 = vector.load %arg42[%c7_180, %c0_181] : memref<12x128xf32, #tpu.memory_space<vmem>>, vector<1x128xf32>
    tpu.vector_store %arg42[%c7_180, %c0_181], %781 {strides = array<i32>} : memref<12x128xf32, #tpu.memory_space<vmem>>, vector<1x128xf32>,
    %783 = arith.mulf %649, %778 : vector<8x128xf32>
    %784 = arith.addf %783, %660 : vector<8x128xf32>
    %785 = arith.mulf %784, %667 : vector<8x128xf32>
    %cst_182 = arith.constant dense<0.000000e+00> : vector<128xf32>
    %786 = vector.multi_reduction <add>, %785, %cst_182 [0] : vector<8x128xf32> to vector<128xf32>
    %787 = vector.shape_cast %786 : vector<128xf32> to vector<1x128xf32>
    %c8_183 = arith.constant 8 : index
    %c0_184 = arith.constant 0 : index
    %788 = vector.load %arg42[%c8_183, %c0_184] : memref<12x128xf32, #tpu.memory_space<vmem>>, vector<1x128xf32>
    tpu.vector_store %arg42[%c8_183, %c0_184], %787 {strides = array<i32>} : memref<12x128xf32, #tpu.memory_space<vmem>>, vector<1x128xf32>,
    %789 = arith.mulf %671, %784 : vector<8x128xf32>
    %790 = arith.addf %789, %682 : vector<8x128xf32>
    %791 = arith.mulf %790, %689 : vector<8x128xf32>
    %cst_185 = arith.constant dense<0.000000e+00> : vector<128xf32>
    %792 = vector.multi_reduction <add>, %791, %cst_185 [0] : vector<8x128xf32> to vector<128xf32>
    %793 = vector.shape_cast %792 : vector<128xf32> to vector<1x128xf32>
    %c9_186 = arith.constant 9 : index
    %c0_187 = arith.constant 0 : index
    %794 = vector.load %arg42[%c9_186, %c0_187] : memref<12x128xf32, #tpu.memory_space<vmem>>, vector<1x128xf32>
    tpu.vector_store %arg42[%c9_186, %c0_187], %793 {strides = array<i32>} : memref<12x128xf32, #tpu.memory_space<vmem>>, vector<1x128xf32>,
    %795 = arith.mulf %693, %790 : vector<8x128xf32>
    %796 = arith.addf %795, %704 : vector<8x128xf32>
    %797 = arith.mulf %796, %711 : vector<8x128xf32>
    %cst_188 = arith.constant dense<0.000000e+00> : vector<128xf32>
    %798 = vector.multi_reduction <add>, %797, %cst_188 [0] : vector<8x128xf32> to vector<128xf32>
    %799 = vector.shape_cast %798 : vector<128xf32> to vector<1x128xf32>
    %c10_189 = arith.constant 10 : index
    %c0_190 = arith.constant 0 : index
    %800 = vector.load %arg42[%c10_189, %c0_190] : memref<12x128xf32, #tpu.memory_space<vmem>>, vector<1x128xf32>
    tpu.vector_store %arg42[%c10_189, %c0_190], %799 {strides = array<i32>} : memref<12x128xf32, #tpu.memory_space<vmem>>, vector<1x128xf32>,
    %801 = arith.mulf %715, %796 : vector<8x128xf32>
    %802 = arith.addf %801, %726 : vector<8x128xf32>
    %803 = arith.mulf %802, %733 : vector<8x128xf32>
    %cst_191 = arith.constant dense<0.000000e+00> : vector<128xf32>
    %804 = vector.multi_reduction <add>, %803, %cst_191 [0] : vector<8x128xf32> to vector<128xf32>
    %805 = vector.shape_cast %804 : vector<128xf32> to vector<1x128xf32>
    %c11_192 = arith.constant 11 : index
    %c0_193 = arith.constant 0 : index
    %806 = vector.load %arg42[%c11_192, %c0_193] : memref<12x128xf32, #tpu.memory_space<vmem>>, vector<1x128xf32>
    tpu.vector_store %arg42[%c11_192, %c0_193], %805 {strides = array<i32>} : memref<12x128xf32, #tpu.memory_space<vmem>>, vector<1x128xf32>,
    %c0_194 = arith.constant 0 : index
    %c0_195 = arith.constant 0 : index
    %807 = vector.load %arg31[%c0_194, %c0_195] : memref<1x64xf32, #tpu.memory_space<vmem>>, vector<1x64xf32>
    %c0_196 = arith.constant 0 : index
    %c0_197 = arith.constant 0 : index
    %808 = vector.load %arg32[%c0_196, %c0_197] : memref<64x32xbf16, #tpu.memory_space<vmem>>, vector<64x32xbf16>
    %c0_198 = arith.constant 0 : index
    %c0_199 = arith.constant 0 : index
    %809 = vector.load %arg33[%c0_198, %c0_199] : memref<1x32xf32, #tpu.memory_space<vmem>>, vector<1x32xf32>
    %c0_200 = arith.constant 0 : index
    %c0_201 = arith.constant 0 : index
    %810 = vector.load %arg42[%c0_200, %c0_201] : memref<12x128xf32, #tpu.memory_space<vmem>>, vector<12x64xf32>
    %811 = vector.extract_strided_slice %435 {offsets = [0, 0], sizes = [12, 64], strides = [1, 1]} : vector<24x64xf32> to vector<12x64xf32>
    %812 = vector.broadcast %807 : vector<1x64xf32> to vector<12x64xf32>
    %813 = arith.mulf %811, %812 : vector<12x64xf32>
    %814 = arith.addf %810, %813 : vector<12x64xf32>
    %815 = vector.extract_strided_slice %441 {offsets = [0, 0], sizes = [12, 64], strides = [1, 1]} : vector<24x64xf32> to vector<12x64xf32>
    %816 = math.absf %815 : vector<12x64xf32>
    %cst_202 = arith.constant 0.000000e+00 : f32
    %817 = vector.broadcast %cst_202 : f32 to vector<12x64xf32>
    %818 = arith.subf %817, %816 : vector<12x64xf32>
    %819 = math.exp %818 : vector<12x64xf32>
    %cst_203 = arith.constant 1.000000e+00 : f32
    %820 = vector.broadcast %cst_203 : f32 to vector<12x64xf32>
    %821 = arith.addf %820, %819 : vector<12x64xf32>
    %cst_204 = arith.constant 1.000000e+00 : f32
    %822 = vector.broadcast %cst_204 : f32 to vector<12x64xf32>
    %823 = arith.divf %822, %821 : vector<12x64xf32>
    %cst_205 = arith.constant 0.000000e+00 : f32
    %824 = vector.broadcast %cst_205 : f32 to vector<12x64xf32>
    %825 = arith.cmpf oge, %815, %824 : vector<12x64xf32>
    %826 = arith.mulf %819, %823 : vector<12x64xf32>
    %827 = arith.select %825, %823, %826 : vector<12x64xi1>, vector<12x64xf32>
    %828 = arith.mulf %815, %827 : vector<12x64xf32>
    %829 = arith.mulf %814, %828 : vector<12x64xf32>
    %830 = arith.truncf %829 : vector<12x64xf32> to vector<12x64xbf16>
    %cst_206 = arith.constant dense<0.000000e+00> : vector<12x32xf32>
    %831 = tpu.matmul %830, %808, %cst_206 {dimension_numbers = #tpu.dot_dimension_numbers<[1], [0], [0], [1], [0, 0, 1, 1], [], []>} : vector<12x64xbf16>, vector<64x32xbf16>, vector<12x32xf32> -> vector<12x32xf32>
    %832 = vector.broadcast %809 : vector<1x32xf32> to vector<12x32xf32>
    %833 = arith.addf %831, %832 : vector<12x32xf32>
    %c0_207 = arith.constant 0 : index
    %c64_208 = arith.constant 64 : index
    %834 = vector.load %arg42[%c0_207, %c64_208] : memref<12x128xf32, #tpu.memory_space<vmem>>, vector<12x64xf32>
    %835 = vector.extract_strided_slice %435 {offsets = [12, 0], sizes = [12, 64], strides = [1, 1]} : vector<24x64xf32> to vector<12x64xf32>
    %836 = vector.broadcast %807 : vector<1x64xf32> to vector<12x64xf32>
    %837 = arith.mulf %835, %836 : vector<12x64xf32>
    %838 = arith.addf %834, %837 : vector<12x64xf32>
    %839 = vector.extract_strided_slice %441 {offsets = [12, 0], sizes = [12, 64], strides = [1, 1]} : vector<24x64xf32> to vector<12x64xf32>
    %840 = math.absf %839 : vector<12x64xf32>
    %cst_209 = arith.constant 0.000000e+00 : f32
    %841 = vector.broadcast %cst_209 : f32 to vector<12x64xf32>
    %842 = arith.subf %841, %840 : vector<12x64xf32>
    %843 = math.exp %842 : vector<12x64xf32>
    %cst_210 = arith.constant 1.000000e+00 : f32
    %844 = vector.broadcast %cst_210 : f32 to vector<12x64xf32>
    %845 = arith.addf %844, %843 : vector<12x64xf32>
    %cst_211 = arith.constant 1.000000e+00 : f32
    %846 = vector.broadcast %cst_211 : f32 to vector<12x64xf32>
    %847 = arith.divf %846, %845 : vector<12x64xf32>
    %cst_212 = arith.constant 0.000000e+00 : f32
    %848 = vector.broadcast %cst_212 : f32 to vector<12x64xf32>
    %849 = arith.cmpf oge, %839, %848 : vector<12x64xf32>
    %850 = arith.mulf %843, %847 : vector<12x64xf32>
    %851 = arith.select %849, %847, %850 : vector<12x64xi1>, vector<12x64xf32>
    %852 = arith.mulf %839, %851 : vector<12x64xf32>
    %853 = arith.mulf %838, %852 : vector<12x64xf32>
    %854 = arith.truncf %853 : vector<12x64xf32> to vector<12x64xbf16>
    %cst_213 = arith.constant dense<0.000000e+00> : vector<12x32xf32>
    %855 = tpu.matmul %854, %808, %cst_213 {dimension_numbers = #tpu.dot_dimension_numbers<[1], [0], [0], [1], [0, 0, 1, 1], [], []>} : vector<12x64xbf16>, vector<64x32xbf16>, vector<12x32xf32> -> vector<12x32xf32>
    %856 = vector.broadcast %809 : vector<1x32xf32> to vector<12x32xf32>
    %857 = arith.addf %855, %856 : vector<12x32xf32>
    %c0_214 = arith.constant 0 : index
    %c0_215 = arith.constant 0 : index
    %858 = vector.load %arg34[%c0_214, %c0_215] : memref<32x128xbf16, #tpu.memory_space<vmem>>, vector<32x128xbf16>
    %c0_216 = arith.constant 0 : index
    %c0_217 = arith.constant 0 : index
    %859 = vector.load %arg35[%c0_216, %c0_217] : memref<1x128xf32, #tpu.memory_space<vmem>>, vector<1x128xf32>
    %c0_218 = arith.constant 0 : index
    %c0_219 = arith.constant 0 : index
    %860 = vector.load %arg36[%c0_218, %c0_219] : memref<128x4xbf16, #tpu.memory_space<vmem>>, vector<128x4xbf16>
    %c0_220 = arith.constant 0 : index
    %c0_221 = arith.constant 0 : index
    %861 = vector.load %arg37[%c0_220, %c0_221] : memref<1x4xf32, #tpu.memory_space<vmem>>, vector<1x4xf32>
    %862 = vector.extract_strided_slice %833 {offsets = [8, 0], sizes = [4, 32], strides = [1, 1]} : vector<12x32xf32> to vector<4x32xf32>
    %863 = arith.truncf %862 : vector<4x32xf32> to vector<4x32xbf16>
    %cst_222 = arith.constant dense<0.000000e+00> : vector<4x128xf32>
    %864 = tpu.matmul %863, %858, %cst_222 {dimension_numbers = #tpu.dot_dimension_numbers<[1], [0], [0], [1], [0, 0, 1, 1], [], []>} : vector<4x32xbf16>, vector<32x128xbf16>, vector<4x128xf32> -> vector<4x128xf32>
    %865 = vector.broadcast %859 : vector<1x128xf32> to vector<4x128xf32>
    %866 = arith.addf %864, %865 : vector<4x128xf32>
    %cst_223 = arith.constant 5.000000e-01 : f32
    %867 = vector.broadcast %cst_223 : f32 to vector<4x128xf32>
    %868 = arith.mulf %867, %866 : vector<4x128xf32>
    %cst_224 = arith.constant 0.707106769 : f32
    %869 = vector.broadcast %cst_224 : f32 to vector<4x128xf32>
    %870 = arith.mulf %866, %869 : vector<4x128xf32>
    %cst_225 = arith.constant 0.000000e+00 : f32
    %871 = vector.broadcast %cst_225 : f32 to vector<4x128xf32>
    %872 = arith.cmpf oge, %870, %871 : vector<4x128xf32>
    %cst_226 = arith.constant 1.000000e+00 : f32
    %cst_227 = arith.constant -1.000000e+00 : f32
    %873 = vector.broadcast %cst_226 : f32 to vector<4x128xf32>
    %874 = vector.broadcast %cst_227 : f32 to vector<4x128xf32>
    %875 = arith.select %872, %873, %874 : vector<4x128xi1>, vector<4x128xf32>
    %876 = math.absf %870 : vector<4x128xf32>
    %cst_228 = arith.constant 0.327591091 : f32
    %877 = vector.broadcast %cst_228 : f32 to vector<4x128xf32>
    %878 = arith.mulf %877, %876 : vector<4x128xf32>
    %cst_229 = arith.constant 1.000000e+00 : f32
    %879 = vector.broadcast %cst_229 : f32 to vector<4x128xf32>
    %880 = arith.addf %879, %878 : vector<4x128xf32>
    %cst_230 = arith.constant 1.000000e+00 : f32
    %881 = vector.broadcast %cst_230 : f32 to vector<4x128xf32>
    %882 = arith.divf %881, %880 : vector<4x128xf32>
    %cst_231 = arith.constant 1.06140542 : f32
    %883 = vector.broadcast %cst_231 : f32 to vector<4x128xf32>
    %884 = arith.mulf %883, %882 : vector<4x128xf32>
    %cst_232 = arith.constant -1.45315206 : f32
    %885 = vector.broadcast %cst_232 : f32 to vector<4x128xf32>
    %886 = arith.addf %884, %885 : vector<4x128xf32>
    %887 = arith.mulf %886, %882 : vector<4x128xf32>
    %cst_233 = arith.constant 1.42141378 : f32
    %888 = vector.broadcast %cst_233 : f32 to vector<4x128xf32>
    %889 = arith.addf %887, %888 : vector<4x128xf32>
    %890 = arith.mulf %889, %882 : vector<4x128xf32>
    %cst_234 = arith.constant -0.284496725 : f32
    %891 = vector.broadcast %cst_234 : f32 to vector<4x128xf32>
    %892 = arith.addf %890, %891 : vector<4x128xf32>
    %893 = arith.mulf %892, %882 : vector<4x128xf32>
    %cst_235 = arith.constant 0.254829586 : f32
    %894 = vector.broadcast %cst_235 : f32 to vector<4x128xf32>
    %895 = arith.addf %893, %894 : vector<4x128xf32>
    %896 = arith.mulf %895, %882 : vector<4x128xf32>
    %cst_236 = arith.constant 0.000000e+00 : f32
    %897 = vector.broadcast %cst_236 : f32 to vector<4x128xf32>
    %898 = arith.subf %897, %876 : vector<4x128xf32>
    %899 = arith.mulf %898, %876 : vector<4x128xf32>
    %900 = math.exp %899 : vector<4x128xf32>
    %901 = arith.mulf %896, %900 : vector<4x128xf32>
    %cst_237 = arith.constant 1.000000e+00 : f32
    %902 = vector.broadcast %cst_237 : f32 to vector<4x128xf32>
    %903 = arith.subf %902, %901 : vector<4x128xf32>
    %904 = arith.mulf %875, %903 : vector<4x128xf32>
    %cst_238 = arith.constant 1.000000e+00 : f32
    %905 = vector.broadcast %cst_238 : f32 to vector<4x128xf32>
    %906 = arith.addf %905, %904 : vector<4x128xf32>
    %907 = arith.mulf %868, %906 : vector<4x128xf32>
    %908 = arith.truncf %907 : vector<4x128xf32> to vector<4x128xbf16>
    %cst_239 = arith.constant dense<0.000000e+00> : vector<4x4xf32>
    %909 = tpu.matmul %908, %860, %cst_239 {dimension_numbers = #tpu.dot_dimension_numbers<[1], [0], [0], [1], [0, 0, 1, 1], [], []>} : vector<4x128xbf16>, vector<128x4xbf16>, vector<4x4xf32> -> vector<4x4xf32>
    %910 = vector.broadcast %861 : vector<1x4xf32> to vector<4x4xf32>
    %911 = arith.addf %909, %910 : vector<4x4xf32>
    %c0_240 = arith.constant 0 : index
    %c0_241 = arith.constant 0 : index
    %912 = vector.load %arg38[%c0_240, %c0_241] : memref<8x4xf32, #tpu.memory_space<vmem>>, vector<4x4xf32>
    tpu.vector_store %arg38[%c0_240, %c0_241], %911 {strides = array<i32>} : memref<8x4xf32, #tpu.memory_space<vmem>>, vector<4x4xf32>,
    %913 = vector.extract_strided_slice %857 {offsets = [8, 0], sizes = [4, 32], strides = [1, 1]} : vector<12x32xf32> to vector<4x32xf32>
    %914 = arith.truncf %913 : vector<4x32xf32> to vector<4x32xbf16>
    %cst_242 = arith.constant dense<0.000000e+00> : vector<4x128xf32>
    %915 = tpu.matmul %914, %858, %cst_242 {dimension_numbers = #tpu.dot_dimension_numbers<[1], [0], [0], [1], [0, 0, 1, 1], [], []>} : vector<4x32xbf16>, vector<32x128xbf16>, vector<4x128xf32> -> vector<4x128xf32>
    %916 = vector.broadcast %859 : vector<1x128xf32> to vector<4x128xf32>
    %917 = arith.addf %915, %916 : vector<4x128xf32>
    %cst_243 = arith.constant 5.000000e-01 : f32
    %918 = vector.broadcast %cst_243 : f32 to vector<4x128xf32>
    %919 = arith.mulf %918, %917 : vector<4x128xf32>
    %cst_244 = arith.constant 0.707106769 : f32
    %920 = vector.broadcast %cst_244 : f32 to vector<4x128xf32>
    %921 = arith.mulf %917, %920 : vector<4x128xf32>
    %cst_245 = arith.constant 0.000000e+00 : f32
    %922 = vector.broadcast %cst_245 : f32 to vector<4x128xf32>
    %923 = arith.cmpf oge, %921, %922 : vector<4x128xf32>
    %cst_246 = arith.constant 1.000000e+00 : f32
    %cst_247 = arith.constant -1.000000e+00 : f32
    %924 = vector.broadcast %cst_246 : f32 to vector<4x128xf32>
    %925 = vector.broadcast %cst_247 : f32 to vector<4x128xf32>
    %926 = arith.select %923, %924, %925 : vector<4x128xi1>, vector<4x128xf32>
    %927 = math.absf %921 : vector<4x128xf32>
    %cst_248 = arith.constant 0.327591091 : f32
    %928 = vector.broadcast %cst_248 : f32 to vector<4x128xf32>
    %929 = arith.mulf %928, %927 : vector<4x128xf32>
    %cst_249 = arith.constant 1.000000e+00 : f32
    %930 = vector.broadcast %cst_249 : f32 to vector<4x128xf32>
    %931 = arith.addf %930, %929 : vector<4x128xf32>
    %cst_250 = arith.constant 1.000000e+00 : f32
    %932 = vector.broadcast %cst_250 : f32 to vector<4x128xf32>
    %933 = arith.divf %932, %931 : vector<4x128xf32>
    %cst_251 = arith.constant 1.06140542 : f32
    %934 = vector.broadcast %cst_251 : f32 to vector<4x128xf32>
    %935 = arith.mulf %934, %933 : vector<4x128xf32>
    %cst_252 = arith.constant -1.45315206 : f32
    %936 = vector.broadcast %cst_252 : f32 to vector<4x128xf32>
    %937 = arith.addf %935, %936 : vector<4x128xf32>
    %938 = arith.mulf %937, %933 : vector<4x128xf32>
    %cst_253 = arith.constant 1.42141378 : f32
    %939 = vector.broadcast %cst_253 : f32 to vector<4x128xf32>
    %940 = arith.addf %938, %939 : vector<4x128xf32>
    %941 = arith.mulf %940, %933 : vector<4x128xf32>
    %cst_254 = arith.constant -0.284496725 : f32
    %942 = vector.broadcast %cst_254 : f32 to vector<4x128xf32>
    %943 = arith.addf %941, %942 : vector<4x128xf32>
    %944 = arith.mulf %943, %933 : vector<4x128xf32>
    %cst_255 = arith.constant 0.254829586 : f32
    %945 = vector.broadcast %cst_255 : f32 to vector<4x128xf32>
    %946 = arith.addf %944, %945 : vector<4x128xf32>
    %947 = arith.mulf %946, %933 : vector<4x128xf32>
    %cst_256 = arith.constant 0.000000e+00 : f32
    %948 = vector.broadcast %cst_256 : f32 to vector<4x128xf32>
    %949 = arith.subf %948, %927 : vector<4x128xf32>
    %950 = arith.mulf %949, %927 : vector<4x128xf32>
    %951 = math.exp %950 : vector<4x128xf32>
    %952 = arith.mulf %947, %951 : vector<4x128xf32>
    %cst_257 = arith.constant 1.000000e+00 : f32
    %953 = vector.broadcast %cst_257 : f32 to vector<4x128xf32>
    %954 = arith.subf %953, %952 : vector<4x128xf32>
    %955 = arith.mulf %926, %954 : vector<4x128xf32>
    %cst_258 = arith.constant 1.000000e+00 : f32
    %956 = vector.broadcast %cst_258 : f32 to vector<4x128xf32>
    %957 = arith.addf %956, %955 : vector<4x128xf32>
    %958 = arith.mulf %919, %957 : vector<4x128xf32>
    %959 = arith.truncf %958 : vector<4x128xf32> to vector<4x128xbf16>
    %cst_259 = arith.constant dense<0.000000e+00> : vector<4x4xf32>
    %960 = tpu.matmul %959, %860, %cst_259 {dimension_numbers = #tpu.dot_dimension_numbers<[1], [0], [0], [1], [0, 0, 1, 1], [], []>} : vector<4x128xbf16>, vector<128x4xbf16>, vector<4x4xf32> -> vector<4x4xf32>
    %961 = vector.broadcast %861 : vector<1x4xf32> to vector<4x4xf32>
    %962 = arith.addf %960, %961 : vector<4x4xf32>
    %c4_260 = arith.constant 4 : index
    %c0_261 = arith.constant 0 : index
    %963 = vector.load %arg38[%c4_260, %c0_261] : memref<8x4xf32, #tpu.memory_space<vmem>>, vector<4x4xf32>
    tpu.vector_store %arg38[%c4_260, %c0_261], %962 {strides = array<i32>} : memref<8x4xf32, #tpu.memory_space<vmem>>, vector<4x4xf32>,
    return
  }
}

</mosaic_0001>

<llo_original>
// kernel: forward.1
$region0: #{forward.1}
  #allocation0 [shape = 'u32[]', space=smem, size = 0x4, offset = 0x4, fixed_abs, tag = 'smem constant byte address 0x4 - core index']
  #allocation1 [shape = 'u32[144,128]{1,0:T(1,128)}', space=vmem, size = 0x12000, scoped, tag = 'internal scratch']
  #allocation2 [shape = 'f32[16,32]{1,0:T(8,128)}', space=vmem, size = 0x2000, scoped, tag = 'scratch operand']
  #allocation3 [shape = 'f32[24,32]{1,0:T(8,128)}', space=vmem, size = 0x3000, scoped, tag = 'scratch operand']
  #allocation4 [shape = 'f32[8,128]{1,0:T(8,128)}', space=vmem, size = 0x1000, scoped, tag = 'scratch operand']
  #allocation5 [shape = 'f32[12,128]{1,0:T(8,128)}', space=vmem, size = 0x2000, scoped, tag = 'scratch operand']
  %s0 = inlined_call_operand.smem [shape: u32[39], index: -1, kind: input, shape index: {}]
  %s1 = sld [smem:[%s0]]
  %s2 = scalar_lea.smem %s0, 1
  %s3 = sld [smem:[%s2]]
  %s4 = scalar_lea.smem %s0, 2
  %s5 = sld [smem:[%s4]]
  %s6 = scalar_lea.smem %s0, 3
  %s7 = sld [smem:[%s6]]
  %s8 = scalar_lea.smem %s0, 4
  %s9 = sld [smem:[%s8]]
  %s10 = scalar_lea.smem %s0, 5
  %s11 = sld [smem:[%s10]]
  %s12 = scalar_lea.smem %s0, 6
  %s13 = sld [smem:[%s12]]
  %s14 = scalar_lea.smem %s0, 7
  %s15 = sld [smem:[%s14]]
  %s16 = scalar_lea.smem %s0, 8
  %s17 = sld [smem:[%s16]]
  %s18 = scalar_lea.smem %s0, 9
  %s19 = sld [smem:[%s18]]
  %s20 = scalar_lea.smem %s0, 10
  %s21 = sld [smem:[%s20]]
  %s22 = scalar_lea.smem %s0, 11
  %s23 = sld [smem:[%s22]]
  %s24 = scalar_lea.smem %s0, 12
  %s25 = sld [smem:[%s24]]
  %s26 = scalar_lea.smem %s0, 13
  %s27 = sld [smem:[%s26]]
  %s28 = scalar_lea.smem %s0, 14
  %s29 = sld [smem:[%s28]]
  %s30 = scalar_lea.smem %s0, 15
  %s31 = sld [smem:[%s30]]
  %s32 = scalar_lea.smem %s0, 16
  %s33 = sld [smem:[%s32]]
  %s34 = scalar_lea.smem %s0, 17
  %s35 = sld [smem:[%s34]]
  %s36 = scalar_lea.smem %s0, 18
  %s37 = sld [smem:[%s36]]
  %s38 = scalar_lea.smem %s0, 19
  %s39 = sld [smem:[%s38]]
  %s40 = scalar_lea.smem %s0, 20
  %s41 = sld [smem:[%s40]]
  %s42 = scalar_lea.smem %s0, 21
  %s43 = sld [smem:[%s42]]
  %s44 = scalar_lea.smem %s0, 22
  %s45 = sld [smem:[%s44]]
  %s46 = scalar_lea.smem %s0, 23
  %s47 = sld [smem:[%s46]]
  %s48 = scalar_lea.smem %s0, 24
  %s49 = sld [smem:[%s48]]
  %s50 = scalar_lea.smem %s0, 25
  %s51 = sld [smem:[%s50]]
  %s52 = scalar_lea.smem %s0, 26
  %s53 = sld [smem:[%s52]]
  %s54 = scalar_lea.smem %s0, 27
  %s55 = sld [smem:[%s54]]
  %s56 = scalar_lea.smem %s0, 28
  %s57 = sld [smem:[%s56]]
  %s58 = scalar_lea.smem %s0, 29
  %s59 = sld [smem:[%s58]]
  %s60 = scalar_lea.smem %s0, 30
  %s61 = sld [smem:[%s60]]
  %s62 = scalar_lea.smem %s0, 31
  %s63 = sld [smem:[%s62]]
  %s64 = scalar_lea.smem %s0, 32
  %s65 = sld [smem:[%s64]]
  %s66 = scalar_lea.smem %s0, 33
  %s67 = sld [smem:[%s66]]
  %s68 = scalar_lea.smem %s0, 34
  %s69 = sld [smem:[%s68]]
  %s70 = scalar_lea.smem %s0, 35
  %s71 = sld [smem:[%s70]]
  %s72 = scalar_lea.smem %s0, 36
  %s73 = sld [smem:[%s72]]
  %s74 = scalar_lea.smem %s0, 37
  %s75 = sld [smem:[%s74]]
  %s76 = scalar_lea.smem %s0, 38
  %s77 = sld [smem:[%s76]]
  %s78 = sld [smem:[#allocation0]]
  $region170: #{forward.1} parent=0
    _
  %s80 = ssub.s32 1, %s78
  %s81 = scalar_select 0, %s80, %s78
  $region1: #{forward.1} parent=0
    #allocation6 [shape = 'u8[512]{0}', space=vmem, size = 0x400, scoped, tag = 'input window, operand 28, single buffered']
    #allocation7 [shape = 's32[1]{0}', space=sflag, size = 0x4, scoped, tag = 'scoped memory for forward.1']
    #allocation8 [shape = 's32[1]{0}', space=sflag, size = 0x4, scoped, tag = 'scoped memory for forward.1']
    #allocation9 [shape = 'u8[512]{0}', space=vmem, size = 0x400, scoped, tag = 'input window, operand 33, single buffered']
    #allocation10 [shape = 's32[1]{0}', space=sflag, size = 0x4, scoped, tag = 'scoped memory for forward.1']
    #allocation11 [shape = 'u8[4096]{0}', space=vmem, size = 0x1000, scoped, tag = 'output window, operand 0, single buffered']
    %82 = vsyncpa [#allocation7], 0
    %83 = vsyncpa [#allocation10], 0
    %84 = vsyncpa [#allocation8], 0
    // Predicated region
    $region2: #{forward.1} parent=1 // pred_check
      _
    $region3: #{forward.1} parent=1 // pred_check_branch
      %86 = sbr.rel (0) target = $region5
    $region4: #{forward.1} parent=1 // pred_region
      _
    $region5: #{forward.1} parent=1 // pred_fallthru
      _
    // Predicated region
    $region6: #{forward.1} parent=1 // pred_check
      _
    $region7: #{forward.1} parent=1 // pred_check_branch
      %88 = sbr.rel (0) target = $region9
    $region8: #{forward.1} parent=1 // pred_region
      _
    $region9: #{forward.1} parent=1 // pred_fallthru
      _
    // Predicated region
    $region10: #{forward.1} parent=1 // pred_check
      _
    $region11: #{forward.1} parent=1 // pred_check_branch
      %90 = sbr.rel (0) target = $region13
    $region12: #{forward.1} parent=1 // pred_region
      _
    $region13: #{forward.1} parent=1 // pred_fallthru
      _
    // Predicated region
    $region14: #{forward.1} parent=1 // pred_check
      _
    $region15: #{forward.1} parent=1 // pred_check_branch
      %92 = sbr.rel (0) target = $region17
    $region16: #{forward.1} parent=1 // pred_region
      _
    $region17: #{forward.1} parent=1 // pred_fallthru
      _
    // Predicated region
    $region18: #{forward.1} parent=1 // pred_check
      _
    $region19: #{forward.1} parent=1 // pred_check_branch
      %94 = sbr.rel (0) target = $region21
    $region20: #{forward.1} parent=1 // pred_region
      _
    $region21: #{forward.1} parent=1 // pred_fallthru
      _
    // Predicated region
    $region22: #{forward.1} parent=1 // pred_check
      _
    $region23: #{forward.1} parent=1 // pred_check_branch
      %96 = sbr.rel (0) target = $region25
    $region24: #{forward.1} parent=1 // pred_region
      _
    $region25: #{forward.1} parent=1 // pred_fallthru
      _
    // Predicated region
    $region26: #{forward.1} parent=1 // pred_check
      _
    $region27: #{forward.1} parent=1 // pred_check_branch
      %98 = sbr.rel (0) target = $region29
    $region28: #{forward.1} parent=1 // pred_region
      _
    $region29: #{forward.1} parent=1 // pred_fallthru
      _
    // Predicated region
    $region30: #{forward.1} parent=1 // pred_check
      _
    $region31: #{forward.1} parent=1 // pred_check_branch
      %100 = sbr.rel (0) target = $region33
    $region32: #{forward.1} parent=1 // pred_region
      _
    $region33: #{forward.1} parent=1 // pred_fallthru
      _
    // Predicated region
    $region34: #{forward.1} parent=1 // pred_check
      _
    $region35: #{forward.1} parent=1 // pred_check_branch
      %102 = sbr.rel (0) target = $region37
    $region36: #{forward.1} parent=1 // pred_region
      _
    $region37: #{forward.1} parent=1 // pred_fallthru
      _
    // Predicated region
    $region38: #{forward.1} parent=1 // pred_check
      _
    $region39: #{forward.1} parent=1 // pred_check_branch
      %104 = sbr.rel (0) target = $region41
    $region40: #{forward.1} parent=1 // pred_region
      _
    $region41: #{forward.1} parent=1 // pred_fallthru
      _
    // Predicated region
    $region42: #{forward.1} parent=1 // pred_check
      _
    $region43: #{forward.1} parent=1 // pred_check_branch
      %106 = sbr.rel (0) target = $region45
    $region44: #{forward.1} parent=1 // pred_region
      _
    $region45: #{forward.1} parent=1 // pred_fallthru
      _
    // Predicated region
    $region46: #{forward.1} parent=1 // pred_check
      _
    $region47: #{forward.1} parent=1 // pred_check_branch
      %108 = sbr.rel (0) target = $region49
    $region48: #{forward.1} parent=1 // pred_region
      _
    $region49: #{forward.1} parent=1 // pred_fallthru
      _
    // Predicated region
    $region50: #{forward.1} parent=1 // pred_check
      _
    $region51: #{forward.1} parent=1 // pred_check_branch
      %110 = sbr.rel (0) target = $region53
    $region52: #{forward.1} parent=1 // pred_region
      _
    $region53: #{forward.1} parent=1 // pred_fallthru
      _
    // Predicated region
    $region54: #{forward.1} parent=1 // pred_check
      _
    $region55: #{forward.1} parent=1 // pred_check_branch
      %112 = sbr.rel (0) target = $region57
    $region56: #{forward.1} parent=1 // pred_region
      _
    $region57: #{forward.1} parent=1 // pred_fallthru
      _
    // Predicated region
    $region58: #{forward.1} parent=1 // pred_check
      _
    $region59: #{forward.1} parent=1 // pred_check_branch
      %114 = sbr.rel (0) target = $region61
    $region60: #{forward.1} parent=1 // pred_region
      _
    $region61: #{forward.1} parent=1 // pred_fallthru
      _
    // Predicated region
    $region62: #{forward.1} parent=1 // pred_check
      _
    $region63: #{forward.1} parent=1 // pred_check_branch
      %116 = sbr.rel (0) target = $region65
    $region64: #{forward.1} parent=1 // pred_region
      _
    $region65: #{forward.1} parent=1 // pred_fallthru
      _
    // Predicated region
    $region66: #{forward.1} parent=1 // pred_check
      _
    $region67: #{forward.1} parent=1 // pred_check_branch
      %118 = sbr.rel (0) target = $region69
    $region68: #{forward.1} parent=1 // pred_region
      _
    $region69: #{forward.1} parent=1 // pred_fallthru
      _
    // Predicated region
    $region70: #{forward.1} parent=1 // pred_check
      _
    $region71: #{forward.1} parent=1 // pred_check_branch
      %120 = sbr.rel (0) target = $region73
    $region72: #{forward.1} parent=1 // pred_region
      _
    $region73: #{forward.1} parent=1 // pred_fallthru
      _
    // Predicated region
    $region74: #{forward.1} parent=1 // pred_check
      _
    $region75: #{forward.1} parent=1 // pred_check_branch
      %122 = sbr.rel (0) target = $region77
    $region76: #{forward.1} parent=1 // pred_region
      _
    $region77: #{forward.1} parent=1 // pred_fallthru
      _
    // Predicated region
    $region78: #{forward.1} parent=1 // pred_check
      _
    $region79: #{forward.1} parent=1 // pred_check_branch
      %124 = sbr.rel (0) target = $region81
    $region80: #{forward.1} parent=1 // pred_region
      _
    $region81: #{forward.1} parent=1 // pred_fallthru
      _
    // Predicated region
    $region82: #{forward.1} parent=1 // pred_check
      _
    $region83: #{forward.1} parent=1 // pred_check_branch
      %126 = sbr.rel (0) target = $region85
    $region84: #{forward.1} parent=1 // pred_region
      _
    $region85: #{forward.1} parent=1 // pred_fallthru
      _
    // Predicated region
    $region86: #{forward.1} parent=1 // pred_check
      _
    $region87: #{forward.1} parent=1 // pred_check_branch
      %128 = sbr.rel (0) target = $region89
    $region88: #{forward.1} parent=1 // pred_region
      _
    $region89: #{forward.1} parent=1 // pred_fallthru
      _
    // Predicated region
    $region90: #{forward.1} parent=1 // pred_check
      _
    $region91: #{forward.1} parent=1 // pred_check_branch
      %130 = sbr.rel (0) target = $region93
    $region92: #{forward.1} parent=1 // pred_region
      _
    $region93: #{forward.1} parent=1 // pred_fallthru
      _
    // Predicated region
    $region94: #{forward.1} parent=1 // pred_check
      _
    $region95: #{forward.1} parent=1 // pred_check_branch
      %132 = sbr.rel (0) target = $region97
    $region96: #{forward.1} parent=1 // pred_region
      _
    $region97: #{forward.1} parent=1 // pred_fallthru
      _
    // Predicated region
    $region98: #{forward.1} parent=1 // pred_check
      _
    $region99: #{forward.1} parent=1 // pred_check_branch
      %134 = sbr.rel (0) target = $region101
    $region100: #{forward.1} parent=1 // pred_region
      _
    $region101: #{forward.1} parent=1 // pred_fallthru
      _
    // Predicated region
    $region102: #{forward.1} parent=1 // pred_check
      _
    $region103: #{forward.1} parent=1 // pred_check_branch
      %136 = sbr.rel (0) target = $region105
    $region104: #{forward.1} parent=1 // pred_region
      _
    $region105: #{forward.1} parent=1 // pred_fallthru
      _
    // Predicated region
    $region106: #{forward.1} parent=1 // pred_check
      _
    $region107: #{forward.1} parent=1 // pred_check_branch
      %138 = sbr.rel (0) target = $region109
    $region108: #{forward.1} parent=1 // pred_region
      _
    $region109: #{forward.1} parent=1 // pred_fallthru
      _
    // Predicated region
    $region110: #{forward.1} parent=1 // pred_check
      _
    $region111: #{forward.1} parent=1 // pred_check_branch
      %140 = sbr.rel (0) target = $region113
    $region112: #{forward.1} parent=1 // pred_region
      _
    $region113: #{forward.1} parent=1 // pred_fallthru
      _
    // Predicated region
    $region114: #{forward.1} parent=1 // pred_check
      _
    $region115: #{forward.1} parent=1 // pred_check_branch
      %142 = sbr.rel (0) target = $region117
    $region116: #{forward.1} parent=1 // pred_region
      %s144 = ssub.s32 16, 16
      %145 = vsyncadd [#allocation7], %s144
      %s147 = sshll.u32 [#allocation6], 4
      %s148 = int_to_ptr.vmem [resolvable:$true] %s147
      %150 = dma.hbm_to_vmem [thread:$0]  %s57, 16, %s148, [#allocation7]
    $region117: #{forward.1} parent=1 // pred_fallthru
      _
    // Predicated region
    $region118: #{forward.1} parent=1 // pred_check
      _
    $region119: #{forward.1} parent=1 // pred_check_branch
      %152 = sbr.rel (0) target = $region121
    $region120: #{forward.1} parent=1 // pred_region
      _
    $region121: #{forward.1} parent=1 // pred_fallthru
      _
    // Predicated region
    $region122: #{forward.1} parent=1 // pred_check
      _
    $region123: #{forward.1} parent=1 // pred_check_branch
      %154 = sbr.rel (0) target = $region125
    $region124: #{forward.1} parent=1 // pred_region
      _
    $region125: #{forward.1} parent=1 // pred_fallthru
      _
    // Predicated region
    $region126: #{forward.1} parent=1 // pred_check
      _
    $region127: #{forward.1} parent=1 // pred_check_branch
      %156 = sbr.rel (0) target = $region129
    $region128: #{forward.1} parent=1 // pred_region
      _
    $region129: #{forward.1} parent=1 // pred_fallthru
      _
    // Predicated region
    $region130: #{forward.1} parent=1 // pred_check
      _
    $region131: #{forward.1} parent=1 // pred_check_branch
      %158 = sbr.rel (0) target = $region133
    $region132: #{forward.1} parent=1 // pred_region
      _
    $region133: #{forward.1} parent=1 // pred_fallthru
      _
    // Predicated region
    $region134: #{forward.1} parent=1 // pred_check
      _
    $region135: #{forward.1} parent=1 // pred_check_branch
      %160 = sbr.rel (0) target = $region137
    $region136: #{forward.1} parent=1 // pred_region
      %s162 = ssub.s32 16, 16
      %163 = vsyncadd [#allocation10], %s162
      %s165 = sshll.u32 [#allocation9], 4
      %s166 = int_to_ptr.vmem [resolvable:$true] %s165
      %168 = dma.hbm_to_vmem [thread:$0]  %s67, 16, %s166, [#allocation10]
    $region137: #{forward.1} parent=1 // pred_fallthru
      _
    // Predicated region
    $region138: #{forward.1} parent=1 // pred_check
      _
    $region139: #{forward.1} parent=1 // pred_check_branch
      %170 = sbr.rel (0) target = $region141
    $region140: #{forward.1} parent=1 // pred_region
      _
    $region141: #{forward.1} parent=1 // pred_fallthru
      _
    // Predicated region
    $region142: #{forward.1} parent=1 // pred_check
      _
    $region143: #{forward.1} parent=1 // pred_check_branch
      %172 = sbr.rel (0) target = $region145
    $region144: #{forward.1} parent=1 // pred_region
      _
    $region145: #{forward.1} parent=1 // pred_fallthru
      _
    // Predicated region
    $region146: #{forward.1} parent=1 // pred_check
      _
    $region147: #{forward.1} parent=1 // pred_check_branch
      %174 = sbr.rel (0) target = $region149
    $region148: #{forward.1} parent=1 // pred_region
      _
    $region149: #{forward.1} parent=1 // pred_fallthru
      _
    // Predicated region
    $region150: #{forward.1} parent=1 // pred_check
      _
    $region151: #{forward.1} parent=1 // pred_check_branch
      %176 = sbr.rel (0) target = $region153
    $region152: #{forward.1} parent=1 // pred_region
      _
    $region153: #{forward.1} parent=1 // pred_fallthru
      _
    // Predicated region
    $region154: #{forward.1} parent=1 // pred_check
      _
    $region155: #{forward.1} parent=1 // pred_check_branch
      %178 = sbr.rel (0) target = $region157
    $region156: #{forward.1} parent=1 // pred_region
      %179 = dma.done [#allocation7], 16
    $region157: #{forward.1} parent=1 // pred_fallthru
      _
    // Predicated region
    $region158: #{forward.1} parent=1 // pred_check
      _
    $region159: #{forward.1} parent=1 // pred_check_branch
      %181 = sbr.rel (0) target = $region161
    $region160: #{forward.1} parent=1 // pred_region
      %182 = dma.done [#allocation10], 16
    $region161: #{forward.1} parent=1 // pred_fallthru
      _
    %v184 = vld [vmem:[%s1] sm:$0x3]
    %v185 = vld [vmem:[%s9] sm:$0xf]
    %v186 = vld [vmem:[%s9 + $0x4] sm:$0xf]
    %v187 = vld [vmem:[%s9 + $0x8] sm:$0xf]
    %v188 = vld [vmem:[%s9 + $0xc] sm:$0xf]
    %v189 = vpack.c.bf16 %v184, %v184
    %v190 = vld [vmem:[%s11] sm:$0x1]
    %v192 = vlaneseq
    %v193 = vshrl.u32 %v192, 7
    %v194 = vsub.s32 0, %v193
    %v195 = vrot.slane %v190, %v194
    %v201 = vunpack.c.l.b16 %v185
    %v202 = vunpack.c.l.b16 %v186
    %v203 = vunpack.c.l.b16 %v187
    %v204 = vunpack.c.l.b16 %v188
    %v205 = vpack.c.b16 %v202, %v201
    %v206 = vpack.c.b16 %v204, %v203
    %vm209 = vcmask 261120
    %v211 = vsel %vm209, %v189, 0
    %213 = vmatprep.subr.bf16.mxu0 0
    %214 = vmatpush1.bf16.msra.mxu0 0
    %215 = vmatprep.subr.bf16.mxu0 0
    %216 = vmatpush1.bf16.msra.mxu0 0
    %217 = vmatprep.subr.bf16.mxu0 0
    %218 = vmatpush1.bf16.msra.mxu0 0
    %219 = vmatprep.subr.bf16.mxu0 0
    %220 = vmatpush1.bf16.msra.mxu0 0
    %221 = vmatprep.subr.bf16.mxu0 0
    %222 = vmatpush1.bf16.msra.mxu0 0
    %223 = vmatprep.subr.bf16.mxu0 0
    %224 = vmatpush1.bf16.msra.mxu0 0
    %225 = vmatprep.subr.bf16.mxu0 0
    %226 = vmatpush1.bf16.msra.mxu0 %v206
    %227 = vmatprep.subr.bf16.mxu0 0
    %228 = vmatpush1.bf16.msra.mxu0 %v205
    %229 = vmatprep.subr.bf16.mxu0 0
    %230 = vmatpush2.bf16.msra.mxu0 0
    %231 = vmatprep.subr.bf16.mxu0 0
    %232 = vmatpush2.bf16.msra.mxu0 0
    %233 = vmatprep.subr.bf16.mxu0 0
    %234 = vmatpush2.bf16.msra.mxu0 0
    %235 = vmatprep.subr.bf16.mxu0 0
    %236 = vmatpush2.bf16.msra.mxu0 0
    %237 = vmatprep.subr.bf16.mxu0 0
    %238 = vmatpush2.bf16.msra.mxu0 0
    %239 = vmatprep.subr.bf16.mxu0 0
    %240 = vmatpush2.bf16.msra.mxu0 0
    %241 = vmatprep.subr.bf16.mxu0 0
    %242 = vmatpush2.bf16.msra.mxu0 0
    %243 = vmatprep.subr.bf16.mxu0 0
    %244 = vmatpush2.bf16.msra.mxu0 0
    %245 = vmatprep.mubr.bf16.mxu0 0
    %246 = vmatmul.mubr.bf16.gmra.mxu0 %v211
    %v247 = vpop.f32.mrf.mxu0
    %v248 = vadd.f32 %v195, %v247
    %v249 = vpop.f32.mrf.mxu0
    %v250 = vpop.f32.mrf.mxu0
    %v251 = vpop.f32.mrf.mxu0
    %252 = vdwg.mxu0
    %vm253 = vcmp.gt.f32.partialorder %v248, 20.0
    %v254 = vmin.f32 %v248, 20.0
    %v255 = vmul.f32 %v254, 1.442695
    %v256 = vpow.pop %v255
    %v257 = vadd.f32 %v256, 1.0
    %v258 = vlog2.pop %v257
    %v259 = vmul.f32 %v258, 0.6931472
    %v260 = vsel %vm253, %v248, %v259
    %v261 = vtanh.pop %v260
    %v262 = vmul.f32 %v248, %v261
    %v263 = vld [vmem:[%s13] sm:$0xf]
    %v264 = vld [vmem:[%s13 + $0x4] sm:$0xf]
    %v265 = vld [vmem:[%s13 + $0x8] sm:$0xf]
    %v266 = vld [vmem:[%s13 + $0xc] sm:$0xf]
    %v267 = vld [vmem:[%s13 + $0x10] sm:$0xf]
    %v268 = vld [vmem:[%s13 + $0x14] sm:$0xf]
    %v269 = vld [vmem:[%s13 + $0x18] sm:$0xf]
    %v270 = vld [vmem:[%s13 + $0x1c] sm:$0xf]
    %v271 = vpack.c.bf16 %v262, %v262
    %v272 = vld [vmem:[%s15] sm:$0x1]
    %v274 = vlaneseq
    %v275 = vshrl.u32 %v274, 7
    %v276 = vsub.s32 0, %v275
    %v277 = vrot.slane %v272, %v276
    %v287 = vunpack.c.l.b16 %v263
    %v288 = vunpack.c.l.b16 %v264
    %v289 = vunpack.c.l.b16 %v265
    %v290 = vunpack.c.l.b16 %v266
    %v291 = vunpack.c.l.b16 %v267
    %v292 = vunpack.c.l.b16 %v268
    %v293 = vunpack.c.l.b16 %v269
    %v294 = vunpack.c.l.b16 %v270
    %v295 = vpack.c.b16 %v288, %v287
    %v296 = vpack.c.b16 %v290, %v289
    %v297 = vpack.c.b16 %v292, %v291
    %v298 = vpack.c.b16 %v294, %v293
    %vm303 = vcmask 523264
    %v305 = vsel %vm303, %v271, 0
    %307 = vmatprep.subr.bf16.mxu0 0
    %308 = vmatpush1.bf16.msra.mxu0 0
    %309 = vmatprep.subr.bf16.mxu0 0
    %310 = vmatpush1.bf16.msra.mxu0 0
    %311 = vmatprep.subr.bf16.mxu0 0
    %312 = vmatpush1.bf16.msra.mxu0 0
    %313 = vmatprep.subr.bf16.mxu0 0
    %314 = vmatpush1.bf16.msra.mxu0 0
    %315 = vmatprep.subr.bf16.mxu0 0
    %316 = vmatpush1.bf16.msra.mxu0 %v298
    %317 = vmatprep.subr.bf16.mxu0 0
    %318 = vmatpush1.bf16.msra.mxu0 %v297
    %319 = vmatprep.subr.bf16.mxu0 0
    %320 = vmatpush1.bf16.msra.mxu0 %v296
    %321 = vmatprep.subr.bf16.mxu0 0
    %322 = vmatpush1.bf16.msra.mxu0 %v295
    %323 = vmatprep.subr.bf16.mxu0 0
    %324 = vmatpush2.bf16.msra.mxu0 0
    %325 = vmatprep.subr.bf16.mxu0 0
    %326 = vmatpush2.bf16.msra.mxu0 0
    %327 = vmatprep.subr.bf16.mxu0 0
    %328 = vmatpush2.bf16.msra.mxu0 0
    %329 = vmatprep.subr.bf16.mxu0 0
    %330 = vmatpush2.bf16.msra.mxu0 0
    %331 = vmatprep.subr.bf16.mxu0 0
    %332 = vmatpush2.bf16.msra.mxu0 0
    %333 = vmatprep.subr.bf16.mxu0 0
    %334 = vmatpush2.bf16.msra.mxu0 0
    %335 = vmatprep.subr.bf16.mxu0 0
    %336 = vmatpush2.bf16.msra.mxu0 0
    %337 = vmatprep.subr.bf16.mxu0 0
    %338 = vmatpush2.bf16.msra.mxu0 0
    %339 = vmatprep.mubr.bf16.mxu0 0
    %340 = vmatmul.mubr.bf16.gmra.mxu0 %v305
    %v341 = vpop.f32.mrf.mxu0
    %v342 = vadd.f32 %v277, %v341
    %v343 = vpop.f32.mrf.mxu0
    %v344 = vpop.f32.mrf.mxu0
    %v345 = vpop.f32.mrf.mxu0
    %346 = vdwg.mxu0
    %v347 = vld [vmem:[%s3] sm:$0xff]
    %v348 = vld [vmem:[%s17] sm:$0xf]
    %v349 = vpack.c.bf16 %v347, %v347
    %v350 = vld [vmem:[%s19] sm:$0x1]
    %v352 = vlaneseq
    %v353 = vshrl.u32 %v352, 7
    %v354 = vsub.s32 0, %v353
    %v355 = vrot.slane %v350, %v354
    %vm357 = vcmask 64512
    %v359 = vsel %vm357, %v349, 0
    %vm361 = vcmask 1043456
    %v363 = vsel %vm361, %v348, 0
    %365 = vmatprep.subr.bf16.mxu0 0
    %366 = vmatpush1.bf16.msra.mxu0 0
    %367 = vmatprep.subr.bf16.mxu0 0
    %368 = vmatpush1.bf16.msra.mxu0 0
    %369 = vmatprep.subr.bf16.mxu0 0
    %370 = vmatpush1.bf16.msra.mxu0 0
    %371 = vmatprep.subr.bf16.mxu0 0
    %372 = vmatpush1.bf16.msra.mxu0 0
    %373 = vmatprep.subr.bf16.mxu0 0
    %374 = vmatpush1.bf16.msra.mxu0 0
    %375 = vmatprep.subr.bf16.mxu0 0
    %376 = vmatpush1.bf16.msra.mxu0 0
    %377 = vmatprep.subr.bf16.mxu0 0
    %378 = vmatpush1.bf16.msra.mxu0 0
    %379 = vmatprep.subr.bf16.mxu0 0
    %380 = vmatpush1.bf16.msra.mxu0 %v363
    %381 = vmatprep.subr.bf16.mxu0 0
    %382 = vmatpush2.bf16.msra.mxu0 0
    %383 = vmatprep.subr.bf16.mxu0 0
    %384 = vmatpush2.bf16.msra.mxu0 0
    %385 = vmatprep.subr.bf16.mxu0 0
    %386 = vmatpush2.bf16.msra.mxu0 0
    %387 = vmatprep.subr.bf16.mxu0 0
    %388 = vmatpush2.bf16.msra.mxu0 0
    %389 = vmatprep.subr.bf16.mxu0 0
    %390 = vmatpush2.bf16.msra.mxu0 0
    %391 = vmatprep.subr.bf16.mxu0 0
    %392 = vmatpush2.bf16.msra.mxu0 0
    %393 = vmatprep.subr.bf16.mxu0 0
    %394 = vmatpush2.bf16.msra.mxu0 0
    %395 = vmatprep.subr.bf16.mxu0 0
    %396 = vmatpush2.bf16.msra.mxu0 0
    %397 = vmatprep.mubr.bf16.mxu0 0
    %398 = vmatmul.mubr.bf16.gmra.mxu0 %v359
    %v399 = vpop.f32.mrf.mxu0
    %v400 = vadd.f32 %v355, %v399
    %v401 = vpop.f32.mrf.mxu0
    %v402 = vpop.f32.mrf.mxu0
    %v403 = vpop.f32.mrf.mxu0
    %404 = vdwg.mxu0
    %v405 = vld [vmem:[%s5] sm:$0xff]
    %v406 = vld [vmem:[%s5 + $0x8] sm:$0x3f]
    %v407 = vld [vmem:[%s21] sm:$0x3]
    %v408 = vpack.c.bf16 %v406, %v405
    %v409 = vld [vmem:[%s23] sm:$0x1]
    %v411 = vlaneseq
    %v412 = vshrl.u32 %v411, 7
    %v413 = vsub.s32 0, %v412
    %v414 = vrot.slane %v409, %v413
    %vm416 = vcmask 31744
    %v418 = vsel %vm416, %v408, 0
    %vm420 = vcmask 1041408
    %v422 = vsel %vm420, %v407, 0
    %424 = vmatprep.subr.bf16.mxu0 0
    %425 = vmatpush1.bf16.msra.mxu0 0
    %426 = vmatprep.subr.bf16.mxu0 0
    %427 = vmatpush1.bf16.msra.mxu0 0
    %428 = vmatprep.subr.bf16.mxu0 0
    %429 = vmatpush1.bf16.msra.mxu0 0
    %430 = vmatprep.subr.bf16.mxu0 0
    %431 = vmatpush1.bf16.msra.mxu0 0
    %432 = vmatprep.subr.bf16.mxu0 0
    %433 = vmatpush1.bf16.msra.mxu0 0
    %434 = vmatprep.subr.bf16.mxu0 0
    %435 = vmatpush1.bf16.msra.mxu0 0
    %436 = vmatprep.subr.bf16.mxu0 0
    %437 = vmatpush1.bf16.msra.mxu0 0
    %438 = vmatprep.subr.bf16.mxu0 0
    %439 = vmatpush1.bf16.msra.mxu0 %v422
    %440 = vmatprep.subr.bf16.mxu0 0
    %441 = vmatpush2.bf16.msra.mxu0 0
    %442 = vmatprep.subr.bf16.mxu0 0
    %443 = vmatpush2.bf16.msra.mxu0 0
    %444 = vmatprep.subr.bf16.mxu0 0
    %445 = vmatpush2.bf16.msra.mxu0 0
    %446 = vmatprep.subr.bf16.mxu0 0
    %447 = vmatpush2.bf16.msra.mxu0 0
    %448 = vmatprep.subr.bf16.mxu0 0
    %449 = vmatpush2.bf16.msra.mxu0 0
    %450 = vmatprep.subr.bf16.mxu0 0
    %451 = vmatpush2.bf16.msra.mxu0 0
    %452 = vmatprep.subr.bf16.mxu0 0
    %453 = vmatpush2.bf16.msra.mxu0 0
    %454 = vmatprep.subr.bf16.mxu0 0
    %455 = vmatpush2.bf16.msra.mxu0 0
    %456 = vmatprep.mubr.bf16.mxu0 0
    %457 = vmatmul.mubr.bf16.gmra.mxu0 %v418
    %v458 = vpop.f32.mrf.mxu0
    %v459 = vadd.f32 %v414, %v458
    %v460 = vpop.f32.mrf.mxu0
    %v461 = vpop.f32.mrf.mxu0
    %v462 = vadd.f32 %v414, %v461
    %v463 = vpop.f32.mrf.mxu0
    %464 = vdwg.mxu0
    %v465 = vld [vmem:[%s7] sm:$0xf]
    %v466 = vld [vmem:[%s7] sm:$0x7f]
    %v467 = vadd.f32 %v400, %v465
    %v468 = vadd.f32 %v459, %v466
    %vm469 = vcmask 253952
    %470 = vst.msk [vmem:[#allocation2] sm:$0x1] %vm469, %v342
    %471 = vst.msk [vmem:[#allocation2 + $0x1] sm:$0x1] %vm469, %v467
    %472 = vst.msk [vmem:[#allocation2 + $0x2] sm:$0x1] %vm469, %v468
    %vm473 = vcmask 254977
    %474 = vst.msk [vmem:[#allocation2 + $0x2] sm:$0x2] %vm473, %v467
    %475 = vst.msk [vmem:[#allocation2 + $0x3] sm:$0x2] %vm473, %v468
    %vm476 = vcmask 256002
    %477 = vst.msk [vmem:[#allocation2 + $0x3] sm:$0x4] %vm476, %v467
    %478 = vst.msk [vmem:[#allocation2 + $0x4] sm:$0x4] %vm476, %v468
    %vm479 = vcmask 257027
    %480 = vst.msk [vmem:[#allocation2 + $0x4] sm:$0x8] %vm479, %v467
    %vm481 = vcmask 260099
    %482 = vst.msk [vmem:[#allocation3 + $0x5] sm:$0x78] %vm481, %v468
    %v484 = vrot.slane %v465, 4
    %v486 = vadd.f32 %v400, %v484
    %v488 = vrot.slane %v466, 1
    %v490 = vadd.f32 %v459, %v488
    %v491 = vadd.f32 %v462, %v488
    %492 = vst.msk [vmem:[#allocation2 + $0x7] sm:$0x2] %vm473, %v342
    %vm493 = vcmask 258052
    %494 = vst.msk [vmem:[#allocation2 + $0x5] sm:$0x10] %vm493, %v486
    %vm495 = vcmask 261127
    %496 = vst.msk [vmem:[#allocation2 + $0x3] sm:$0x80] %vm495, %v490
    %vm497 = vcmask 259077
    %498 = vst.msk [vmem:[#allocation2 + $0x6] sm:$0x20] %vm497, %v486
    %499 = vst.msk [vmem:[#allocation2 + $0xc] sm:$0x1] %vm469, %v491
    %vm500 = vcmask 260102
    %501 = vst.msk [vmem:[#allocation2 + $0x7] sm:$0x40] %vm500, %v486
    %502 = vst.msk [vmem:[#allocation2 + $0xd] sm:$0x2] %vm473, %v491
    %503 = vst.msk [vmem:[#allocation2 + $0x8] sm:$0x80] %vm495, %v486
    %vm504 = vcmask 259074
    %505 = vst.msk [vmem:[#allocation3 + $0x12] sm:$0x3c] %vm504, %v491
    %v506 = vld [vmem:[#allocation2] sm:$0xff]
    %v507 = vld [vmem:[#allocation2 + $0x8] sm:$0xff]
    %v508 = vld [vmem:[%s25] sm:$0xf]
    %v509 = vld [vmem:[%s25 + $0x4] sm:$0xf]
    %v510 = vld [vmem:[%s25 + $0x8] sm:$0xf]
    %v511 = vld [vmem:[%s25 + $0xc] sm:$0xf]
    %v512 = vpack.c.bf16 %v507, %v506
    %v513 = vld [vmem:[%s27] sm:$0x1]
    %v515 = vlaneseq
    %v516 = vshrl.u32 %v515, 7
    %v517 = vsub.s32 0, %v516
    %v518 = vrot.slane %v513, %v517
    %v524 = vunpack.c.l.b16 %v508
    %v525 = vunpack.c.l.b16 %v509
    %v526 = vunpack.c.l.b16 %v510
    %v527 = vunpack.c.l.b16 %v511
    %v528 = vpack.c.b16 %v525, %v524
    %v529 = vpack.c.b16 %v527, %v526
    %v533 = vsel %vm209, %v512, 0
    %535 = vmatprep.subr.bf16.mxu0 0
    %536 = vmatpush1.bf16.msra.mxu0 0
    %537 = vmatprep.subr.bf16.mxu0 0
    %538 = vmatpush1.bf16.msra.mxu0 0
    %539 = vmatprep.subr.bf16.mxu0 0
    %540 = vmatpush1.bf16.msra.mxu0 0
    %541 = vmatprep.subr.bf16.mxu0 0
    %542 = vmatpush1.bf16.msra.mxu0 0
    %543 = vmatprep.subr.bf16.mxu0 0
    %544 = vmatpush1.bf16.msra.mxu0 0
    %545 = vmatprep.subr.bf16.mxu0 0
    %546 = vmatpush1.bf16.msra.mxu0 0
    %547 = vmatprep.subr.bf16.mxu0 0
    %548 = vmatpush1.bf16.msra.mxu0 %v529
    %549 = vmatprep.subr.bf16.mxu0 0
    %550 = vmatpush1.bf16.msra.mxu0 %v528
    %551 = vmatprep.subr.bf16.mxu0 0
    %552 = vmatpush2.bf16.msra.mxu0 0
    %553 = vmatprep.subr.bf16.mxu0 0
    %554 = vmatpush2.bf16.msra.mxu0 0
    %555 = vmatprep.subr.bf16.mxu0 0
    %556 = vmatpush2.bf16.msra.mxu0 0
    %557 = vmatprep.subr.bf16.mxu0 0
    %558 = vmatpush2.bf16.msra.mxu0 0
    %559 = vmatprep.subr.bf16.mxu0 0
    %560 = vmatpush2.bf16.msra.mxu0 0
    %561 = vmatprep.subr.bf16.mxu0 0
    %562 = vmatpush2.bf16.msra.mxu0 0
    %563 = vmatprep.subr.bf16.mxu0 0
    %564 = vmatpush2.bf16.msra.mxu0 0
    %565 = vmatprep.subr.bf16.mxu0 0
    %566 = vmatpush2.bf16.msra.mxu0 0
    %567 = vmatprep.mubr.bf16.mxu0 0
    %568 = vmatmul.mubr.bf16.gmra.mxu0 %v533
    %v569 = vpop.f32.mrf.mxu0
    %v570 = vadd.f32 %v518, %v569
    %v571 = vpop.f32.mrf.mxu0
    %v572 = vpop.f32.mrf.mxu0
    %v573 = vadd.f32 %v518, %v572
    %v574 = vpop.f32.mrf.mxu0
    %575 = vdwg.mxu0
    %v576 = vand.u32 2147483647, %v570
    %v577 = vand.u32 2147483647, %v573
    %v578 = vsub.f32 0.0, %v576
    %v579 = vsub.f32 0.0, %v577
    %v580 = vmul.f32 %v578, 1.442695
    %v581 = vpow.pop %v580
    %v582 = vmul.f32 %v579, 1.442695
    %v583 = vpow.pop %v582
    %v584 = vadd.f32 %v581, 1.0
    %v585 = vadd.f32 %v583, 1.0
    %v586 = vrcp.pop %v584
    %v587 = vmul.f32 1.0, %v586
    %v588 = vrcp.pop %v585
    %v589 = vmul.f32 1.0, %v588
    %vm590 = vcmp.ge.f32.partialorder %v570, 0.0
    %vm591 = vcmp.ge.f32.partialorder %v573, 0.0
    %v592 = vmul.f32 %v581, %v587
    %v593 = vmul.f32 %v583, %v589
    %v594 = vsel %vm590, %v587, %v592
    %v595 = vsel %vm591, %v589, %v593
    %v596 = vmul.f32 %v570, %v594
    %v597 = vmul.f32 %v573, %v595
    %v598 = vld [vmem:[%s29] sm:$0xf]
    %v599 = vld [vmem:[%s29 + $0x4] sm:$0xf]
    %v600 = vld [vmem:[%s29 + $0x8] sm:$0xf]
    %v601 = vld [vmem:[%s29 + $0xc] sm:$0xf]
    %v602 = vld [vmem:[%s31] sm:$0x1]
    %v604 = vlaneseq
    %v605 = vshrl.u32 %v604, 7
    %v606 = vsub.s32 0, %v605
    %v607 = vrot.slane %v602, %v606
    %v613 = vunpack.c.l.b16 %v598
    %v614 = vunpack.c.l.b16 %v599
    %v615 = vunpack.c.l.b16 %v600
    %v616 = vunpack.c.l.b16 %v601
    %v617 = vpack.c.b16 %v614, %v613
    %v618 = vpack.c.b16 %v616, %v615
    %621 = vmatprep.subr.bf16.mxu0 0
    %622 = vmatpush1.bf16.msra.mxu0 0
    %623 = vmatprep.subr.bf16.mxu0 0
    %624 = vmatpush1.bf16.msra.mxu0 0
    %625 = vmatprep.subr.bf16.mxu0 0
    %626 = vmatpush1.bf16.msra.mxu0 0
    %627 = vmatprep.subr.bf16.mxu0 0
    %628 = vmatpush1.bf16.msra.mxu0 0
    %629 = vmatprep.subr.bf16.mxu0 0
    %630 = vmatpush1.bf16.msra.mxu0 0
    %631 = vmatprep.subr.bf16.mxu0 0
    %632 = vmatpush1.bf16.msra.mxu0 0
    %633 = vmatprep.subr.bf16.mxu0 0
    %634 = vmatpush1.bf16.msra.mxu0 %v618
    %635 = vmatprep.subr.bf16.mxu0 0
    %636 = vmatpush1.bf16.msra.mxu0 %v617
    %637 = vmatprep.subr.bf16.mxu0 0
    %638 = vmatpush2.bf16.msra.mxu0 0
    %639 = vmatprep.subr.bf16.mxu0 0
    %640 = vmatpush2.bf16.msra.mxu0 0
    %641 = vmatprep.subr.bf16.mxu0 0
    %642 = vmatpush2.bf16.msra.mxu0 0
    %643 = vmatprep.subr.bf16.mxu0 0
    %644 = vmatpush2.bf16.msra.mxu0 0
    %645 = vmatprep.subr.bf16.mxu0 0
    %646 = vmatpush2.bf16.msra.mxu0 0
    %647 = vmatprep.subr.bf16.mxu0 0
    %648 = vmatpush2.bf16.msra.mxu0 0
    %649 = vmatprep.subr.bf16.mxu0 0
    %650 = vmatpush2.bf16.msra.mxu0 0
    %651 = vmatprep.subr.bf16.mxu0 0
    %652 = vmatpush2.bf16.msra.mxu0 0
    %653 = vmatprep.mubr.bf16.mxu0 0
    %654 = vmatmul.mubr.bf16.gmra.mxu0 %v533
    %v655 = vpop.f32.mrf.mxu0
    %v656 = vadd.f32 %v607, %v655
    %v657 = vpop.f32.mrf.mxu0
    %v658 = vpop.f32.mrf.mxu0
    %v659 = vadd.f32 %v607, %v658
    %v660 = vpop.f32.mrf.mxu0
    %661 = vdwg.mxu0
    %v662 = vld [vmem:[%s33] sm:$0xf]
    %v663 = vld [vmem:[%s33 + $0x4] sm:$0xf]
    %v664 = vld [vmem:[%s33 + $0x8] sm:$0xf]
    %v665 = vld [vmem:[%s33 + $0xc] sm:$0xf]
    %v666 = vld [vmem:[%s33 + $0x10] sm:$0xf]
    %v667 = vld [vmem:[%s33 + $0x14] sm:$0xf]
    %v668 = vld [vmem:[%s33 + $0x18] sm:$0xf]
    %v669 = vld [vmem:[%s33 + $0x1c] sm:$0xf]
    %v670 = vpack.c.bf16 %v597, %v596
    %v671 = vld [vmem:[%s35] sm:$0x1]
    %v673 = vlaneseq
    %v674 = vshrl.u32 %v673, 7
    %v675 = vsub.s32 0, %v674
    %v676 = vrot.slane %v671, %v675
    %v686 = vunpack.c.l.b16 %v662
    %v687 = vunpack.c.l.b16 %v663
    %v688 = vunpack.c.l.b16 %v664
    %v689 = vunpack.c.l.b16 %v665
    %v690 = vunpack.c.l.b16 %v666
    %v691 = vunpack.c.l.b16 %v667
    %v692 = vunpack.c.l.b16 %v668
    %v693 = vunpack.c.l.b16 %v669
    %v694 = vpack.c.b16 %v687, %v686
    %v695 = vpack.c.b16 %v689, %v688
    %v696 = vpack.c.b16 %v691, %v690
    %v697 = vpack.c.b16 %v693, %v692
    %v703 = vsel %vm303, %v670, 0
    %705 = vmatprep.subr.bf16.mxu0 0
    %706 = vmatpush1.bf16.msra.mxu0 0
    %707 = vmatprep.subr.bf16.mxu0 0
    %708 = vmatpush1.bf16.msra.mxu0 0
    %709 = vmatprep.subr.bf16.mxu0 0
    %710 = vmatpush1.bf16.msra.mxu0 0
    %711 = vmatprep.subr.bf16.mxu0 0
    %712 = vmatpush1.bf16.msra.mxu0 0
    %713 = vmatprep.subr.bf16.mxu0 0
    %714 = vmatpush1.bf16.msra.mxu0 %v697
    %715 = vmatprep.subr.bf16.mxu0 0
    %716 = vmatpush1.bf16.msra.mxu0 %v696
    %717 = vmatprep.subr.bf16.mxu0 0
    %718 = vmatpush1.bf16.msra.mxu0 %v695
    %719 = vmatprep.subr.bf16.mxu0 0
    %720 = vmatpush1.bf16.msra.mxu0 %v694
    %721 = vmatprep.subr.bf16.mxu0 0
    %722 = vmatpush2.bf16.msra.mxu0 0
    %723 = vmatprep.subr.bf16.mxu0 0
    %724 = vmatpush2.bf16.msra.mxu0 0
    %725 = vmatprep.subr.bf16.mxu0 0
    %726 = vmatpush2.bf16.msra.mxu0 0
    %727 = vmatprep.subr.bf16.mxu0 0
    %728 = vmatpush2.bf16.msra.mxu0 0
    %729 = vmatprep.subr.bf16.mxu0 0
    %730 = vmatpush2.bf16.msra.mxu0 0
    %731 = vmatprep.subr.bf16.mxu0 0
    %732 = vmatpush2.bf16.msra.mxu0 0
    %733 = vmatprep.subr.bf16.mxu0 0
    %734 = vmatpush2.bf16.msra.mxu0 0
    %735 = vmatprep.subr.bf16.mxu0 0
    %736 = vmatpush2.bf16.msra.mxu0 0
    %737 = vmatprep.mubr.bf16.mxu0 0
    %738 = vmatmul.mubr.bf16.gmra.mxu0 %v703
    %v739 = vpop.f32.mrf.mxu0
    %v740 = vadd.f32 %v676, %v739
    %v741 = vpop.f32.mrf.mxu0
    %v742 = vpop.f32.mrf.mxu0
    %v743 = vadd.f32 %v676, %v742
    %v744 = vpop.f32.mrf.mxu0
    %745 = vdwg.mxu0
    %vm746 = vcmp.gt.f32.partialorder %v740, 20.0
    %vm747 = vcmp.gt.f32.partialorder %v743, 20.0
    %v748 = vmin.f32 %v740, 20.0
    %v749 = vmin.f32 %v743, 20.0
    %v750 = vmul.f32 %v748, 1.442695
    %v751 = vpow.pop %v750
    %v752 = vmul.f32 %v749, 1.442695
    %v753 = vpow.pop %v752
    %v754 = vadd.f32 %v751, 1.0
    %v755 = vadd.f32 %v753, 1.0
    %v756 = vlog2.pop %v754
    %v757 = vmul.f32 %v756, 0.6931472
    %v758 = vlog2.pop %v755
    %v759 = vmul.f32 %v758, 0.6931472
    %v760 = vsel %vm746, %v740, %v757
    %v761 = vsel %vm747, %v743, %v759
    %v762 = vld [vmem:[%s37] sm:$0xf]
    %v763 = vld [vmem:[%s37 + $0x4] sm:$0xf]
    %v766 = vunpack.c.l.b16 %v762
    %v767 = vunpack.c.l.b16 %v763
    %v768 = vpack.c.b16 %v767, %v766
    %v770 = vsel %vm303, %v768, 0
    %772 = vmatprep.subr.bf16.mxu0 0
    %773 = vmatpush1.bf16.xpose.msra.mxu0 0
    %774 = vmatprep.subr.bf16.mxu0 0
    %775 = vmatpush1.bf16.xpose.msra.mxu0 0
    %776 = vmatprep.subr.bf16.mxu0 0
    %777 = vmatpush1.bf16.xpose.msra.mxu0 0
    %778 = vmatprep.subr.bf16.mxu0 0
    %779 = vmatpush1.bf16.xpose.msra.mxu0 0
    %780 = vmatprep.subr.bf16.mxu0 0
    %781 = vmatpush1.bf16.xpose.msra.mxu0 0
    %782 = vmatprep.subr.bf16.mxu0 0
    %783 = vmatpush1.bf16.xpose.msra.mxu0 0
    %784 = vmatprep.subr.bf16.mxu0 0
    %785 = vmatpush1.bf16.xpose.msra.mxu0 0
    %786 = vmatprep.subr.bf16.mxu0 0
    %787 = vmatpush1.bf16.xpose.msra.mxu0 %v703
    %788 = vmatprep.subr.bf16.mxu0 0
    %789 = vmatpush2.bf16.xpose.msra.mxu0 0
    %790 = vmatprep.subr.bf16.mxu0 0
    %791 = vmatpush2.bf16.xpose.msra.mxu0 0
    %792 = vmatprep.subr.bf16.mxu0 0
    %793 = vmatpush2.bf16.xpose.msra.mxu0 0
    %794 = vmatprep.subr.bf16.mxu0 0
    %795 = vmatpush2.bf16.xpose.msra.mxu0 0
    %796 = vmatprep.subr.bf16.mxu0 0
    %797 = vmatpush2.bf16.xpose.msra.mxu0 0
    %798 = vmatprep.subr.bf16.mxu0 0
    %799 = vmatpush2.bf16.xpose.msra.mxu0 0
    %800 = vmatprep.subr.bf16.mxu0 0
    %801 = vmatpush2.bf16.xpose.msra.mxu0 0
    %802 = vmatprep.subr.bf16.mxu0 0
    %803 = vmatpush2.bf16.xpose.msra.mxu0 0
    %804 = vmatprep.mubr.bf16.mxu0 0
    %805 = vmatmul.mubr.bf16.gmra.mxu0 %v770
    %v806 = vpop.f32.mrf.mxu0
    %v807 = vadd.f32 0.0, %v806
    %v808 = vpop.f32.mrf.mxu0
    %v809 = vpop.f32.mrf.mxu0
    %v810 = vadd.f32 0.0, %v809
    %v811 = vpop.f32.mrf.mxu0
    %812 = vdwg.mxu0
    %814 = vrot.lane.b32.xlu0 %v761, 64
    %v815 = vpop.permute.xlu0 %814
    %v817 = vsel %vm303, %v760, %v815
    %819 = vrot.lane.b32.xlu0 %v597, 64
    %v820 = vpop.permute.xlu0 %819
    %v822 = vsel %vm303, %v596, %v820
    %v823 = vmul.f32 %v817, %v822
    %v824 = vld [vmem:[%s39] sm:$0xff]
    %v825 = vlaneseq
    %v826 = vshrl.u32 %v825, 7
    %v827 = vsub.s32 0, %v826
    %v828 = vrot.slane %v817, %v827
    %v829 = vmul.f32 %v824, %v828
    %v830 = vmul.f32 %v829, 1.442695
    %v831 = vpow.pop %v830
    %v832 = vlaneseq
    %v833 = vshrl.u32 %v832, 7
    %v834 = vsub.s32 0, %v833
    %v835 = vrot.slane %v823, %v834
    %837 = vset.pattern.permute.xlu0 0
    %838 = vperm.xlu0 %837, %v807
    %v839 = vpop.permute.xlu0 %838
    %v841 = vmul.f32 %v835, %v839
    %842 = vset.pattern.permute.xlu0 8
    %843 = vperm.xlu0 %842, %v807
    %v844 = vpop.permute.xlu0 %843
    %v846 = vmul.f32 %v835, %v844
    %v847 = vsel %vm303, %v841, %v846
    %849 = vset.pattern.permute.xlu0 0
    %850 = vperm.xlu0 %849, %v810
    %v851 = vpop.permute.xlu0 %850
    %853 = vset.pattern.permute.xlu0 8
    %854 = vperm.xlu0 %853, %v810
    %v855 = vpop.permute.xlu0 %854
    %v857 = vsel %vm303, %v851, %v855
    %v858 = vlaneseq
    %v859 = vshrl.u32 %v858, 7
    %v860 = vsub.s32 1, %v859
    %v861 = vrot.slane %v817, %v860
    %v862 = vmul.f32 %v824, %v861
    %v863 = vmul.f32 %v862, 1.442695
    %v864 = vpow.pop %v863
    %v865 = vlaneseq
    %v866 = vshrl.u32 %v865, 7
    %v867 = vsub.s32 1, %v866
    %v868 = vrot.slane %v823, %v867
    %869 = vset.pattern.permute.xlu0 1
    %870 = vperm.xlu0 %869, %v807
    %v871 = vpop.permute.xlu0 %870
    %v873 = vmul.f32 %v868, %v871
    %874 = vset.pattern.permute.xlu0 9
    %875 = vperm.xlu0 %874, %v807
    %v876 = vpop.permute.xlu0 %875
    %v878 = vmul.f32 %v868, %v876
    %v879 = vsel %vm303, %v873, %v878
    %880 = vset.pattern.permute.xlu0 1
    %881 = vperm.xlu0 %880, %v810
    %v882 = vpop.permute.xlu0 %881
    %884 = vset.pattern.permute.xlu0 9
    %885 = vperm.xlu0 %884, %v810
    %v886 = vpop.permute.xlu0 %885
    %v888 = vsel %vm303, %v882, %v886
    %v889 = vlaneseq
    %v890 = vshrl.u32 %v889, 7
    %v891 = vsub.s32 2, %v890
    %v892 = vrot.slane %v817, %v891
    %v893 = vmul.f32 %v824, %v892
    %v894 = vmul.f32 %v893, 1.442695
    %v895 = vpow.pop %v894
    %v896 = vlaneseq
    %v897 = vshrl.u32 %v896, 7
    %v898 = vsub.s32 2, %v897
    %v899 = vrot.slane %v823, %v898
    %900 = vset.pattern.permute.xlu0 2
    %901 = vperm.xlu0 %900, %v807
    %v902 = vpop.permute.xlu0 %901
    %v904 = vmul.f32 %v899, %v902
    %905 = vset.pattern.permute.xlu0 10
    %906 = vperm.xlu0 %905, %v807
    %v907 = vpop.permute.xlu0 %906
    %v909 = vmul.f32 %v899, %v907
    %v910 = vsel %vm303, %v904, %v909
    %911 = vset.pattern.permute.xlu0 2
    %912 = vperm.xlu0 %911, %v810
    %v913 = vpop.permute.xlu0 %912
    %915 = vset.pattern.permute.xlu0 10
    %916 = vperm.xlu0 %915, %v810
    %v917 = vpop.permute.xlu0 %916
    %v919 = vsel %vm303, %v913, %v917
    %v920 = vlaneseq
    %v921 = vshrl.u32 %v920, 7
    %v922 = vsub.s32 3, %v921
    %v923 = vrot.slane %v817, %v922
    %v924 = vmul.f32 %v824, %v923
    %v925 = vmul.f32 %v924, 1.442695
    %v926 = vpow.pop %v925
    %v927 = vlaneseq
    %v928 = vshrl.u32 %v927, 7
    %v929 = vsub.s32 3, %v928
    %v930 = vrot.slane %v823, %v929
    %931 = vset.pattern.permute.xlu0 3
    %932 = vperm.xlu0 %931, %v807
    %v933 = vpop.permute.xlu0 %932
    %v935 = vmul.f32 %v930, %v933
    %936 = vset.pattern.permute.xlu0 11
    %937 = vperm.xlu0 %936, %v807
    %v938 = vpop.permute.xlu0 %937
    %v940 = vmul.f32 %v930, %v938
    %v941 = vsel %vm303, %v935, %v940
    %942 = vset.pattern.permute.xlu0 3
    %943 = vperm.xlu0 %942, %v810
    %v944 = vpop.permute.xlu0 %943
    %946 = vset.pattern.permute.xlu0 11
    %947 = vperm.xlu0 %946, %v810
    %v948 = vpop.permute.xlu0 %947
    %v950 = vsel %vm303, %v944, %v948
    %v951 = vlaneseq
    %v952 = vshrl.u32 %v951, 7
    %v953 = vsub.s32 4, %v952
    %v954 = vrot.slane %v817, %v953
    %v955 = vmul.f32 %v824, %v954
    %v956 = vmul.f32 %v955, 1.442695
    %v957 = vpow.pop %v956
    %v958 = vlaneseq
    %v959 = vshrl.u32 %v958, 7
    %v960 = vsub.s32 4, %v959
    %v961 = vrot.slane %v823, %v960
    %962 = vset.pattern.permute.xlu0 4
    %963 = vperm.xlu0 %962, %v807
    %v964 = vpop.permute.xlu0 %963
    %v966 = vmul.f32 %v961, %v964
    %967 = vset.pattern.permute.xlu0 12
    %968 = vperm.xlu0 %967, %v807
    %v969 = vpop.permute.xlu0 %968
    %v971 = vmul.f32 %v961, %v969
    %v972 = vsel %vm303, %v966, %v971
    %973 = vset.pattern.permute.xlu0 4
    %974 = vperm.xlu0 %973, %v810
    %v975 = vpop.permute.xlu0 %974
    %977 = vset.pattern.permute.xlu0 12
    %978 = vperm.xlu0 %977, %v810
    %v979 = vpop.permute.xlu0 %978
    %v981 = vsel %vm303, %v975, %v979
    %v982 = vlaneseq
    %v983 = vshrl.u32 %v982, 7
    %v984 = vsub.s32 5, %v983
    %v985 = vrot.slane %v817, %v984
    %v986 = vmul.f32 %v824, %v985
    %v987 = vmul.f32 %v986, 1.442695
    %v988 = vpow.pop %v987
    %v989 = vlaneseq
    %v990 = vshrl.u32 %v989, 7
    %v991 = vsub.s32 5, %v990
    %v992 = vrot.slane %v823, %v991
    %993 = vset.pattern.permute.xlu0 5
    %994 = vperm.xlu0 %993, %v807
    %v995 = vpop.permute.xlu0 %994
    %v997 = vmul.f32 %v992, %v995
    %998 = vset.pattern.permute.xlu0 13
    %999 = vperm.xlu0 %998, %v807
    %v1000 = vpop.permute.xlu0 %999
    %v1002 = vmul.f32 %v992, %v1000
    %v1003 = vsel %vm303, %v997, %v1002
    %1004 = vset.pattern.permute.xlu0 5
    %1005 = vperm.xlu0 %1004, %v810
    %v1006 = vpop.permute.xlu0 %1005
    %1008 = vset.pattern.permute.xlu0 13
    %1009 = vperm.xlu0 %1008, %v810
    %v1010 = vpop.permute.xlu0 %1009
    %v1012 = vsel %vm303, %v1006, %v1010
    %v1013 = vlaneseq
    %v1014 = vshrl.u32 %v1013, 7
    %v1015 = vsub.s32 6, %v1014
    %v1016 = vrot.slane %v817, %v1015
    %v1017 = vmul.f32 %v824, %v1016
    %v1018 = vmul.f32 %v1017, 1.442695
    %v1019 = vpow.pop %v1018
    %v1020 = vlaneseq
    %v1021 = vshrl.u32 %v1020, 7
    %v1022 = vsub.s32 6, %v1021
    %v1023 = vrot.slane %v823, %v1022
    %1024 = vset.pattern.permute.xlu0 6
    %1025 = vperm.xlu0 %1024, %v807
    %v1026 = vpop.permute.xlu0 %1025
    %v1028 = vmul.f32 %v1023, %v1026
    %1029 = vset.pattern.permute.xlu0 14
    %1030 = vperm.xlu0 %1029, %v807
    %v1031 = vpop.permute.xlu0 %1030
    %v1033 = vmul.f32 %v1023, %v1031
    %v1034 = vsel %vm303, %v1028, %v1033
    %1035 = vset.pattern.permute.xlu0 6
    %1036 = vperm.xlu0 %1035, %v810
    %v1037 = vpop.permute.xlu0 %1036
    %1039 = vset.pattern.permute.xlu0 14
    %1040 = vperm.xlu0 %1039, %v810
    %v1041 = vpop.permute.xlu0 %1040
    %v1043 = vsel %vm303, %v1037, %v1041
    %v1044 = vlaneseq
    %v1045 = vshrl.u32 %v1044, 7
    %v1046 = vsub.s32 7, %v1045
    %v1047 = vrot.slane %v817, %v1046
    %v1048 = vmul.f32 %v824, %v1047
    %v1049 = vmul.f32 %v1048, 1.442695
    %v1050 = vpow.pop %v1049
    %v1051 = vlaneseq
    %v1052 = vshrl.u32 %v1051, 7
    %v1053 = vsub.s32 7, %v1052
    %v1054 = vrot.slane %v823, %v1053
    %1055 = vset.pattern.permute.xlu0 7
    %1056 = vperm.xlu0 %1055, %v807
    %v1057 = vpop.permute.xlu0 %1056
    %v1059 = vmul.f32 %v1054, %v1057
    %1060 = vset.pattern.permute.xlu0 15
    %1061 = vperm.xlu0 %1060, %v807
    %v1062 = vpop.permute.xlu0 %1061
    %v1064 = vmul.f32 %v1054, %v1062
    %v1065 = vsel %vm303, %v1059, %v1064
    %1066 = vset.pattern.permute.xlu0 7
    %1067 = vperm.xlu0 %1066, %v810
    %v1068 = vpop.permute.xlu0 %1067
    %1070 = vset.pattern.permute.xlu0 15
    %1071 = vperm.xlu0 %1070, %v810
    %v1072 = vpop.permute.xlu0 %1071
    %v1074 = vsel %vm303, %v1068, %v1072
    %v1075 = vmul.f32 %v831, 0.0
    %v1076 = vadd.f32 %v1075, %v847
    %v1077 = vmul.f32 %v1076, %v857
    %v1078 = vrot.slane %v1077, 4
    %v1079 = vadd.f32 %v1077, %v1078
    %v1080 = vrot.slane %v1079, 2
    %v1081 = vadd.f32 %v1079, %v1080
    %v1082 = vrot.slane %v1081, 1
    %v1083 = vadd.f32 %v1081, %v1082
    %1084 = vst [vmem:[#allocation4] sm:$0x1] %v1083
    %v1085 = vmul.f32 %v864, %v1076
    %v1086 = vadd.f32 %v1085, %v879
    %v1087 = vmul.f32 %v1086, %v888
    %v1088 = vrot.slane %v1087, 4
    %v1089 = vadd.f32 %v1087, %v1088
    %v1090 = vrot.slane %v1089, 2
    %v1091 = vadd.f32 %v1089, %v1090
    %v1092 = vrot.slane %v1091, 1
    %v1093 = vadd.f32 %v1091, %v1092
    %1094 = vst [vmem:[#allocation4 + $0x1] sm:$0x1] %v1093
    %v1095 = vmul.f32 %v895, %v1086
    %v1096 = vadd.f32 %v1095, %v910
    %v1097 = vmul.f32 %v1096, %v919
    %v1098 = vrot.slane %v1097, 4
    %v1099 = vadd.f32 %v1097, %v1098
    %v1100 = vrot.slane %v1099, 2
    %v1101 = vadd.f32 %v1099, %v1100
    %v1102 = vrot.slane %v1101, 1
    %v1103 = vadd.f32 %v1101, %v1102
    %1104 = vst [vmem:[#allocation4 + $0x2] sm:$0x1] %v1103
    %v1105 = vmul.f32 %v926, %v1096
    %v1106 = vadd.f32 %v1105, %v941
    %v1107 = vmul.f32 %v1106, %v950
    %v1108 = vrot.slane %v1107, 4
    %v1109 = vadd.f32 %v1107, %v1108
    %v1110 = vrot.slane %v1109, 2
    %v1111 = vadd.f32 %v1109, %v1110
    %v1112 = vrot.slane %v1111, 1
    %v1113 = vadd.f32 %v1111, %v1112
    %1114 = vst [vmem:[#allocation4 + $0x3] sm:$0x1] %v1113
    %v1115 = vmul.f32 %v957, %v1106
    %v1116 = vadd.f32 %v1115, %v972
    %v1117 = vmul.f32 %v1116, %v981
    %v1118 = vrot.slane %v1117, 4
    %v1119 = vadd.f32 %v1117, %v1118
    %v1120 = vrot.slane %v1119, 2
    %v1121 = vadd.f32 %v1119, %v1120
    %v1122 = vrot.slane %v1121, 1
    %v1123 = vadd.f32 %v1121, %v1122
    %1124 = vst [vmem:[#allocation4 + $0x4] sm:$0x1] %v1123
    %v1125 = vmul.f32 %v988, %v1116
    %v1126 = vadd.f32 %v1125, %v1003
    %v1127 = vmul.f32 %v1126, %v1012
    %v1128 = vrot.slane %v1127, 4
    %v1129 = vadd.f32 %v1127, %v1128
    %v1130 = vrot.slane %v1129, 2
    %v1131 = vadd.f32 %v1129, %v1130
    %v1132 = vrot.slane %v1131, 1
    %v1133 = vadd.f32 %v1131, %v1132
    %1134 = vst [vmem:[#allocation4 + $0x5] sm:$0x1] %v1133
    %v1135 = vmul.f32 %v1019, %v1126
    %v1136 = vadd.f32 %v1135, %v1034
    %v1137 = vmul.f32 %v1136, %v1043
    %v1138 = vrot.slane %v1137, 4
    %v1139 = vadd.f32 %v1137, %v1138
    %v1140 = vrot.slane %v1139, 2
    %v1141 = vadd.f32 %v1139, %v1140
    %v1142 = vrot.slane %v1141, 1
    %v1143 = vadd.f32 %v1141, %v1142
    %1144 = vst [vmem:[#allocation4 + $0x6] sm:$0x1] %v1143
    %v1145 = vmul.f32 %v1050, %v1136
    %v1146 = vadd.f32 %v1145, %v1065
    %v1147 = vmul.f32 %v1146, %v1074
    %v1148 = vrot.slane %v1147, 4
    %v1149 = vadd.f32 %v1147, %v1148
    %v1150 = vrot.slane %v1149, 2
    %v1151 = vadd.f32 %v1149, %v1150
    %v1152 = vrot.slane %v1151, 1
    %v1153 = vadd.f32 %v1151, %v1152
    %1154 = vst [vmem:[#allocation4 + $0x7] sm:$0x1] %v1153
    %v1155 = vld [vmem:[%s41] sm:$0x1]
    %v1156 = vld [vmem:[%s43] sm:$0xf]
    %v1157 = vld [vmem:[%s43 + $0x4] sm:$0xf]
    %v1158 = vld [vmem:[%s43 + $0x8] sm:$0xf]
    %v1159 = vld [vmem:[%s43 + $0xc] sm:$0xf]
    %v1160 = vld [vmem:[%s43 + $0x10] sm:$0xf]
    %v1161 = vld [vmem:[%s43 + $0x14] sm:$0xf]
    %v1162 = vld [vmem:[%s43 + $0x18] sm:$0xf]
    %v1163 = vld [vmem:[%s43 + $0x1c] sm:$0xf]
    %v1164 = vld [vmem:[%s45] sm:$0x1]
    %v1165 = vld [vmem:[#allocation4] sm:$0xff]
    %v1167 = vlaneseq
    %v1168 = vshrl.u32 %v1167, 7
    %v1169 = vsub.s32 0, %v1168
    %v1170 = vrot.slane %v1155, %v1169
    %v1172 = vmul.f32 %v596, %v1170
    %v1173 = vadd.f32 %v1165, %v1172
    %v1174 = vand.u32 2147483647, %v656
    %v1175 = vsub.f32 0.0, %v1174
    %v1176 = vmul.f32 %v1175, 1.442695
    %v1177 = vpow.pop %v1176
    %v1178 = vadd.f32 %v1177, 1.0
    %v1179 = vrcp.pop %v1178
    %v1180 = vmul.f32 1.0, %v1179
    %vm1181 = vcmp.ge.f32.partialorder %v656, 0.0
    %v1182 = vmul.f32 %v1177, %v1180
    %v1183 = vsel %vm1181, %v1180, %v1182
    %v1184 = vmul.f32 %v656, %v1183
    %v1185 = vmul.f32 %v1173, %v1184
    %v1186 = vpack.c.bf16 %v1185, %v1185
    %v1188 = vlaneseq
    %v1189 = vshrl.u32 %v1188, 7
    %v1190 = vsub.s32 0, %v1189
    %v1191 = vrot.slane %v1164, %v1190
    %v1201 = vunpack.c.l.b16 %v1156
    %v1202 = vunpack.c.l.b16 %v1157
    %v1203 = vunpack.c.l.b16 %v1158
    %v1204 = vunpack.c.l.b16 %v1159
    %v1205 = vunpack.c.l.b16 %v1160
    %v1206 = vunpack.c.l.b16 %v1161
    %v1207 = vunpack.c.l.b16 %v1162
    %v1208 = vunpack.c.l.b16 %v1163
    %v1209 = vpack.c.b16 %v1202, %v1201
    %v1210 = vpack.c.b16 %v1204, %v1203
    %v1211 = vpack.c.b16 %v1206, %v1205
    %v1212 = vpack.c.b16 %v1208, %v1207
    %v1218 = vsel %vm303, %v1186, 0
    %1220 = vmatprep.subr.bf16.mxu0 0
    %1221 = vmatpush1.bf16.msra.mxu0 0
    %1222 = vmatprep.subr.bf16.mxu0 0
    %1223 = vmatpush1.bf16.msra.mxu0 0
    %1224 = vmatprep.subr.bf16.mxu0 0
    %1225 = vmatpush1.bf16.msra.mxu0 0
    %1226 = vmatprep.subr.bf16.mxu0 0
    %1227 = vmatpush1.bf16.msra.mxu0 0
    %1228 = vmatprep.subr.bf16.mxu0 0
    %1229 = vmatpush1.bf16.msra.mxu0 %v1212
    %1230 = vmatprep.subr.bf16.mxu0 0
    %1231 = vmatpush1.bf16.msra.mxu0 %v1211
    %1232 = vmatprep.subr.bf16.mxu0 0
    %1233 = vmatpush1.bf16.msra.mxu0 %v1210
    %1234 = vmatprep.subr.bf16.mxu0 0
    %1235 = vmatpush1.bf16.msra.mxu0 %v1209
    %1236 = vmatprep.subr.bf16.mxu0 0
    %1237 = vmatpush2.bf16.msra.mxu0 0
    %1238 = vmatprep.subr.bf16.mxu0 0
    %1239 = vmatpush2.bf16.msra.mxu0 0
    %1240 = vmatprep.subr.bf16.mxu0 0
    %1241 = vmatpush2.bf16.msra.mxu0 0
    %1242 = vmatprep.subr.bf16.mxu0 0
    %1243 = vmatpush2.bf16.msra.mxu0 0
    %1244 = vmatprep.subr.bf16.mxu0 0
    %1245 = vmatpush2.bf16.msra.mxu0 0
    %1246 = vmatprep.subr.bf16.mxu0 0
    %1247 = vmatpush2.bf16.msra.mxu0 0
    %1248 = vmatprep.subr.bf16.mxu0 0
    %1249 = vmatpush2.bf16.msra.mxu0 0
    %1250 = vmatprep.subr.bf16.mxu0 0
    %1251 = vmatpush2.bf16.msra.mxu0 0
    %1252 = vmatprep.mubr.bf16.mxu0 0
    %1253 = vmatmul.mubr.bf16.gmra.mxu0 %v1218
    %v1254 = vpop.f32.mrf.mxu0
    %v1255 = vadd.f32 %v1191, %v1254
    %v1256 = vpop.f32.mrf.mxu0
    %v1257 = vpop.f32.mrf.mxu0
    %v1258 = vpop.f32.mrf.mxu0
    %1259 = vdwg.mxu0
    %v1260 = vmul.f32 %v597, %v1170
    %1262 = vrot.lane.b32.xlu0 %v1260, 64
    %v1263 = vpop.permute.xlu0 %1262
    %v1265 = vadd.f32 %v1165, %v1263
    %v1266 = vand.u32 2147483647, %v659
    %v1267 = vsub.f32 0.0, %v1266
    %v1268 = vmul.f32 %v1267, 1.442695
    %v1269 = vpow.pop %v1268
    %v1270 = vadd.f32 %v1269, 1.0
    %v1271 = vrcp.pop %v1270
    %v1272 = vmul.f32 1.0, %v1271
    %vm1273 = vcmp.ge.f32.partialorder %v659, 0.0
    %v1274 = vmul.f32 %v1269, %v1272
    %v1275 = vsel %vm1273, %v1272, %v1274
    %v1276 = vmul.f32 %v659, %v1275
    %1278 = vrot.lane.b32.xlu0 %v1276, 64
    %v1279 = vpop.permute.xlu0 %1278
    %v1281 = vmul.f32 %v1265, %v1279
    %v1282 = vpack.c.bf16 %v1281, %v1281
    %1284 = vrot.lane.b32.xlu0 %v1282, 64
    %v1285 = vpop.permute.xlu0 %1284
    %v1287 = vsel %vm303, %v1285, 0
    %1289 = vmatprep.subr.bf16.mxu0 0
    %1290 = vmatpush1.bf16.msra.mxu0 0
    %1291 = vmatprep.subr.bf16.mxu0 0
    %1292 = vmatpush1.bf16.msra.mxu0 0
    %1293 = vmatprep.subr.bf16.mxu0 0
    %1294 = vmatpush1.bf16.msra.mxu0 0
    %1295 = vmatprep.subr.bf16.mxu0 0
    %1296 = vmatpush1.bf16.msra.mxu0 0
    %1297 = vmatprep.subr.bf16.mxu0 0
    %1298 = vmatpush1.bf16.msra.mxu0 %v1212
    %1299 = vmatprep.subr.bf16.mxu0 0
    %1300 = vmatpush1.bf16.msra.mxu0 %v1211
    %1301 = vmatprep.subr.bf16.mxu0 0
    %1302 = vmatpush1.bf16.msra.mxu0 %v1210
    %1303 = vmatprep.subr.bf16.mxu0 0
    %1304 = vmatpush1.bf16.msra.mxu0 %v1209
    %1305 = vmatprep.subr.bf16.mxu0 0
    %1306 = vmatpush2.bf16.msra.mxu0 0
    %1307 = vmatprep.subr.bf16.mxu0 0
    %1308 = vmatpush2.bf16.msra.mxu0 0
    %1309 = vmatprep.subr.bf16.mxu0 0
    %1310 = vmatpush2.bf16.msra.mxu0 0
    %1311 = vmatprep.subr.bf16.mxu0 0
    %1312 = vmatpush2.bf16.msra.mxu0 0
    %1313 = vmatprep.subr.bf16.mxu0 0
    %1314 = vmatpush2.bf16.msra.mxu0 0
    %1315 = vmatprep.subr.bf16.mxu0 0
    %1316 = vmatpush2.bf16.msra.mxu0 0
    %1317 = vmatprep.subr.bf16.mxu0 0
    %1318 = vmatpush2.bf16.msra.mxu0 0
    %1319 = vmatprep.subr.bf16.mxu0 0
    %1320 = vmatpush2.bf16.msra.mxu0 0
    %1321 = vmatprep.mubr.bf16.mxu0 0
    %1322 = vmatmul.mubr.bf16.gmra.mxu0 %v1287
    %v1323 = vpop.f32.mrf.mxu0
    %v1324 = vadd.f32 %v1191, %v1323
    %v1325 = vpop.f32.mrf.mxu0
    %v1326 = vpop.f32.mrf.mxu0
    %v1327 = vpop.f32.mrf.mxu0
    %1328 = vdwg.mxu0
    %1329 = vst.msk [vmem:[#allocation3] sm:$0xff] %vm209, %v1255
    %1330 = vst.msk [vmem:[#allocation3 + $0xc] sm:$0xff] %vm209, %v1324
    %v1331 = vld [vmem:[#allocation3] sm:$0xff]
    %v1332 = vld [vmem:[#allocation3 + $0x8] sm:$0xff]
    %v1333 = vld [vmem:[#allocation3 + $0x10] sm:$0xff]
    %v1334 = vld [vmem:[%s47] sm:$0xf]
    %v1335 = vld [vmem:[%s47 + $0x4] sm:$0xf]
    %v1336 = vld [vmem:[%s47 + $0x8] sm:$0xf]
    %v1337 = vld [vmem:[%s47 + $0xc] sm:$0xf]
    %v1338 = vpack.c.bf16 %v1332, %v1331
    %v1339 = vpack.c.bf16 %v1333, %v1333
    %v1340 = vld [vmem:[%s49] sm:$0x1]
    %v1342 = vlaneseq
    %v1343 = vshrl.u32 %v1342, 7
    %v1344 = vsub.s32 0, %v1343
    %v1345 = vrot.slane %v1340, %v1344
    %v1351 = vunpack.c.l.b16 %v1334
    %v1352 = vunpack.c.l.b16 %v1335
    %v1353 = vunpack.c.l.b16 %v1336
    %v1354 = vunpack.c.l.b16 %v1337
    %v1355 = vpack.c.b16 %v1352, %v1351
    %v1356 = vpack.c.b16 %v1354, %v1353
    %v1360 = vsel %vm209, %v1338, 0
    %v1363 = vsel %vm209, %v1339, 0
    %1365 = vmatprep.subr.bf16.mxu0 0
    %1366 = vmatpush1.bf16.msra.mxu0 0
    %1367 = vmatprep.subr.bf16.mxu0 0
    %1368 = vmatpush1.bf16.msra.mxu0 0
    %1369 = vmatprep.subr.bf16.mxu0 0
    %1370 = vmatpush1.bf16.msra.mxu0 0
    %1371 = vmatprep.subr.bf16.mxu0 0
    %1372 = vmatpush1.bf16.msra.mxu0 0
    %1373 = vmatprep.subr.bf16.mxu0 0
    %1374 = vmatpush1.bf16.msra.mxu0 0
    %1375 = vmatprep.subr.bf16.mxu0 0
    %1376 = vmatpush1.bf16.msra.mxu0 0
    %1377 = vmatprep.subr.bf16.mxu0 0
    %1378 = vmatpush1.bf16.msra.mxu0 %v1356
    %1379 = vmatprep.subr.bf16.mxu0 0
    %1380 = vmatpush1.bf16.msra.mxu0 %v1355
    %1381 = vmatprep.subr.bf16.mxu0 0
    %1382 = vmatpush2.bf16.msra.mxu0 0
    %1383 = vmatprep.subr.bf16.mxu0 0
    %1384 = vmatpush2.bf16.msra.mxu0 0
    %1385 = vmatprep.subr.bf16.mxu0 0
    %1386 = vmatpush2.bf16.msra.mxu0 0
    %1387 = vmatprep.subr.bf16.mxu0 0
    %1388 = vmatpush2.bf16.msra.mxu0 0
    %1389 = vmatprep.subr.bf16.mxu0 0
    %1390 = vmatpush2.bf16.msra.mxu0 0
    %1391 = vmatprep.subr.bf16.mxu0 0
    %1392 = vmatpush2.bf16.msra.mxu0 0
    %1393 = vmatprep.subr.bf16.mxu0 0
    %1394 = vmatpush2.bf16.msra.mxu0 0
    %1395 = vmatprep.subr.bf16.mxu0 0
    %1396 = vmatpush2.bf16.msra.mxu0 0
    %1397 = vmatprep.mubr.bf16.mxu0 0
    %1398 = vmatmul.mubr.bf16.gmra.mxu0 %v1360
    %v1399 = vpop.f32.mrf.mxu0
    %v1400 = vadd.f32 %v1345, %v1399
    %v1401 = vpop.f32.mrf.mxu0
    %v1402 = vpop.f32.mrf.mxu0
    %v1403 = vadd.f32 %v1345, %v1402
    %v1404 = vpop.f32.mrf.mxu0
    %1405 = vmatprep.mubr.bf16.mxu0 0
    %1406 = vmatmul.mubr.bf16.gmra.mxu0 %v1363
    %v1407 = vpop.f32.mrf.mxu0
    %v1408 = vadd.f32 %v1345, %v1407
    %v1409 = vpop.f32.mrf.mxu0
    %v1410 = vpop.f32.mrf.mxu0
    %v1411 = vpop.f32.mrf.mxu0
    %1412 = vdwg.mxu0
    %v1413 = vand.u32 2147483647, %v1400
    %v1414 = vand.u32 2147483647, %v1403
    %v1415 = vand.u32 2147483647, %v1408
    %v1416 = vsub.f32 0.0, %v1413
    %v1417 = vsub.f32 0.0, %v1414
    %v1418 = vsub.f32 0.0, %v1415
    %v1419 = vmul.f32 %v1416, 1.442695
    %v1420 = vpow.pop %v1419
    %v1421 = vmul.f32 %v1417, 1.442695
    %v1422 = vpow.pop %v1421
    %v1423 = vmul.f32 %v1418, 1.442695
    %v1424 = vpow.pop %v1423
    %v1425 = vadd.f32 %v1420, 1.0
    %v1426 = vadd.f32 %v1422, 1.0
    %v1427 = vadd.f32 %v1424, 1.0
    %v1428 = vrcp.pop %v1425
    %v1429 = vmul.f32 1.0, %v1428
    %v1430 = vrcp.pop %v1426
    %v1431 = vmul.f32 1.0, %v1430
    %v1432 = vrcp.pop %v1427
    %v1433 = vmul.f32 1.0, %v1432
    %vm1434 = vcmp.ge.f32.partialorder %v1400, 0.0
    %vm1435 = vcmp.ge.f32.partialorder %v1403, 0.0
    %vm1436 = vcmp.ge.f32.partialorder %v1408, 0.0
    %v1437 = vmul.f32 %v1420, %v1429
    %v1438 = vmul.f32 %v1422, %v1431
    %v1439 = vmul.f32 %v1424, %v1433
    %v1440 = vsel %vm1434, %v1429, %v1437
    %v1441 = vsel %vm1435, %v1431, %v1438
    %v1442 = vsel %vm1436, %v1433, %v1439
    %v1443 = vmul.f32 %v1400, %v1440
    %v1444 = vmul.f32 %v1403, %v1441
    %v1445 = vmul.f32 %v1408, %v1442
    %v1446 = vld [vmem:[%s51] sm:$0xf]
    %v1447 = vld [vmem:[%s51 + $0x4] sm:$0xf]
    %v1448 = vld [vmem:[%s51 + $0x8] sm:$0xf]
    %v1449 = vld [vmem:[%s51 + $0xc] sm:$0xf]
    %v1450 = vld [vmem:[%s53] sm:$0x1]
    %v1452 = vlaneseq
    %v1453 = vshrl.u32 %v1452, 7
    %v1454 = vsub.s32 0, %v1453
    %v1455 = vrot.slane %v1450, %v1454
    %v1461 = vunpack.c.l.b16 %v1446
    %v1462 = vunpack.c.l.b16 %v1447
    %v1463 = vunpack.c.l.b16 %v1448
    %v1464 = vunpack.c.l.b16 %v1449
    %v1465 = vpack.c.b16 %v1462, %v1461
    %v1466 = vpack.c.b16 %v1464, %v1463
    %1469 = vmatprep.subr.bf16.mxu0 0
    %1470 = vmatpush1.bf16.msra.mxu0 0
    %1471 = vmatprep.subr.bf16.mxu0 0
    %1472 = vmatpush1.bf16.msra.mxu0 0
    %1473 = vmatprep.subr.bf16.mxu0 0
    %1474 = vmatpush1.bf16.msra.mxu0 0
    %1475 = vmatprep.subr.bf16.mxu0 0
    %1476 = vmatpush1.bf16.msra.mxu0 0
    %1477 = vmatprep.subr.bf16.mxu0 0
    %1478 = vmatpush1.bf16.msra.mxu0 0
    %1479 = vmatprep.subr.bf16.mxu0 0
    %1480 = vmatpush1.bf16.msra.mxu0 0
    %1481 = vmatprep.subr.bf16.mxu0 0
    %1482 = vmatpush1.bf16.msra.mxu0 %v1466
    %1483 = vmatprep.subr.bf16.mxu0 0
    %1484 = vmatpush1.bf16.msra.mxu0 %v1465
    %1485 = vmatprep.subr.bf16.mxu0 0
    %1486 = vmatpush2.bf16.msra.mxu0 0
    %1487 = vmatprep.subr.bf16.mxu0 0
    %1488 = vmatpush2.bf16.msra.mxu0 0
    %1489 = vmatprep.subr.bf16.mxu0 0
    %1490 = vmatpush2.bf16.msra.mxu0 0
    %1491 = vmatprep.subr.bf16.mxu0 0
    %1492 = vmatpush2.bf16.msra.mxu0 0
    %1493 = vmatprep.subr.bf16.mxu0 0
    %1494 = vmatpush2.bf16.msra.mxu0 0
    %1495 = vmatprep.subr.bf16.mxu0 0
    %1496 = vmatpush2.bf16.msra.mxu0 0
    %1497 = vmatprep.subr.bf16.mxu0 0
    %1498 = vmatpush2.bf16.msra.mxu0 0
    %1499 = vmatprep.subr.bf16.mxu0 0
    %1500 = vmatpush2.bf16.msra.mxu0 0
    %1501 = vmatprep.mubr.bf16.mxu0 0
    %1502 = vmatmul.mubr.bf16.gmra.mxu0 %v1360
    %v1503 = vpop.f32.mrf.mxu0
    %v1504 = vadd.f32 %v1455, %v1503
    %v1505 = vpop.f32.mrf.mxu0
    %v1506 = vpop.f32.mrf.mxu0
    %v1507 = vadd.f32 %v1455, %v1506
    %v1508 = vpop.f32.mrf.mxu0
    %1509 = vmatprep.mubr.bf16.mxu0 0
    %1510 = vmatmul.mubr.bf16.gmra.mxu0 %v1363
    %v1511 = vpop.f32.mrf.mxu0
    %v1512 = vadd.f32 %v1455, %v1511
    %v1513 = vpop.f32.mrf.mxu0
    %v1514 = vpop.f32.mrf.mxu0
    %v1515 = vpop.f32.mrf.mxu0
    %1516 = vdwg.mxu0
    %v1517 = vld [vmem:[%s55] sm:$0xf]
    %v1518 = vld [vmem:[%s55 + $0x4] sm:$0xf]
    %v1519 = vld [vmem:[%s55 + $0x8] sm:$0xf]
    %v1520 = vld [vmem:[%s55 + $0xc] sm:$0xf]
    %v1521 = vld [vmem:[%s55 + $0x10] sm:$0xf]
    %v1522 = vld [vmem:[%s55 + $0x14] sm:$0xf]
    %v1523 = vld [vmem:[%s55 + $0x18] sm:$0xf]
    %v1524 = vld [vmem:[%s55 + $0x1c] sm:$0xf]
    %v1525 = vpack.c.bf16 %v1444, %v1443
    %v1526 = vpack.c.bf16 %v1445, %v1445
    %v1527 = vld [vmem:[#allocation6] sm:$0x1]
    %v1529 = vlaneseq
    %v1530 = vshrl.u32 %v1529, 7
    %v1531 = vsub.s32 0, %v1530
    %v1532 = vrot.slane %v1527, %v1531
    %v1542 = vunpack.c.l.b16 %v1517
    %v1543 = vunpack.c.l.b16 %v1518
    %v1544 = vunpack.c.l.b16 %v1519
    %v1545 = vunpack.c.l.b16 %v1520
    %v1546 = vunpack.c.l.b16 %v1521
    %v1547 = vunpack.c.l.b16 %v1522
    %v1548 = vunpack.c.l.b16 %v1523
    %v1549 = vunpack.c.l.b16 %v1524
    %v1550 = vpack.c.b16 %v1543, %v1542
    %v1551 = vpack.c.b16 %v1545, %v1544
    %v1552 = vpack.c.b16 %v1547, %v1546
    %v1553 = vpack.c.b16 %v1549, %v1548
    %v1559 = vsel %vm303, %v1525, 0
    %v1562 = vsel %vm303, %v1526, 0
    %1564 = vmatprep.subr.bf16.mxu0 0
    %1565 = vmatpush1.bf16.msra.mxu0 0
    %1566 = vmatprep.subr.bf16.mxu0 0
    %1567 = vmatpush1.bf16.msra.mxu0 0
    %1568 = vmatprep.subr.bf16.mxu0 0
    %1569 = vmatpush1.bf16.msra.mxu0 0
    %1570 = vmatprep.subr.bf16.mxu0 0
    %1571 = vmatpush1.bf16.msra.mxu0 0
    %1572 = vmatprep.subr.bf16.mxu0 0
    %1573 = vmatpush1.bf16.msra.mxu0 %v1553
    %1574 = vmatprep.subr.bf16.mxu0 0
    %1575 = vmatpush1.bf16.msra.mxu0 %v1552
    %1576 = vmatprep.subr.bf16.mxu0 0
    %1577 = vmatpush1.bf16.msra.mxu0 %v1551
    %1578 = vmatprep.subr.bf16.mxu0 0
    %1579 = vmatpush1.bf16.msra.mxu0 %v1550
    %1580 = vmatprep.subr.bf16.mxu0 0
    %1581 = vmatpush2.bf16.msra.mxu0 0
    %1582 = vmatprep.subr.bf16.mxu0 0
    %1583 = vmatpush2.bf16.msra.mxu0 0
    %1584 = vmatprep.subr.bf16.mxu0 0
    %1585 = vmatpush2.bf16.msra.mxu0 0
    %1586 = vmatprep.subr.bf16.mxu0 0
    %1587 = vmatpush2.bf16.msra.mxu0 0
    %1588 = vmatprep.subr.bf16.mxu0 0
    %1589 = vmatpush2.bf16.msra.mxu0 0
    %1590 = vmatprep.subr.bf16.mxu0 0
    %1591 = vmatpush2.bf16.msra.mxu0 0
    %1592 = vmatprep.subr.bf16.mxu0 0
    %1593 = vmatpush2.bf16.msra.mxu0 0
    %1594 = vmatprep.subr.bf16.mxu0 0
    %1595 = vmatpush2.bf16.msra.mxu0 0
    %1596 = vmatprep.mubr.bf16.mxu0 0
    %1597 = vmatmul.mubr.bf16.gmra.mxu0 %v1559
    %v1598 = vpop.f32.mrf.mxu0
    %v1599 = vadd.f32 %v1532, %v1598
    %v1600 = vpop.f32.mrf.mxu0
    %v1601 = vpop.f32.mrf.mxu0
    %v1602 = vadd.f32 %v1532, %v1601
    %v1603 = vpop.f32.mrf.mxu0
    %1604 = vmatprep.mubr.bf16.mxu0 0
    %1605 = vmatmul.mubr.bf16.gmra.mxu0 %v1562
    %v1606 = vpop.f32.mrf.mxu0
    %v1607 = vadd.f32 %v1532, %v1606
    %v1608 = vpop.f32.mrf.mxu0
    %v1609 = vpop.f32.mrf.mxu0
    %v1610 = vpop.f32.mrf.mxu0
    %1611 = vdwg.mxu0
    %vm1612 = vcmp.gt.f32.partialorder %v1599, 20.0
    %vm1613 = vcmp.gt.f32.partialorder %v1602, 20.0
    %vm1614 = vcmp.gt.f32.partialorder %v1607, 20.0
    %v1615 = vmin.f32 %v1599, 20.0
    %v1616 = vmin.f32 %v1602, 20.0
    %v1617 = vmin.f32 %v1607, 20.0
    %v1618 = vmul.f32 %v1615, 1.442695
    %v1619 = vpow.pop %v1618
    %v1620 = vmul.f32 %v1616, 1.442695
    %v1621 = vpow.pop %v1620
    %v1622 = vmul.f32 %v1617, 1.442695
    %v1623 = vpow.pop %v1622
    %v1624 = vadd.f32 %v1619, 1.0
    %v1625 = vadd.f32 %v1621, 1.0
    %v1626 = vadd.f32 %v1623, 1.0
    %v1627 = vlog2.pop %v1624
    %v1628 = vmul.f32 %v1627, 0.6931472
    %v1629 = vlog2.pop %v1625
    %v1630 = vmul.f32 %v1629, 0.6931472
    %v1631 = vlog2.pop %v1626
    %v1632 = vmul.f32 %v1631, 0.6931472
    %v1633 = vsel %vm1612, %v1599, %v1628
    %v1634 = vsel %vm1613, %v1602, %v1630
    %v1635 = vsel %vm1614, %v1607, %v1632
    %v1636 = vld [vmem:[%s59] sm:$0xf]
    %v1637 = vld [vmem:[%s59 + $0x4] sm:$0xf]
    %v1640 = vunpack.c.l.b16 %v1636
    %v1641 = vunpack.c.l.b16 %v1637
    %v1642 = vpack.c.b16 %v1641, %v1640
    %v1644 = vsel %vm303, %v1642, 0
    %1646 = vmatprep.subr.bf16.mxu0 0
    %1647 = vmatpush1.bf16.xpose.msra.mxu0 0
    %1648 = vmatprep.subr.bf16.mxu0 0
    %1649 = vmatpush1.bf16.xpose.msra.mxu0 0
    %1650 = vmatprep.subr.bf16.mxu0 0
    %1651 = vmatpush1.bf16.xpose.msra.mxu0 0
    %1652 = vmatprep.subr.bf16.mxu0 0
    %1653 = vmatpush1.bf16.xpose.msra.mxu0 0
    %1654 = vmatprep.subr.bf16.mxu0 0
    %1655 = vmatpush1.bf16.xpose.msra.mxu0 0
    %1656 = vmatprep.subr.bf16.mxu0 0
    %1657 = vmatpush1.bf16.xpose.msra.mxu0 0
    %1658 = vmatprep.subr.bf16.mxu0 0
    %1659 = vmatpush1.bf16.xpose.msra.mxu0 %v1562
    %1660 = vmatprep.subr.bf16.mxu0 0
    %1661 = vmatpush1.bf16.xpose.msra.mxu0 %v1559
    %1662 = vmatprep.subr.bf16.mxu0 0
    %1663 = vmatpush2.bf16.xpose.msra.mxu0 0
    %1664 = vmatprep.subr.bf16.mxu0 0
    %1665 = vmatpush2.bf16.xpose.msra.mxu0 0
    %1666 = vmatprep.subr.bf16.mxu0 0
    %1667 = vmatpush2.bf16.xpose.msra.mxu0 0
    %1668 = vmatprep.subr.bf16.mxu0 0
    %1669 = vmatpush2.bf16.xpose.msra.mxu0 0
    %1670 = vmatprep.subr.bf16.mxu0 0
    %1671 = vmatpush2.bf16.xpose.msra.mxu0 0
    %1672 = vmatprep.subr.bf16.mxu0 0
    %1673 = vmatpush2.bf16.xpose.msra.mxu0 0
    %1674 = vmatprep.subr.bf16.mxu0 0
    %1675 = vmatpush2.bf16.xpose.msra.mxu0 0
    %1676 = vmatprep.subr.bf16.mxu0 0
    %1677 = vmatpush2.bf16.xpose.msra.mxu0 0
    %1678 = vmatprep.mubr.bf16.mxu0 0
    %1679 = vmatmul.mubr.bf16.gmra.mxu0 %v1644
    %v1680 = vpop.f32.mrf.mxu0
    %v1681 = vadd.f32 0.0, %v1680
    %v1682 = vpop.f32.mrf.mxu0
    %v1683 = vpop.f32.mrf.mxu0
    %v1684 = vadd.f32 0.0, %v1683
    %v1685 = vpop.f32.mrf.mxu0
    %1686 = vdwg.mxu0
    %v1689 = vrot.slane %v1634, 4
    %v1690 = vrot.slane %v1635, 4
    %v1691 = vsel %vm361, %v1689, %v1690
    %1692 = vrot.lane.b32.xlu0 %v1691, 64
    %v1693 = vpop.permute.xlu0 %1692
    %1694 = vrot.lane.b32.xlu0 %v1690, 64
    %v1695 = vpop.permute.xlu0 %1694
    %v1698 = vsel %vm303, %v1633, %v1693
    %v1699 = vsel %vm303, %v1634, %v1695
    %v1702 = vrot.slane %v1444, 4
    %v1703 = vrot.slane %v1445, 4
    %v1704 = vsel %vm361, %v1702, %v1703
    %1705 = vrot.lane.b32.xlu0 %v1704, 64
    %v1706 = vpop.permute.xlu0 %1705
    %1707 = vrot.lane.b32.xlu0 %v1703, 64
    %v1708 = vpop.permute.xlu0 %1707
    %v1711 = vsel %vm303, %v1443, %v1706
    %v1712 = vsel %vm303, %v1444, %v1708
    %v1713 = vmul.f32 %v1698, %v1711
    %v1714 = vmul.f32 %v1699, %v1712
    %v1715 = vld [vmem:[%s61] sm:$0xff]
    %v1716 = vlaneseq
    %v1717 = vshrl.u32 %v1716, 7
    %v1718 = vsub.s32 0, %v1717
    %v1719 = vrot.slane %v1698, %v1718
    %v1720 = vmul.f32 %v1715, %v1719
    %v1721 = vmul.f32 %v1720, 1.442695
    %v1722 = vpow.pop %v1721
    %v1723 = vlaneseq
    %v1724 = vshrl.u32 %v1723, 7
    %v1725 = vsub.s32 0, %v1724
    %v1726 = vrot.slane %v1713, %v1725
    %1728 = vset.pattern.permute.xlu0 0
    %1729 = vperm.xlu0 %1728, %v1681
    %v1730 = vpop.permute.xlu0 %1729
    %v1732 = vmul.f32 %v1726, %v1730
    %1733 = vset.pattern.permute.xlu0 12
    %1734 = vperm.xlu0 %1733, %v1681
    %v1735 = vpop.permute.xlu0 %1734
    %v1737 = vmul.f32 %v1726, %v1735
    %v1738 = vsel %vm303, %v1732, %v1737
    %1740 = vset.pattern.permute.xlu0 0
    %1741 = vperm.xlu0 %1740, %v1684
    %v1742 = vpop.permute.xlu0 %1741
    %1744 = vset.pattern.permute.xlu0 12
    %1745 = vperm.xlu0 %1744, %v1684
    %v1746 = vpop.permute.xlu0 %1745
    %v1748 = vsel %vm303, %v1742, %v1746
    %v1749 = vlaneseq
    %v1750 = vshrl.u32 %v1749, 7
    %v1751 = vsub.s32 1, %v1750
    %v1752 = vrot.slane %v1698, %v1751
    %v1753 = vmul.f32 %v1715, %v1752
    %v1754 = vmul.f32 %v1753, 1.442695
    %v1755 = vpow.pop %v1754
    %v1756 = vlaneseq
    %v1757 = vshrl.u32 %v1756, 7
    %v1758 = vsub.s32 1, %v1757
    %v1759 = vrot.slane %v1713, %v1758
    %1760 = vset.pattern.permute.xlu0 1
    %1761 = vperm.xlu0 %1760, %v1681
    %v1762 = vpop.permute.xlu0 %1761
    %v1764 = vmul.f32 %v1759, %v1762
    %1765 = vset.pattern.permute.xlu0 13
    %1766 = vperm.xlu0 %1765, %v1681
    %v1767 = vpop.permute.xlu0 %1766
    %v1769 = vmul.f32 %v1759, %v1767
    %v1770 = vsel %vm303, %v1764, %v1769
    %1771 = vset.pattern.permute.xlu0 1
    %1772 = vperm.xlu0 %1771, %v1684
    %v1773 = vpop.permute.xlu0 %1772
    %1775 = vset.pattern.permute.xlu0 13
    %1776 = vperm.xlu0 %1775, %v1684
    %v1777 = vpop.permute.xlu0 %1776
    %v1779 = vsel %vm303, %v1773, %v1777
    %v1780 = vlaneseq
    %v1781 = vshrl.u32 %v1780, 7
    %v1782 = vsub.s32 2, %v1781
    %v1783 = vrot.slane %v1698, %v1782
    %v1784 = vmul.f32 %v1715, %v1783
    %v1785 = vmul.f32 %v1784, 1.442695
    %v1786 = vpow.pop %v1785
    %v1787 = vlaneseq
    %v1788 = vshrl.u32 %v1787, 7
    %v1789 = vsub.s32 2, %v1788
    %v1790 = vrot.slane %v1713, %v1789
    %1791 = vset.pattern.permute.xlu0 2
    %1792 = vperm.xlu0 %1791, %v1681
    %v1793 = vpop.permute.xlu0 %1792
    %v1795 = vmul.f32 %v1790, %v1793
    %1796 = vset.pattern.permute.xlu0 14
    %1797 = vperm.xlu0 %1796, %v1681
    %v1798 = vpop.permute.xlu0 %1797
    %v1800 = vmul.f32 %v1790, %v1798
    %v1801 = vsel %vm303, %v1795, %v1800
    %1802 = vset.pattern.permute.xlu0 2
    %1803 = vperm.xlu0 %1802, %v1684
    %v1804 = vpop.permute.xlu0 %1803
    %1806 = vset.pattern.permute.xlu0 14
    %1807 = vperm.xlu0 %1806, %v1684
    %v1808 = vpop.permute.xlu0 %1807
    %v1810 = vsel %vm303, %v1804, %v1808
    %v1811 = vlaneseq
    %v1812 = vshrl.u32 %v1811, 7
    %v1813 = vsub.s32 3, %v1812
    %v1814 = vrot.slane %v1698, %v1813
    %v1815 = vmul.f32 %v1715, %v1814
    %v1816 = vmul.f32 %v1815, 1.442695
    %v1817 = vpow.pop %v1816
    %v1818 = vlaneseq
    %v1819 = vshrl.u32 %v1818, 7
    %v1820 = vsub.s32 3, %v1819
    %v1821 = vrot.slane %v1713, %v1820
    %1822 = vset.pattern.permute.xlu0 3
    %1823 = vperm.xlu0 %1822, %v1681
    %v1824 = vpop.permute.xlu0 %1823
    %v1826 = vmul.f32 %v1821, %v1824
    %1827 = vset.pattern.permute.xlu0 15
    %1828 = vperm.xlu0 %1827, %v1681
    %v1829 = vpop.permute.xlu0 %1828
    %v1831 = vmul.f32 %v1821, %v1829
    %v1832 = vsel %vm303, %v1826, %v1831
    %1833 = vset.pattern.permute.xlu0 3
    %1834 = vperm.xlu0 %1833, %v1684
    %v1835 = vpop.permute.xlu0 %1834
    %1837 = vset.pattern.permute.xlu0 15
    %1838 = vperm.xlu0 %1837, %v1684
    %v1839 = vpop.permute.xlu0 %1838
    %v1841 = vsel %vm303, %v1835, %v1839
    %v1842 = vlaneseq
    %v1843 = vshrl.u32 %v1842, 7
    %v1844 = vsub.s32 4, %v1843
    %v1845 = vrot.slane %v1698, %v1844
    %v1846 = vmul.f32 %v1715, %v1845
    %v1847 = vmul.f32 %v1846, 1.442695
    %v1848 = vpow.pop %v1847
    %v1849 = vlaneseq
    %v1850 = vshrl.u32 %v1849, 7
    %v1851 = vsub.s32 4, %v1850
    %v1852 = vrot.slane %v1713, %v1851
    %1853 = vset.pattern.permute.xlu0 4
    %1854 = vperm.xlu0 %1853, %v1681
    %v1855 = vpop.permute.xlu0 %1854
    %v1857 = vmul.f32 %v1852, %v1855
    %1858 = vset.pattern.permute.xlu0 16
    %1859 = vperm.xlu0 %1858, %v1681
    %v1860 = vpop.permute.xlu0 %1859
    %v1862 = vmul.f32 %v1852, %v1860
    %v1863 = vsel %vm303, %v1857, %v1862
    %1864 = vset.pattern.permute.xlu0 4
    %1865 = vperm.xlu0 %1864, %v1684
    %v1866 = vpop.permute.xlu0 %1865
    %1868 = vset.pattern.permute.xlu0 16
    %1869 = vperm.xlu0 %1868, %v1684
    %v1870 = vpop.permute.xlu0 %1869
    %v1872 = vsel %vm303, %v1866, %v1870
    %v1873 = vlaneseq
    %v1874 = vshrl.u32 %v1873, 7
    %v1875 = vsub.s32 5, %v1874
    %v1876 = vrot.slane %v1698, %v1875
    %v1877 = vmul.f32 %v1715, %v1876
    %v1878 = vmul.f32 %v1877, 1.442695
    %v1879 = vpow.pop %v1878
    %v1880 = vlaneseq
    %v1881 = vshrl.u32 %v1880, 7
    %v1882 = vsub.s32 5, %v1881
    %v1883 = vrot.slane %v1713, %v1882
    %1884 = vset.pattern.permute.xlu0 5
    %1885 = vperm.xlu0 %1884, %v1681
    %v1886 = vpop.permute.xlu0 %1885
    %v1888 = vmul.f32 %v1883, %v1886
    %1889 = vset.pattern.permute.xlu0 17
    %1890 = vperm.xlu0 %1889, %v1681
    %v1891 = vpop.permute.xlu0 %1890
    %v1893 = vmul.f32 %v1883, %v1891
    %v1894 = vsel %vm303, %v1888, %v1893
    %1895 = vset.pattern.permute.xlu0 5
    %1896 = vperm.xlu0 %1895, %v1684
    %v1897 = vpop.permute.xlu0 %1896
    %1899 = vset.pattern.permute.xlu0 17
    %1900 = vperm.xlu0 %1899, %v1684
    %v1901 = vpop.permute.xlu0 %1900
    %v1903 = vsel %vm303, %v1897, %v1901
    %v1904 = vlaneseq
    %v1905 = vshrl.u32 %v1904, 7
    %v1906 = vsub.s32 6, %v1905
    %v1907 = vrot.slane %v1698, %v1906
    %v1908 = vmul.f32 %v1715, %v1907
    %v1909 = vmul.f32 %v1908, 1.442695
    %v1910 = vpow.pop %v1909
    %v1911 = vlaneseq
    %v1912 = vshrl.u32 %v1911, 7
    %v1913 = vsub.s32 6, %v1912
    %v1914 = vrot.slane %v1713, %v1913
    %1915 = vset.pattern.permute.xlu0 6
    %1916 = vperm.xlu0 %1915, %v1681
    %v1917 = vpop.permute.xlu0 %1916
    %v1919 = vmul.f32 %v1914, %v1917
    %1920 = vset.pattern.permute.xlu0 18
    %1921 = vperm.xlu0 %1920, %v1681
    %v1922 = vpop.permute.xlu0 %1921
    %v1924 = vmul.f32 %v1914, %v1922
    %v1925 = vsel %vm303, %v1919, %v1924
    %1926 = vset.pattern.permute.xlu0 6
    %1927 = vperm.xlu0 %1926, %v1684
    %v1928 = vpop.permute.xlu0 %1927
    %1930 = vset.pattern.permute.xlu0 18
    %1931 = vperm.xlu0 %1930, %v1684
    %v1932 = vpop.permute.xlu0 %1931
    %v1934 = vsel %vm303, %v1928, %v1932
    %v1935 = vlaneseq
    %v1936 = vshrl.u32 %v1935, 7
    %v1937 = vsub.s32 7, %v1936
    %v1938 = vrot.slane %v1698, %v1937
    %v1939 = vmul.f32 %v1715, %v1938
    %v1940 = vmul.f32 %v1939, 1.442695
    %v1941 = vpow.pop %v1940
    %v1942 = vlaneseq
    %v1943 = vshrl.u32 %v1942, 7
    %v1944 = vsub.s32 7, %v1943
    %v1945 = vrot.slane %v1713, %v1944
    %1946 = vset.pattern.permute.xlu0 7
    %1947 = vperm.xlu0 %1946, %v1681
    %v1948 = vpop.permute.xlu0 %1947
    %v1950 = vmul.f32 %v1945, %v1948
    %1951 = vset.pattern.permute.xlu0 19
    %1952 = vperm.xlu0 %1951, %v1681
    %v1953 = vpop.permute.xlu0 %1952
    %v1955 = vmul.f32 %v1945, %v1953
    %v1956 = vsel %vm303, %v1950, %v1955
    %1957 = vset.pattern.permute.xlu0 7
    %1958 = vperm.xlu0 %1957, %v1684
    %v1959 = vpop.permute.xlu0 %1958
    %1961 = vset.pattern.permute.xlu0 19
    %1962 = vperm.xlu0 %1961, %v1684
    %v1963 = vpop.permute.xlu0 %1962
    %v1965 = vsel %vm303, %v1959, %v1963
    %v1966 = vlaneseq
    %v1967 = vshrl.u32 %v1966, 7
    %v1968 = vsub.s32 0, %v1967
    %v1969 = vrot.slane %v1699, %v1968
    %v1970 = vmul.f32 %v1715, %v1969
    %v1971 = vmul.f32 %v1970, 1.442695
    %v1972 = vpow.pop %v1971
    %v1973 = vlaneseq
    %v1974 = vshrl.u32 %v1973, 7
    %v1975 = vsub.s32 0, %v1974
    %v1976 = vrot.slane %v1714, %v1975
    %1977 = vset.pattern.permute.xlu0 8
    %1978 = vperm.xlu0 %1977, %v1681
    %v1979 = vpop.permute.xlu0 %1978
    %v1981 = vmul.f32 %v1976, %v1979
    %1982 = vset.pattern.permute.xlu0 20
    %1983 = vperm.xlu0 %1982, %v1681
    %v1984 = vpop.permute.xlu0 %1983
    %v1986 = vmul.f32 %v1976, %v1984
    %v1987 = vsel %vm303, %v1981, %v1986
    %1988 = vset.pattern.permute.xlu0 8
    %1989 = vperm.xlu0 %1988, %v1684
    %v1990 = vpop.permute.xlu0 %1989
    %1992 = vset.pattern.permute.xlu0 20
    %1993 = vperm.xlu0 %1992, %v1684
    %v1994 = vpop.permute.xlu0 %1993
    %v1996 = vsel %vm303, %v1990, %v1994
    %v1997 = vlaneseq
    %v1998 = vshrl.u32 %v1997, 7
    %v1999 = vsub.s32 1, %v1998
    %v2000 = vrot.slane %v1699, %v1999
    %v2001 = vmul.f32 %v1715, %v2000
    %v2002 = vmul.f32 %v2001, 1.442695
    %v2003 = vpow.pop %v2002
    %v2004 = vlaneseq
    %v2005 = vshrl.u32 %v2004, 7
    %v2006 = vsub.s32 1, %v2005
    %v2007 = vrot.slane %v1714, %v2006
    %2008 = vset.pattern.permute.xlu0 9
    %2009 = vperm.xlu0 %2008, %v1681
    %v2010 = vpop.permute.xlu0 %2009
    %v2012 = vmul.f32 %v2007, %v2010
    %2013 = vset.pattern.permute.xlu0 21
    %2014 = vperm.xlu0 %2013, %v1681
    %v2015 = vpop.permute.xlu0 %2014
    %v2017 = vmul.f32 %v2007, %v2015
    %v2018 = vsel %vm303, %v2012, %v2017
    %2019 = vset.pattern.permute.xlu0 9
    %2020 = vperm.xlu0 %2019, %v1684
    %v2021 = vpop.permute.xlu0 %2020
    %2023 = vset.pattern.permute.xlu0 21
    %2024 = vperm.xlu0 %2023, %v1684
    %v2025 = vpop.permute.xlu0 %2024
    %v2027 = vsel %vm303, %v2021, %v2025
    %v2028 = vlaneseq
    %v2029 = vshrl.u32 %v2028, 7
    %v2030 = vsub.s32 2, %v2029
    %v2031 = vrot.slane %v1699, %v2030
    %v2032 = vmul.f32 %v1715, %v2031
    %v2033 = vmul.f32 %v2032, 1.442695
    %v2034 = vpow.pop %v2033
    %v2035 = vlaneseq
    %v2036 = vshrl.u32 %v2035, 7
    %v2037 = vsub.s32 2, %v2036
    %v2038 = vrot.slane %v1714, %v2037
    %2039 = vset.pattern.permute.xlu0 10
    %2040 = vperm.xlu0 %2039, %v1681
    %v2041 = vpop.permute.xlu0 %2040
    %v2043 = vmul.f32 %v2038, %v2041
    %2044 = vset.pattern.permute.xlu0 22
    %2045 = vperm.xlu0 %2044, %v1681
    %v2046 = vpop.permute.xlu0 %2045
    %v2048 = vmul.f32 %v2038, %v2046
    %v2049 = vsel %vm303, %v2043, %v2048
    %2050 = vset.pattern.permute.xlu0 10
    %2051 = vperm.xlu0 %2050, %v1684
    %v2052 = vpop.permute.xlu0 %2051
    %2054 = vset.pattern.permute.xlu0 22
    %2055 = vperm.xlu0 %2054, %v1684
    %v2056 = vpop.permute.xlu0 %2055
    %v2058 = vsel %vm303, %v2052, %v2056
    %v2059 = vlaneseq
    %v2060 = vshrl.u32 %v2059, 7
    %v2061 = vsub.s32 3, %v2060
    %v2062 = vrot.slane %v1699, %v2061
    %v2063 = vmul.f32 %v1715, %v2062
    %v2064 = vmul.f32 %v2063, 1.442695
    %v2065 = vpow.pop %v2064
    %v2066 = vlaneseq
    %v2067 = vshrl.u32 %v2066, 7
    %v2068 = vsub.s32 3, %v2067
    %v2069 = vrot.slane %v1714, %v2068
    %2070 = vset.pattern.permute.xlu0 11
    %2071 = vperm.xlu0 %2070, %v1681
    %v2072 = vpop.permute.xlu0 %2071
    %v2074 = vmul.f32 %v2069, %v2072
    %2075 = vset.pattern.permute.xlu0 23
    %2076 = vperm.xlu0 %2075, %v1681
    %v2077 = vpop.permute.xlu0 %2076
    %v2079 = vmul.f32 %v2069, %v2077
    %v2080 = vsel %vm303, %v2074, %v2079
    %2081 = vset.pattern.permute.xlu0 11
    %2082 = vperm.xlu0 %2081, %v1684
    %v2083 = vpop.permute.xlu0 %2082
    %2085 = vset.pattern.permute.xlu0 23
    %2086 = vperm.xlu0 %2085, %v1684
    %v2087 = vpop.permute.xlu0 %2086
    %v2089 = vsel %vm303, %v2083, %v2087
    %v2090 = vmul.f32 %v1722, 0.0
    %v2091 = vadd.f32 %v2090, %v1738
    %v2092 = vmul.f32 %v2091, %v1748
    %v2093 = vrot.slane %v2092, 4
    %v2094 = vadd.f32 %v2092, %v2093
    %v2095 = vrot.slane %v2094, 2
    %v2096 = vadd.f32 %v2094, %v2095
    %v2097 = vrot.slane %v2096, 1
    %v2098 = vadd.f32 %v2096, %v2097
    %2099 = vst [vmem:[#allocation5] sm:$0x1] %v2098
    %v2100 = vmul.f32 %v1755, %v2091
    %v2101 = vadd.f32 %v2100, %v1770
    %v2102 = vmul.f32 %v2101, %v1779
    %v2103 = vrot.slane %v2102, 4
    %v2104 = vadd.f32 %v2102, %v2103
    %v2105 = vrot.slane %v2104, 2
    %v2106 = vadd.f32 %v2104, %v2105
    %v2107 = vrot.slane %v2106, 1
    %v2108 = vadd.f32 %v2106, %v2107
    %2109 = vst [vmem:[#allocation5 + $0x1] sm:$0x1] %v2108
    %v2110 = vmul.f32 %v1786, %v2101
    %v2111 = vadd.f32 %v2110, %v1801
    %v2112 = vmul.f32 %v2111, %v1810
    %v2113 = vrot.slane %v2112, 4
    %v2114 = vadd.f32 %v2112, %v2113
    %v2115 = vrot.slane %v2114, 2
    %v2116 = vadd.f32 %v2114, %v2115
    %v2117 = vrot.slane %v2116, 1
    %v2118 = vadd.f32 %v2116, %v2117
    %2119 = vst [vmem:[#allocation5 + $0x2] sm:$0x1] %v2118
    %v2120 = vmul.f32 %v1817, %v2111
    %v2121 = vadd.f32 %v2120, %v1832
    %v2122 = vmul.f32 %v2121, %v1841
    %v2123 = vrot.slane %v2122, 4
    %v2124 = vadd.f32 %v2122, %v2123
    %v2125 = vrot.slane %v2124, 2
    %v2126 = vadd.f32 %v2124, %v2125
    %v2127 = vrot.slane %v2126, 1
    %v2128 = vadd.f32 %v2126, %v2127
    %2129 = vst [vmem:[#allocation5 + $0x3] sm:$0x1] %v2128
    %v2130 = vmul.f32 %v1848, %v2121
    %v2131 = vadd.f32 %v2130, %v1863
    %v2132 = vmul.f32 %v2131, %v1872
    %v2133 = vrot.slane %v2132, 4
    %v2134 = vadd.f32 %v2132, %v2133
    %v2135 = vrot.slane %v2134, 2
    %v2136 = vadd.f32 %v2134, %v2135
    %v2137 = vrot.slane %v2136, 1
    %v2138 = vadd.f32 %v2136, %v2137
    %2139 = vst [vmem:[#allocation5 + $0x4] sm:$0x1] %v2138
    %v2140 = vmul.f32 %v1879, %v2131
    %v2141 = vadd.f32 %v2140, %v1894
    %v2142 = vmul.f32 %v2141, %v1903
    %v2143 = vrot.slane %v2142, 4
    %v2144 = vadd.f32 %v2142, %v2143
    %v2145 = vrot.slane %v2144, 2
    %v2146 = vadd.f32 %v2144, %v2145
    %v2147 = vrot.slane %v2146, 1
    %v2148 = vadd.f32 %v2146, %v2147
    %2149 = vst [vmem:[#allocation5 + $0x5] sm:$0x1] %v2148
    %v2150 = vmul.f32 %v1910, %v2141
    %v2151 = vadd.f32 %v2150, %v1925
    %v2152 = vmul.f32 %v2151, %v1934
    %v2153 = vrot.slane %v2152, 4
    %v2154 = vadd.f32 %v2152, %v2153
    %v2155 = vrot.slane %v2154, 2
    %v2156 = vadd.f32 %v2154, %v2155
    %v2157 = vrot.slane %v2156, 1
    %v2158 = vadd.f32 %v2156, %v2157
    %2159 = vst [vmem:[#allocation5 + $0x6] sm:$0x1] %v2158
    %v2160 = vmul.f32 %v1941, %v2151
    %v2161 = vadd.f32 %v2160, %v1956
    %v2162 = vmul.f32 %v2161, %v1965
    %v2163 = vrot.slane %v2162, 4
    %v2164 = vadd.f32 %v2162, %v2163
    %v2165 = vrot.slane %v2164, 2
    %v2166 = vadd.f32 %v2164, %v2165
    %v2167 = vrot.slane %v2166, 1
    %v2168 = vadd.f32 %v2166, %v2167
    %2169 = vst [vmem:[#allocation5 + $0x7] sm:$0x1] %v2168
    %v2170 = vmul.f32 %v1972, %v2161
    %v2171 = vadd.f32 %v2170, %v1987
    %v2172 = vmul.f32 %v2171, %v1996
    %v2173 = vrot.slane %v2172, 4
    %v2174 = vadd.f32 %v2172, %v2173
    %v2175 = vrot.slane %v2174, 2
    %v2176 = vadd.f32 %v2174, %v2175
    %v2177 = vrot.slane %v2176, 1
    %v2178 = vadd.f32 %v2176, %v2177
    %2179 = vst [vmem:[#allocation5 + $0x8] sm:$0x1] %v2178
    %v2180 = vmul.f32 %v2003, %v2171
    %v2181 = vadd.f32 %v2180, %v2018
    %v2182 = vmul.f32 %v2181, %v2027
    %v2183 = vrot.slane %v2182, 4
    %v2184 = vadd.f32 %v2182, %v2183
    %v2185 = vrot.slane %v2184, 2
    %v2186 = vadd.f32 %v2184, %v2185
    %v2187 = vrot.slane %v2186, 1
    %v2188 = vadd.f32 %v2186, %v2187
    %2189 = vst [vmem:[#allocation5 + $0x9] sm:$0x1] %v2188
    %v2190 = vmul.f32 %v2034, %v2181
    %v2191 = vadd.f32 %v2190, %v2049
    %v2192 = vmul.f32 %v2191, %v2058
    %v2193 = vrot.slane %v2192, 4
    %v2194 = vadd.f32 %v2192, %v2193
    %v2195 = vrot.slane %v2194, 2
    %v2196 = vadd.f32 %v2194, %v2195
    %v2197 = vrot.slane %v2196, 1
    %v2198 = vadd.f32 %v2196, %v2197
    %2199 = vst [vmem:[#allocation5 + $0xa] sm:$0x1] %v2198
    %v2200 = vmul.f32 %v2065, %v2191
    %v2201 = vadd.f32 %v2200, %v2080
    %v2202 = vmul.f32 %v2201, %v2089
    %v2203 = vrot.slane %v2202, 4
    %v2204 = vadd.f32 %v2202, %v2203
    %v2205 = vrot.slane %v2204, 2
    %v2206 = vadd.f32 %v2204, %v2205
    %v2207 = vrot.slane %v2206, 1
    %v2208 = vadd.f32 %v2206, %v2207
    %2209 = vst [vmem:[#allocation5 + $0xb] sm:$0x1] %v2208
    %v2210 = vld [vmem:[%s63] sm:$0x1]
    %v2211 = vld [vmem:[%s65] sm:$0xf]
    %v2212 = vld [vmem:[%s65 + $0x4] sm:$0xf]
    %v2213 = vld [vmem:[%s65 + $0x8] sm:$0xf]
    %v2214 = vld [vmem:[%s65 + $0xc] sm:$0xf]
    %v2215 = vld [vmem:[%s65 + $0x10] sm:$0xf]
    %v2216 = vld [vmem:[%s65 + $0x14] sm:$0xf]
    %v2217 = vld [vmem:[%s65 + $0x18] sm:$0xf]
    %v2218 = vld [vmem:[%s65 + $0x1c] sm:$0xf]
    %v2219 = vld [vmem:[#allocation9] sm:$0x1]
    %v2220 = vld [vmem:[#allocation5] sm:$0xff]
    %v2221 = vld [vmem:[#allocation5 + $0x8] sm:$0xf]
    %v2223 = vlaneseq
    %v2224 = vshrl.u32 %v2223, 7
    %v2225 = vsub.s32 0, %v2224
    %v2226 = vrot.slane %v2210, %v2225
    %v2228 = vmul.f32 %v1443, %v2226
    %v2229 = vmul.f32 %v1444, %v2226
    %v2230 = vadd.f32 %v2220, %v2228
    %v2231 = vadd.f32 %v2221, %v2229
    %v2232 = vand.u32 2147483647, %v1504
    %v2233 = vand.u32 2147483647, %v1507
    %v2234 = vsub.f32 0.0, %v2232
    %v2235 = vsub.f32 0.0, %v2233
    %v2236 = vmul.f32 %v2234, 1.442695
    %v2237 = vpow.pop %v2236
    %v2238 = vmul.f32 %v2235, 1.442695
    %v2239 = vpow.pop %v2238
    %v2240 = vadd.f32 %v2237, 1.0
    %v2241 = vadd.f32 %v2239, 1.0
    %v2242 = vrcp.pop %v2240
    %v2243 = vmul.f32 1.0, %v2242
    %v2244 = vrcp.pop %v2241
    %v2245 = vmul.f32 1.0, %v2244
    %vm2246 = vcmp.ge.f32.partialorder %v1504, 0.0
    %vm2247 = vcmp.ge.f32.partialorder %v1507, 0.0
    %v2248 = vmul.f32 %v2237, %v2243
    %v2249 = vmul.f32 %v2239, %v2245
    %v2250 = vsel %vm2246, %v2243, %v2248
    %v2251 = vsel %vm2247, %v2245, %v2249
    %v2252 = vmul.f32 %v1504, %v2250
    %v2253 = vmul.f32 %v1507, %v2251
    %v2254 = vmul.f32 %v2230, %v2252
    %v2255 = vmul.f32 %v2231, %v2253
    %v2256 = vpack.c.bf16 %v2255, %v2254
    %v2258 = vlaneseq
    %v2259 = vshrl.u32 %v2258, 7
    %v2260 = vsub.s32 0, %v2259
    %v2261 = vrot.slane %v2219, %v2260
    %v2271 = vunpack.c.l.b16 %v2211
    %v2272 = vunpack.c.l.b16 %v2212
    %v2273 = vunpack.c.l.b16 %v2213
    %v2274 = vunpack.c.l.b16 %v2214
    %v2275 = vunpack.c.l.b16 %v2215
    %v2276 = vunpack.c.l.b16 %v2216
    %v2277 = vunpack.c.l.b16 %v2217
    %v2278 = vunpack.c.l.b16 %v2218
    %v2279 = vpack.c.b16 %v2272, %v2271
    %v2280 = vpack.c.b16 %v2274, %v2273
    %v2281 = vpack.c.b16 %v2276, %v2275
    %v2282 = vpack.c.b16 %v2278, %v2277
    %v2288 = vsel %vm303, %v2256, 0
    %2290 = vmatprep.subr.bf16.mxu0 0
    %2291 = vmatpush1.bf16.msra.mxu0 0
    %2292 = vmatprep.subr.bf16.mxu0 0
    %2293 = vmatpush1.bf16.msra.mxu0 0
    %2294 = vmatprep.subr.bf16.mxu0 0
    %2295 = vmatpush1.bf16.msra.mxu0 0
    %2296 = vmatprep.subr.bf16.mxu0 0
    %2297 = vmatpush1.bf16.msra.mxu0 0
    %2298 = vmatprep.subr.bf16.mxu0 0
    %2299 = vmatpush1.bf16.msra.mxu0 %v2282
    %2300 = vmatprep.subr.bf16.mxu0 0
    %2301 = vmatpush1.bf16.msra.mxu0 %v2281
    %2302 = vmatprep.subr.bf16.mxu0 0
    %2303 = vmatpush1.bf16.msra.mxu0 %v2280
    %2304 = vmatprep.subr.bf16.mxu0 0
    %2305 = vmatpush1.bf16.msra.mxu0 %v2279
    %2306 = vmatprep.subr.bf16.mxu0 0
    %2307 = vmatpush2.bf16.msra.mxu0 0
    %2308 = vmatprep.subr.bf16.mxu0 0
    %2309 = vmatpush2.bf16.msra.mxu0 0
    %2310 = vmatprep.subr.bf16.mxu0 0
    %2311 = vmatpush2.bf16.msra.mxu0 0
    %2312 = vmatprep.subr.bf16.mxu0 0
    %2313 = vmatpush2.bf16.msra.mxu0 0
    %2314 = vmatprep.subr.bf16.mxu0 0
    %2315 = vmatpush2.bf16.msra.mxu0 0
    %2316 = vmatprep.subr.bf16.mxu0 0
    %2317 = vmatpush2.bf16.msra.mxu0 0
    %2318 = vmatprep.subr.bf16.mxu0 0
    %2319 = vmatpush2.bf16.msra.mxu0 0
    %2320 = vmatprep.subr.bf16.mxu0 0
    %2321 = vmatpush2.bf16.msra.mxu0 0
    %2322 = vmatprep.mubr.bf16.mxu0 0
    %2323 = vmatmul.mubr.bf16.gmra.mxu0 %v2288
    %v2324 = vpop.f32.mrf.mxu0
    %v2325 = vpop.f32.mrf.mxu0
    %v2326 = vpop.f32.mrf.mxu0
    %v2327 = vadd.f32 %v2261, %v2326
    %v2328 = vpop.f32.mrf.mxu0
    %2329 = vdwg.mxu0
    %v2330 = vmul.f32 %v1445, %v2226
    %v2333 = vrot.slane %v2229, 4
    %v2334 = vrot.slane %v2330, 4
    %v2335 = vsel %vm361, %v2333, %v2334
    %2336 = vrot.lane.b32.xlu0 %v2335, 64
    %v2337 = vpop.permute.xlu0 %2336
    %2338 = vrot.lane.b32.xlu0 %v2334, 64
    %v2339 = vpop.permute.xlu0 %2338
    %v2342 = vadd.f32 %v2220, %v2337
    %v2343 = vadd.f32 %v2221, %v2339
    %v2344 = vand.u32 2147483647, %v1512
    %v2345 = vsub.f32 0.0, %v2344
    %v2346 = vmul.f32 %v2345, 1.442695
    %v2347 = vpow.pop %v2346
    %v2348 = vadd.f32 %v2347, 1.0
    %v2349 = vrcp.pop %v2348
    %v2350 = vmul.f32 1.0, %v2349
    %vm2351 = vcmp.ge.f32.partialorder %v1512, 0.0
    %v2352 = vmul.f32 %v2347, %v2350
    %v2353 = vsel %vm2351, %v2350, %v2352
    %v2354 = vmul.f32 %v1512, %v2353
    %v2357 = vrot.slane %v2253, 4
    %v2358 = vrot.slane %v2354, 4
    %v2359 = vsel %vm361, %v2357, %v2358
    %2360 = vrot.lane.b32.xlu0 %v2359, 64
    %v2361 = vpop.permute.xlu0 %2360
    %2362 = vrot.lane.b32.xlu0 %v2358, 64
    %v2363 = vpop.permute.xlu0 %2362
    %v2366 = vmul.f32 %v2342, %v2361
    %v2367 = vmul.f32 %v2343, %v2363
    %v2368 = vpack.c.bf16 %v2367, %v2366
    %2370 = vrot.lane.b32.xlu0 %v2368, 64
    %v2371 = vpop.permute.xlu0 %2370
    %v2373 = vsel %vm303, %v2371, 0
    %2375 = vmatprep.subr.bf16.mxu0 0
    %2376 = vmatpush1.bf16.msra.mxu0 0
    %2377 = vmatprep.subr.bf16.mxu0 0
    %2378 = vmatpush1.bf16.msra.mxu0 0
    %2379 = vmatprep.subr.bf16.mxu0 0
    %2380 = vmatpush1.bf16.msra.mxu0 0
    %2381 = vmatprep.subr.bf16.mxu0 0
    %2382 = vmatpush1.bf16.msra.mxu0 0
    %2383 = vmatprep.subr.bf16.mxu0 0
    %2384 = vmatpush1.bf16.msra.mxu0 %v2282
    %2385 = vmatprep.subr.bf16.mxu0 0
    %2386 = vmatpush1.bf16.msra.mxu0 %v2281
    %2387 = vmatprep.subr.bf16.mxu0 0
    %2388 = vmatpush1.bf16.msra.mxu0 %v2280
    %2389 = vmatprep.subr.bf16.mxu0 0
    %2390 = vmatpush1.bf16.msra.mxu0 %v2279
    %2391 = vmatprep.subr.bf16.mxu0 0
    %2392 = vmatpush2.bf16.msra.mxu0 0
    %2393 = vmatprep.subr.bf16.mxu0 0
    %2394 = vmatpush2.bf16.msra.mxu0 0
    %2395 = vmatprep.subr.bf16.mxu0 0
    %2396 = vmatpush2.bf16.msra.mxu0 0
    %2397 = vmatprep.subr.bf16.mxu0 0
    %2398 = vmatpush2.bf16.msra.mxu0 0
    %2399 = vmatprep.subr.bf16.mxu0 0
    %2400 = vmatpush2.bf16.msra.mxu0 0
    %2401 = vmatprep.subr.bf16.mxu0 0
    %2402 = vmatpush2.bf16.msra.mxu0 0
    %2403 = vmatprep.subr.bf16.mxu0 0
    %2404 = vmatpush2.bf16.msra.mxu0 0
    %2405 = vmatprep.subr.bf16.mxu0 0
    %2406 = vmatpush2.bf16.msra.mxu0 0
    %2407 = vmatprep.mubr.bf16.mxu0 0
    %2408 = vmatmul.mubr.bf16.gmra.mxu0 %v2373
    %v2409 = vpop.f32.mrf.mxu0
    %v2410 = vpop.f32.mrf.mxu0
    %v2411 = vpop.f32.mrf.mxu0
    %v2412 = vadd.f32 %v2261, %v2411
    %v2413 = vpop.f32.mrf.mxu0
    %2414 = vdwg.mxu0
    %v2415 = vld [vmem:[%s69] sm:$0xf]
    %v2416 = vld [vmem:[%s69 + $0x4] sm:$0xf]
    %v2417 = vld [vmem:[%s69 + $0x8] sm:$0xf]
    %v2418 = vld [vmem:[%s69 + $0xc] sm:$0xf]
    %v2419 = vld [vmem:[%s71] sm:$0x1]
    %v2420 = vld [vmem:[%s73] sm:$0xf]
    %v2421 = vld [vmem:[%s73 + $0x4] sm:$0xf]
    %v2422 = vld [vmem:[%s73 + $0x8] sm:$0xf]
    %v2423 = vld [vmem:[%s73 + $0xc] sm:$0xf]
    %v2424 = vld [vmem:[%s73 + $0x10] sm:$0xf]
    %v2425 = vld [vmem:[%s73 + $0x14] sm:$0xf]
    %v2426 = vld [vmem:[%s73 + $0x18] sm:$0xf]
    %v2427 = vld [vmem:[%s73 + $0x1c] sm:$0xf]
    %v2428 = vld [vmem:[%s73 + $0x20] sm:$0xf]
    %v2429 = vld [vmem:[%s73 + $0x24] sm:$0xf]
    %v2430 = vld [vmem:[%s73 + $0x28] sm:$0xf]
    %v2431 = vld [vmem:[%s73 + $0x2c] sm:$0xf]
    %v2432 = vld [vmem:[%s73 + $0x30] sm:$0xf]
    %v2433 = vld [vmem:[%s73 + $0x34] sm:$0xf]
    %v2434 = vld [vmem:[%s73 + $0x38] sm:$0xf]
    %v2435 = vld [vmem:[%s73 + $0x3c] sm:$0xf]
    %v2436 = vld [vmem:[%s75] sm:$0x1]
    %v2437 = vpack.c.bf16 %v2327, %v2327
    %v2439 = vlaneseq
    %v2440 = vshrl.u32 %v2439, 7
    %v2441 = vsub.s32 0, %v2440
    %v2442 = vrot.slane %v2419, %v2441
    %v2448 = vunpack.c.l.b16 %v2415
    %v2449 = vunpack.c.l.b16 %v2416
    %v2450 = vunpack.c.l.b16 %v2417
    %v2451 = vunpack.c.l.b16 %v2418
    %v2452 = vpack.c.b16 %v2449, %v2448
    %v2453 = vpack.c.b16 %v2451, %v2450
    %v2457 = vsel %vm209, %v2437, 0
    %2459 = vmatprep.subr.bf16.mxu0 0
    %2460 = vmatpush1.bf16.msra.mxu0 0
    %2461 = vmatprep.subr.bf16.mxu0 0
    %2462 = vmatpush1.bf16.msra.mxu0 0
    %2463 = vmatprep.subr.bf16.mxu0 0
    %2464 = vmatpush1.bf16.msra.mxu0 0
    %2465 = vmatprep.subr.bf16.mxu0 0
    %2466 = vmatpush1.bf16.msra.mxu0 0
    %2467 = vmatprep.subr.bf16.mxu0 0
    %2468 = vmatpush1.bf16.msra.mxu0 0
    %2469 = vmatprep.subr.bf16.mxu0 0
    %2470 = vmatpush1.bf16.msra.mxu0 0
    %2471 = vmatprep.subr.bf16.mxu0 0
    %2472 = vmatpush1.bf16.msra.mxu0 %v2453
    %2473 = vmatprep.subr.bf16.mxu0 0
    %2474 = vmatpush1.bf16.msra.mxu0 %v2452
    %2475 = vmatprep.subr.bf16.mxu0 0
    %2476 = vmatpush2.bf16.msra.mxu0 0
    %2477 = vmatprep.subr.bf16.mxu0 0
    %2478 = vmatpush2.bf16.msra.mxu0 0
    %2479 = vmatprep.subr.bf16.mxu0 0
    %2480 = vmatpush2.bf16.msra.mxu0 0
    %2481 = vmatprep.subr.bf16.mxu0 0
    %2482 = vmatpush2.bf16.msra.mxu0 0
    %2483 = vmatprep.subr.bf16.mxu0 0
    %2484 = vmatpush2.bf16.msra.mxu0 0
    %2485 = vmatprep.subr.bf16.mxu0 0
    %2486 = vmatpush2.bf16.msra.mxu0 0
    %2487 = vmatprep.subr.bf16.mxu0 0
    %2488 = vmatpush2.bf16.msra.mxu0 0
    %2489 = vmatprep.subr.bf16.mxu0 0
    %2490 = vmatpush2.bf16.msra.mxu0 0
    %2491 = vmatprep.mubr.bf16.mxu0 0
    %2492 = vmatmul.mubr.bf16.gmra.mxu0 %v2457
    %v2493 = vpop.f32.mrf.mxu0
    %v2494 = vadd.f32 %v2442, %v2493
    %v2495 = vpop.f32.mrf.mxu0
    %v2496 = vpop.f32.mrf.mxu0
    %v2497 = vpop.f32.mrf.mxu0
    %2498 = vdwg.mxu0
    %v2499 = vmul.f32 %v2494, 0.5
    %v2500 = vmul.f32 %v2494, 0.70710677
    %vm2501 = vcmp.ge.f32.partialorder %v2500, 0.0
    %v2502 = vsel %vm2501, 1.0, -1.0
    %v2503 = vand.u32 2147483647, %v2500
    %v2504 = vmul.f32 %v2503, 0.3275911
    %v2505 = vadd.f32 %v2504, 1.0
    %v2506 = vrcp.pop %v2505
    %v2507 = vmul.f32 1.0, %v2506
    %v2508 = vmul.f32 %v2507, 1.0614054
    %v2509 = vadd.f32 %v2508, -1.4531521
    %v2510 = vmul.f32 %v2509, %v2507
    %v2511 = vadd.f32 %v2510, 1.4214138
    %v2512 = vmul.f32 %v2511, %v2507
    %v2513 = vadd.f32 %v2512, -0.28449672
    %v2514 = vmul.f32 %v2513, %v2507
    %v2515 = vadd.f32 %v2514, 0.2548296
    %v2516 = vmul.f32 %v2515, %v2507
    %v2517 = vsub.f32 0.0, %v2503
    %v2518 = vmul.f32 %v2517, %v2503
    %v2519 = vmul.f32 %v2518, 1.442695
    %v2520 = vpow.pop %v2519
    %v2521 = vmul.f32 %v2516, %v2520
    %v2522 = vsub.f32 1.0, %v2521
    %v2523 = vmul.f32 %v2502, %v2522
    %v2524 = vadd.f32 %v2523, 1.0
    %v2525 = vmul.f32 %v2499, %v2524
    %v2526 = vpack.c.bf16 %v2525, %v2525
    %v2528 = vlaneseq
    %v2529 = vshrl.u32 %v2528, 7
    %v2530 = vsub.s32 0, %v2529
    %v2531 = vrot.slane %v2436, %v2530
    %v2549 = vunpack.c.l.b16 %v2420
    %v2550 = vunpack.c.l.b16 %v2421
    %v2551 = vunpack.c.l.b16 %v2422
    %v2552 = vunpack.c.l.b16 %v2423
    %v2553 = vunpack.c.l.b16 %v2424
    %v2554 = vunpack.c.l.b16 %v2425
    %v2555 = vunpack.c.l.b16 %v2426
    %v2556 = vunpack.c.l.b16 %v2427
    %v2557 = vunpack.c.l.b16 %v2428
    %v2558 = vunpack.c.l.b16 %v2429
    %v2559 = vunpack.c.l.b16 %v2430
    %v2560 = vunpack.c.l.b16 %v2431
    %v2561 = vunpack.c.l.b16 %v2432
    %v2562 = vunpack.c.l.b16 %v2433
    %v2563 = vunpack.c.l.b16 %v2434
    %v2564 = vunpack.c.l.b16 %v2435
    %v2565 = vpack.c.b16 %v2550, %v2549
    %v2566 = vpack.c.b16 %v2552, %v2551
    %v2567 = vpack.c.b16 %v2554, %v2553
    %v2568 = vpack.c.b16 %v2556, %v2555
    %v2569 = vpack.c.b16 %v2558, %v2557
    %v2570 = vpack.c.b16 %v2560, %v2559
    %v2571 = vpack.c.b16 %v2562, %v2561
    %v2572 = vpack.c.b16 %v2564, %v2563
    %2581 = vmatprep.subr.bf16.mxu0 0
    %2582 = vmatpush1.bf16.msra.mxu0 %v2572
    %2583 = vmatprep.subr.bf16.mxu0 0
    %2584 = vmatpush1.bf16.msra.mxu0 %v2571
    %2585 = vmatprep.subr.bf16.mxu0 0
    %2586 = vmatpush1.bf16.msra.mxu0 %v2570
    %2587 = vmatprep.subr.bf16.mxu0 0
    %2588 = vmatpush1.bf16.msra.mxu0 %v2569
    %2589 = vmatprep.subr.bf16.mxu0 0
    %2590 = vmatpush1.bf16.msra.mxu0 %v2568
    %2591 = vmatprep.subr.bf16.mxu0 0
    %2592 = vmatpush1.bf16.msra.mxu0 %v2567
    %2593 = vmatprep.subr.bf16.mxu0 0
    %2594 = vmatpush1.bf16.msra.mxu0 %v2566
    %2595 = vmatprep.subr.bf16.mxu0 0
    %2596 = vmatpush1.bf16.msra.mxu0 %v2565
    %2597 = vmatprep.subr.bf16.mxu0 0
    %2598 = vmatpush2.bf16.msra.mxu0 0
    %2599 = vmatprep.subr.bf16.mxu0 0
    %2600 = vmatpush2.bf16.msra.mxu0 0
    %2601 = vmatprep.subr.bf16.mxu0 0
    %2602 = vmatpush2.bf16.msra.mxu0 0
    %2603 = vmatprep.subr.bf16.mxu0 0
    %2604 = vmatpush2.bf16.msra.mxu0 0
    %2605 = vmatprep.subr.bf16.mxu0 0
    %2606 = vmatpush2.bf16.msra.mxu0 0
    %2607 = vmatprep.subr.bf16.mxu0 0
    %2608 = vmatpush2.bf16.msra.mxu0 0
    %2609 = vmatprep.subr.bf16.mxu0 0
    %2610 = vmatpush2.bf16.msra.mxu0 0
    %2611 = vmatprep.subr.bf16.mxu0 0
    %2612 = vmatpush2.bf16.msra.mxu0 0
    %2613 = vmatprep.mubr.bf16.mxu0 0
    %2614 = vmatmul.mubr.bf16.gmra.mxu0 %v2526
    %v2615 = vpop.f32.mrf.mxu0
    %v2616 = vadd.f32 %v2531, %v2615
    %v2617 = vpop.f32.mrf.mxu0
    %v2618 = vpop.f32.mrf.mxu0
    %v2619 = vpop.f32.mrf.mxu0
    %2620 = vdwg.mxu0
    %vm2621 = vcmask 27648
    %2622 = vst.msk [vmem:[#allocation11] sm:$0xf] %vm2621, %v2616
    %v2623 = vpack.c.bf16 %v2412, %v2412
    %v2625 = vsel %vm209, %v2623, 0
    %2627 = vmatprep.subr.bf16.mxu0 0
    %2628 = vmatpush1.bf16.msra.mxu0 0
    %2629 = vmatprep.subr.bf16.mxu0 0
    %2630 = vmatpush1.bf16.msra.mxu0 0
    %2631 = vmatprep.subr.bf16.mxu0 0
    %2632 = vmatpush1.bf16.msra.mxu0 0
    %2633 = vmatprep.subr.bf16.mxu0 0
    %2634 = vmatpush1.bf16.msra.mxu0 0
    %2635 = vmatprep.subr.bf16.mxu0 0
    %2636 = vmatpush1.bf16.msra.mxu0 0
    %2637 = vmatprep.subr.bf16.mxu0 0
    %2638 = vmatpush1.bf16.msra.mxu0 0
    %2639 = vmatprep.subr.bf16.mxu0 0
    %2640 = vmatpush1.bf16.msra.mxu0 %v2453
    %2641 = vmatprep.subr.bf16.mxu0 0
    %2642 = vmatpush1.bf16.msra.mxu0 %v2452
    %2643 = vmatprep.subr.bf16.mxu0 0
    %2644 = vmatpush2.bf16.msra.mxu0 0
    %2645 = vmatprep.subr.bf16.mxu0 0
    %2646 = vmatpush2.bf16.msra.mxu0 0
    %2647 = vmatprep.subr.bf16.mxu0 0
    %2648 = vmatpush2.bf16.msra.mxu0 0
    %2649 = vmatprep.subr.bf16.mxu0 0
    %2650 = vmatpush2.bf16.msra.mxu0 0
    %2651 = vmatprep.subr.bf16.mxu0 0
    %2652 = vmatpush2.bf16.msra.mxu0 0
    %2653 = vmatprep.subr.bf16.mxu0 0
    %2654 = vmatpush2.bf16.msra.mxu0 0
    %2655 = vmatprep.subr.bf16.mxu0 0
    %2656 = vmatpush2.bf16.msra.mxu0 0
    %2657 = vmatprep.subr.bf16.mxu0 0
    %2658 = vmatpush2.bf16.msra.mxu0 0
    %2659 = vmatprep.mubr.bf16.mxu0 0
    %2660 = vmatmul.mubr.bf16.gmra.mxu0 %v2625
    %v2661 = vpop.f32.mrf.mxu0
    %v2662 = vadd.f32 %v2442, %v2661
    %v2663 = vpop.f32.mrf.mxu0
    %v2664 = vpop.f32.mrf.mxu0
    %v2665 = vpop.f32.mrf.mxu0
    %2666 = vdwg.mxu0
    %v2667 = vmul.f32 %v2662, 0.5
    %v2668 = vmul.f32 %v2662, 0.70710677
    %vm2669 = vcmp.ge.f32.partialorder %v2668, 0.0
    %v2670 = vsel %vm2669, 1.0, -1.0
    %v2671 = vand.u32 2147483647, %v2668
    %v2672 = vmul.f32 %v2671, 0.3275911
    %v2673 = vadd.f32 %v2672, 1.0
    %v2674 = vrcp.pop %v2673
    %v2675 = vmul.f32 1.0, %v2674
    %v2676 = vmul.f32 %v2675, 1.0614054
    %v2677 = vadd.f32 %v2676, -1.4531521
    %v2678 = vmul.f32 %v2677, %v2675
    %v2679 = vadd.f32 %v2678, 1.4214138
    %v2680 = vmul.f32 %v2679, %v2675
    %v2681 = vadd.f32 %v2680, -0.28449672
    %v2682 = vmul.f32 %v2681, %v2675
    %v2683 = vadd.f32 %v2682, 0.2548296
    %v2684 = vmul.f32 %v2683, %v2675
    %v2685 = vsub.f32 0.0, %v2671
    %v2686 = vmul.f32 %v2685, %v2671
    %v2687 = vmul.f32 %v2686, 1.442695
    %v2688 = vpow.pop %v2687
    %v2689 = vmul.f32 %v2684, %v2688
    %v2690 = vsub.f32 1.0, %v2689
    %v2691 = vmul.f32 %v2670, %v2690
    %v2692 = vadd.f32 %v2691, 1.0
    %v2693 = vmul.f32 %v2667, %v2692
    %v2694 = vpack.c.bf16 %v2693, %v2693
    %2695 = vmatprep.subr.bf16.mxu0 0
    %2696 = vmatpush1.bf16.msra.mxu0 %v2572
    %2697 = vmatprep.subr.bf16.mxu0 0
    %2698 = vmatpush1.bf16.msra.mxu0 %v2571
    %2699 = vmatprep.subr.bf16.mxu0 0
    %2700 = vmatpush1.bf16.msra.mxu0 %v2570
    %2701 = vmatprep.subr.bf16.mxu0 0
    %2702 = vmatpush1.bf16.msra.mxu0 %v2569
    %2703 = vmatprep.subr.bf16.mxu0 0
    %2704 = vmatpush1.bf16.msra.mxu0 %v2568
    %2705 = vmatprep.subr.bf16.mxu0 0
    %2706 = vmatpush1.bf16.msra.mxu0 %v2567
    %2707 = vmatprep.subr.bf16.mxu0 0
    %2708 = vmatpush1.bf16.msra.mxu0 %v2566
    %2709 = vmatprep.subr.bf16.mxu0 0
    %2710 = vmatpush1.bf16.msra.mxu0 %v2565
    %2711 = vmatprep.subr.bf16.mxu0 0
    %2712 = vmatpush2.bf16.msra.mxu0 0
    %2713 = vmatprep.subr.bf16.mxu0 0
    %2714 = vmatpush2.bf16.msra.mxu0 0
    %2715 = vmatprep.subr.bf16.mxu0 0
    %2716 = vmatpush2.bf16.msra.mxu0 0
    %2717 = vmatprep.subr.bf16.mxu0 0
    %2718 = vmatpush2.bf16.msra.mxu0 0
    %2719 = vmatprep.subr.bf16.mxu0 0
    %2720 = vmatpush2.bf16.msra.mxu0 0
    %2721 = vmatprep.subr.bf16.mxu0 0
    %2722 = vmatpush2.bf16.msra.mxu0 0
    %2723 = vmatprep.subr.bf16.mxu0 0
    %2724 = vmatpush2.bf16.msra.mxu0 0
    %2725 = vmatprep.subr.bf16.mxu0 0
    %2726 = vmatpush2.bf16.msra.mxu0 0
    %2727 = vmatprep.mubr.bf16.mxu0 0
    %2728 = vmatmul.mubr.bf16.gmra.mxu0 %v2694
    %v2729 = vpop.f32.mrf.mxu0
    %v2730 = vadd.f32 %v2531, %v2729
    %v2731 = vpop.f32.mrf.mxu0
    %v2732 = vpop.f32.mrf.mxu0
    %v2733 = vpop.f32.mrf.mxu0
    %2734 = vdwg.mxu0
    %2735 = vst.msk [vmem:[#allocation11 + $0x4] sm:$0xf] %vm2621, %v2730
    // Predicated region
    $region162: #{forward.1} parent=1 // pred_check
      _
    $region163: #{forward.1} parent=1 // pred_check_branch
      %2737 = sbr.rel (0) target = $region165
    $region164: #{forward.1} parent=1 // pred_region
      %s2739 = ssub.s32 128, 128
      %2740 = vsyncadd [#allocation8], %s2739
      %s2742 = sshll.u32 [#allocation11], 4
      %s2743 = int_to_ptr.vmem [resolvable:$true] %s2742
      %2745 = dma.vmem_to_hbm [thread:$0]  %s2743, 128, %s77, [#allocation8]
    $region165: #{forward.1} parent=1 // pred_fallthru
      _
    // Predicated region
    $region166: #{forward.1} parent=1 // pred_check
      _
    $region167: #{forward.1} parent=1 // pred_check_branch
      %2747 = sbr.rel (0) target = $region169
    $region168: #{forward.1} parent=1 // pred_region
      %2748 = dma.done [#allocation8], 128
    $region169: #{forward.1} parent=1 // pred_fallthru
      _
    %2749 = vsyncpa [#allocation7], 1
    %2750 = vsyncpa [#allocation10], 1
    %2751 = vsyncpa [#allocation8], 1

</llo_original>
